<compile_context>
chip_gen: v7x
topology: tpu7x:2x2x1
jax: 0.10.0
libtpu: 0.0.40
codegen_flags: <defaults>
</compile_context>

<pallas_src>
import math

import jax
import jax.numpy as jnp
from jax.experimental import pallas as pl
from jax.experimental.pallas import tpu as pltpu

EMB = 384
HEADS = 8
HEAD_DIM = EMB // HEADS          # 48
HIDDEN = EMB * 4                 # 1536
EPS = 1e-5                       # nn.LayerNorm default eps
# torch: sqrt_dh = head_dim ** (-0.5); logits = (q @ k^T) / sqrt_dh
#   => logits are *multiplied* by sqrt(head_dim).  Folded into Wq at init.
LOGIT_SCALE = float(HEAD_DIM) ** 0.5


def _layernorm(x, g, b):
    mean = jnp.mean(x, axis=-1, keepdims=True)
    var = jnp.mean(jnp.square(x - mean), axis=-1, keepdims=True)
    return (x - mean) * jax.lax.rsqrt(var + EPS) * g + b


def _gelu_exact(x):
    # nn.GELU() default: 0.5 * x * (1 + erf(x / sqrt(2)))
    return 0.5 * x * (1.0 + jax.lax.erf(x * (1.0 / math.sqrt(2.0))))


def vit_encoder_block_kernel(
    x_ref,                               # (N, D)   f32   (image b, batch squeezed)
    ln1_g_ref, ln1_b_ref,                # (1, D)   f32
    wqkv_ref,                            # (D, 3D)  bf16  [sqrt(dh)*Wq^T | Wk^T | Wv^T]
    wo_ref, bo_ref,                      # (D, D) bf16, (1, D) f32
    ln2_g_ref, ln2_b_ref,                # (1, D)   f32
    w1_hbm, b1_ref,                      # HBM (D, 4D) bf16, (1, 4D) f32
    w2_hbm, b2_ref,                      # HBM (4D, D) bf16, (1, D) f32
    out_ref,                             # (N, D)   f32
    w1_vmem, w2_vmem,                    # VMEM scratch, bf16, persist across grid
    dma_sems,                            # DMA semaphores, shape (2,)
):
    b = pl.program_id(0)

    # Kick off the MLP weight fetch on the first image only; it overlaps with
    # LN1 + attention + Wo below and stays VMEM-resident for all later images.
    @pl.when(b == 0)
    def _():
        pltpu.make_async_copy(w1_hbm, w1_vmem, dma_sems.at[0]).start()
        pltpu.make_async_copy(w2_hbm, w2_vmem, dma_sems.at[1]).start()

    x = x_ref[...]                                               # (N, D) f32

    # ---- z = z + MHSA(LN1(z)) ----------------------------------------------
    h1 = _layernorm(x, ln1_g_ref[...], ln1_b_ref[...])
    qkv = jnp.dot(h1.astype(jnp.bfloat16), wqkv_ref[...],
                  preferred_element_type=jnp.float32)            # (N, 3D)

    def split_heads(t):                  # (N, D) -> (H, N, Dh) in bf16
        t = t.astype(jnp.bfloat16)
        return jnp.stack(
            [t[:, h * HEAD_DIM:(h + 1) * HEAD_DIM] for h in range(HEADS)],
            axis=0)

    q = split_heads(qkv[:, 0:EMB])
    k = split_heads(qkv[:, EMB:2 * EMB])
    v = split_heads(qkv[:, 2 * EMB:3 * EMB])

    # Per-image, head-batched attention; logit scale already folded into Wq.
    logits = jnp.einsum('hnd,hmd->hnm', q, k,
                        preferred_element_type=jnp.float32)      # (H, N, N) f32

    m = jnp.max(logits, axis=-1, keepdims=True)
    e = jnp.exp(logits - m)
    p = (e * pl.reciprocal(jnp.sum(e, axis=-1, keepdims=True),
                           approx=True)).astype(jnp.bfloat16)

    o = jnp.einsum('hnm,hmd->hnd', p, v,
                   preferred_element_type=jnp.float32)           # (H, N, Dh)
    attn_out = jnp.concatenate([o[h] for h in range(HEADS)], axis=-1)  # (N, D)

    mha = jnp.dot(attn_out.astype(jnp.bfloat16), wo_ref[...],
                  preferred_element_type=jnp.float32) + bo_ref[...]
    z1 = x + mha

    # MLP weights must have landed by now (no-op after the first image).
    @pl.when(b == 0)
    def _():
        pltpu.make_async_copy(w1_hbm, w1_vmem, dma_sems.at[0]).wait()
        pltpu.make_async_copy(w2_hbm, w2_vmem, dma_sems.at[1]).wait()

    # ---- z = z + MLP(LN2(z)) -------------------------------------------------
    h2 = _layernorm(z1, ln2_g_ref[...], ln2_b_ref[...])
    m1 = jnp.dot(h2.astype(jnp.bfloat16), w1_vmem[...],
                 preferred_element_type=jnp.float32) + b1_ref[...]
    g = _gelu_exact(m1)
    m2 = jnp.dot(g.astype(jnp.bfloat16), w2_vmem[...],
                 preferred_element_type=jnp.float32) + b2_ref[...]

    out_ref[...] = z1 + m2
    # TODO(synk): Dropout layers have p=0 in the reference config -> identity; omitted.


def vit_encoder_block(z, p):
    B, N, D = z.shape
    const = lambda shape: pl.BlockSpec(shape, lambda b: (0,) * len(shape))

    return pl.pallas_call(
        vit_encoder_block_kernel,
        out_shape=jax.ShapeDtypeStruct((B, N, D), z.dtype),
        grid=(B,),
        in_specs=[
            pl.BlockSpec((None, N, D), lambda b: (b, 0, 0)),       # x (per image)
            const((1, D)), const((1, D)),                          # ln1 g, b
            const((D, 3 * D)),                                     # wqkv (bf16)
            const((D, D)), const((1, D)),                          # wo, bo
            const((1, D)), const((1, D)),                          # ln2 g, b
            pl.BlockSpec(memory_space=pl.ANY),                     # w1 (manual DMA)
            const((1, HIDDEN)),                                    # b1
            pl.BlockSpec(memory_space=pl.ANY),                     # w2 (manual DMA)
            const((1, D)),                                         # b2
        ],
        out_specs=pl.BlockSpec((None, N, D), lambda b: (b, 0, 0)),
        scratch_shapes=[
            pltpu.VMEM((D, HIDDEN), jnp.bfloat16),                 # w1 resident copy
            pltpu.VMEM((HIDDEN, D), jnp.bfloat16),                 # w2 resident copy
            pltpu.SemaphoreType.DMA((2,)),
        ],
        compiler_params=pltpu.CompilerParams(
            # "arbitrary": weights (auto + manual scratch) are fetched once for
            # the whole batch.  Flip to "parallel" on v7x only when per-image
            # compute (large N) dominates the duplicated weight DMA per core.
            dimension_semantics=("arbitrary",),
            vmem_limit_bytes=32 * 1024 * 1024,
        ),
    )(
        z,
        p['ln1_g'], p['ln1_b'],
        p['wqkv_t'],
        p['wo_t'], p['bo'],
        p['ln2_g'], p['ln2_b'],
        p['w1_t'], p['b1'],
        p['w2_t'], p['b2'],
    )


def init_params(key):
    ks = jax.random.split(key, 12)
    s = 0.02
    f32 = jnp.float32
    bf16 = jnp.bfloat16
    # torch Linear stores (out, in); build (out, in) then transpose to (in, out).
    wq = jax.random.normal(ks[0], (EMB, EMB), f32) * s
    wk = jax.random.normal(ks[1], (EMB, EMB), f32) * s
    wv = jax.random.normal(ks[2], (EMB, EMB), f32) * s
    wo = jax.random.normal(ks[3], (EMB, EMB), f32) * s
    bo = jax.random.normal(ks[4], (EMB,), f32) * s
    w1 = jax.random.normal(ks[5], (HIDDEN, EMB), f32) * s
    b1 = jax.random.normal(ks[6], (HIDDEN,), f32) * s
    w2 = jax.random.normal(ks[7], (EMB, HIDDEN), f32) * s
    b2 = jax.random.normal(ks[8], (EMB,), f32) * s
    ln1_g = 1.0 + 0.1 * jax.random.normal(ks[9], (EMB,), f32)
    ln1_b = 0.1 * jax.random.normal(ks[10], (EMB,), f32)
    ln2_g = 1.0 + 0.1 * jax.random.normal(ks[11], (EMB,), f32)
    ln2_b = jnp.zeros((EMB,), f32)
    row = lambda v: v.reshape(1, -1)
    # Matmul weights in bf16 (halves the dominant weight DMA); LayerNorm params
    # and biases stay f32.  Wq/Wk/Wv fused into one (D, 3D) matrix, with the
    # torch logit scale (x sqrt(head_dim)) folded into the Q columns.
    wqkv_t = jnp.concatenate([wq.T * LOGIT_SCALE, wk.T, wv.T], axis=1).astype(bf16)
    return dict(
        ln1_g=row(ln1_g), ln1_b=row(ln1_b),
        wqkv_t=wqkv_t,
        wo_t=wo.T.astype(bf16), bo=row(bo),
        ln2_g=row(ln2_g), ln2_b=row(ln2_b),
        w1_t=w1.T.astype(bf16), b1=row(b1),
        w2_t=w2.T.astype(bf16), b2=row(b2),
    )


def reference(z, p):
    """Pure-JAX re-implementation of ViTEncoderBlock.forward with the same
    precision policy as the kernel (bf16 matmul operands incl. attention,
    f32 accumulation, scale folded into Wq)."""
    B, N, D = z.shape
    f32, bf16 = jnp.float32, jnp.bfloat16
    h = _layernorm(z, p['ln1_g'], p['ln1_b'])
    qkv = jnp.einsum('bnd,de->bne', h.astype(bf16), p['wqkv_t'],
                     preferred_element_type=f32)
    q, k, v = qkv[..., :EMB], qkv[..., EMB:2 * EMB], qkv[..., 2 * EMB:]
    qh = q.reshape(B, N, HEADS, HEAD_DIM).transpose(0, 2, 1, 3).astype(bf16)
    kh = k.reshape(B, N, HEADS, HEAD_DIM).transpose(0, 2, 1, 3).astype(bf16)
    vh = v.reshape(B, N, HEADS, HEAD_DIM).transpose(0, 2, 1, 3).astype(bf16)
    logits = jnp.einsum('bhqd,bhkd->bhqk', qh, kh, preferred_element_type=f32)
    attn = jax.nn.softmax(logits, axis=-1).astype(bf16)
    o = jnp.einsum('bhqk,bhkd->bhqd', attn, vh, preferred_element_type=f32)
    o = o.transpose(0, 2, 1, 3).reshape(B, N, D)
    mha = jnp.dot(o.astype(bf16), p['wo_t'], preferred_element_type=f32) + p['bo']
    z1 = z + mha
    h2 = _layernorm(z1, p['ln2_g'], p['ln2_b'])
    m = _gelu_exact(jnp.dot(h2.astype(bf16), p['w1_t'],
                            preferred_element_type=f32) + p['b1'])
    m = jnp.dot(m.astype(bf16), p['w2_t'], preferred_element_type=f32) + p['b2']
    return z1 + m


if __name__ == "__main__":
    key = jax.random.PRNGKey(0)
    kz, kp = jax.random.split(key)

    # z0 = VitInputLayer()(x) with x: (2, 3, 32, 32) -> z0: (2, num_patch+1=5, 384)
    B, N = 2, 5
    z = jax.random.normal(kz, (B, N, EMB), jnp.float32)
    params = init_params(kp)

    out = vit_encoder_block(z, params)
    out = jax.block_until_ready(out)

    ref = reference(z, params)
    max_err = float(jnp.max(jnp.abs(out - ref)))
    assert out.shape == (B, N, EMB)
    # Kernel and reference share the same bf16-operand / f32-accumulate policy;
    # remaining differences are accumulation order and the approximate softmax
    # reciprocal -> expected well below 2e-2 at output scale ~1.
    assert max_err < 2e-2, f"mismatch vs reference, max abs err = {max_err}"

    print("KERNEL_OK")
</pallas_src>

<mosaic_0001>
module attributes {stable_mosaic.version = 11 : i64} {
  func.func @vit_encoder_block_kernel(%arg0: i32, %arg1: memref<1x5x384xf32, #tpu.memory_space<vmem>>, %arg2: memref<1x384xf32, #tpu.memory_space<vmem>>, %arg3: memref<1x384xf32, #tpu.memory_space<vmem>>, %arg4: memref<384x1152xbf16, #tpu.memory_space<vmem>>, %arg5: memref<384x384xbf16, #tpu.memory_space<vmem>>, %arg6: memref<1x384xf32, #tpu.memory_space<vmem>>, %arg7: memref<1x384xf32, #tpu.memory_space<vmem>>, %arg8: memref<1x384xf32, #tpu.memory_space<vmem>>, %arg9: memref<384x1536xbf16, #tpu.memory_space<any>>, %arg10: memref<1x1536xf32, #tpu.memory_space<vmem>>, %arg11: memref<1536x384xbf16, #tpu.memory_space<any>>, %arg12: memref<1x384xf32, #tpu.memory_space<vmem>>, %arg13: memref<1x5x384xf32, #tpu.memory_space<vmem>>, %arg14: memref<384x1536xbf16, #tpu.memory_space<vmem>>, %arg15: memref<1536x384xbf16, #tpu.memory_space<vmem>>, %arg16: memref<2x!tpu.dma_semaphore, #tpu.memory_space<semaphore_mem>>) attributes {dimension_semantics = [#tpu.dimension_semantics<arbitrary>], iteration_bounds = array<i64: 2>, scalar_prefetch = 0 : i64, scratch_operands = 3 : i64, tpu.core_type = #tpu.core_type<tc>, window_params = [{transform_indices = @transform_0, window_bounds = array<i64: 1, 5, 384>}, {pipeline_mode = #tpu.pipeline_mode<synchronous>, transform_indices = @transform_1, window_bounds = array<i64: 1, 384>}, {pipeline_mode = #tpu.pipeline_mode<synchronous>, transform_indices = @transform_2, window_bounds = array<i64: 1, 384>}, {pipeline_mode = #tpu.pipeline_mode<synchronous>, transform_indices = @transform_3, window_bounds = array<i64: 384, 1152>}, {pipeline_mode = #tpu.pipeline_mode<synchronous>, transform_indices = @transform_4, window_bounds = array<i64: 384, 384>}, {pipeline_mode = #tpu.pipeline_mode<synchronous>, transform_indices = @transform_5, window_bounds = array<i64: 1, 384>}, {pipeline_mode = #tpu.pipeline_mode<synchronous>, transform_indices = @transform_6, window_bounds = array<i64: 1, 384>}, {pipeline_mode = #tpu.pipeline_mode<synchronous>, transform_indices = @transform_7, window_bounds = array<i64: 1, 384>}, {}, {pipeline_mode = #tpu.pipeline_mode<synchronous>, transform_indices = @transform_9, window_bounds = array<i64: 1, 1536>}, {}, {pipeline_mode = #tpu.pipeline_mode<synchronous>, transform_indices = @transform_11, window_bounds = array<i64: 1, 384>}, {transform_indices = @transform_12, window_bounds = array<i64: 1, 5, 384>}]} {
    %c0_i32 = arith.constant 0 : i32
    %0 = arith.cmpi eq, %arg0, %c0_i32 : i32
    %1 = arith.extui %0 : i1 to i32
    %c0_i32_0 = arith.constant 0 : i32
    %2 = arith.cmpi ne, %1, %c0_i32_0 : i32
    scf.if %2 {
      %c0_i32_50 = arith.constant 0 : i32
      %177 = tpu.memref_slice %arg16[%c0_i32_50] : memref<2x!tpu.dma_semaphore, #tpu.memory_space<semaphore_mem>> -> memref<1x!tpu.dma_semaphore, #tpu.memory_space<semaphore_mem>>
      %178 = tpu.memref_squeeze %177 : memref<1x!tpu.dma_semaphore, #tpu.memory_space<semaphore_mem>> -> memref<!tpu.dma_semaphore, #tpu.memory_space<semaphore_mem>>
      tpu.enqueue_dma source(%arg9 : memref<384x1536xbf16, #tpu.memory_space<any>>) target(%arg14 : memref<384x1536xbf16, #tpu.memory_space<vmem>>) target_semaphore(%178 : memref<!tpu.dma_semaphore, #tpu.memory_space<semaphore_mem>>)
      %c1_i32 = arith.constant 1 : i32
      %179 = tpu.memref_slice %arg16[%c1_i32] : memref<2x!tpu.dma_semaphore, #tpu.memory_space<semaphore_mem>> -> memref<1x!tpu.dma_semaphore, #tpu.memory_space<semaphore_mem>>
      %180 = tpu.memref_squeeze %179 : memref<1x!tpu.dma_semaphore, #tpu.memory_space<semaphore_mem>> -> memref<!tpu.dma_semaphore, #tpu.memory_space<semaphore_mem>>
      tpu.enqueue_dma source(%arg11 : memref<1536x384xbf16, #tpu.memory_space<any>>) target(%arg15 : memref<1536x384xbf16, #tpu.memory_space<vmem>>) target_semaphore(%180 : memref<!tpu.dma_semaphore, #tpu.memory_space<semaphore_mem>>)
    } else {
    }
    %c0 = arith.constant 0 : index
    %c0_1 = arith.constant 0 : index
    %c0_2 = arith.constant 0 : index
    %3 = vector.load %arg1[%c0, %c0_1, %c0_2] : memref<1x5x384xf32, #tpu.memory_space<vmem>>, vector<1x5x384xf32>
    %4 = vector.shape_cast %3 : vector<1x5x384xf32> to vector<5x384xf32>
    %c0_3 = arith.constant 0 : index
    %c0_4 = arith.constant 0 : index
    %5 = vector.load %arg2[%c0_3, %c0_4] : memref<1x384xf32, #tpu.memory_space<vmem>>, vector<1x384xf32>
    %c0_5 = arith.constant 0 : index
    %c0_6 = arith.constant 0 : index
    %6 = vector.load %arg3[%c0_5, %c0_6] : memref<1x384xf32, #tpu.memory_space<vmem>>, vector<1x384xf32>
    %cst = arith.constant dense<0.000000e+00> : vector<5xf32>
    %7 = vector.multi_reduction <add>, %4, %cst [1] : vector<5x384xf32> to vector<5xf32>
    %8 = vector.shape_cast %7 : vector<5xf32> to vector<5x1xf32>
    %cst_7 = arith.constant 3.840000e+02 : f32
    %9 = vector.broadcast %cst_7 : f32 to vector<5x1xf32>
    %10 = arith.divf %8, %9 : vector<5x1xf32>
    %11 = vector.broadcast %10 : vector<5x1xf32> to vector<5x384xf32>
    %12 = arith.subf %4, %11 : vector<5x384xf32>
    %13 = arith.mulf %12, %12 : vector<5x384xf32>
    %cst_8 = arith.constant dense<0.000000e+00> : vector<5xf32>
    %14 = vector.multi_reduction <add>, %13, %cst_8 [1] : vector<5x384xf32> to vector<5xf32>
    %15 = vector.shape_cast %14 : vector<5xf32> to vector<5x1xf32>
    %cst_9 = arith.constant 3.840000e+02 : f32
    %16 = vector.broadcast %cst_9 : f32 to vector<5x1xf32>
    %17 = arith.divf %15, %16 : vector<5x1xf32>
    %18 = vector.broadcast %10 : vector<5x1xf32> to vector<5x384xf32>
    %19 = arith.subf %4, %18 : vector<5x384xf32>
    %cst_10 = arith.constant 9.99999974E-6 : f32
    %20 = vector.broadcast %cst_10 : f32 to vector<5x1xf32>
    %21 = arith.addf %17, %20 : vector<5x1xf32>
    %22 = math.rsqrt %21 : vector<5x1xf32>
    %23 = vector.broadcast %22 : vector<5x1xf32> to vector<5x384xf32>
    %24 = arith.mulf %19, %23 : vector<5x384xf32>
    %25 = vector.broadcast %5 : vector<1x384xf32> to vector<5x384xf32>
    %26 = arith.mulf %24, %25 : vector<5x384xf32>
    %27 = vector.broadcast %6 : vector<1x384xf32> to vector<5x384xf32>
    %28 = arith.addf %26, %27 : vector<5x384xf32>
    %29 = arith.truncf %28 : vector<5x384xf32> to vector<5x384xbf16>
    %c0_11 = arith.constant 0 : index
    %c0_12 = arith.constant 0 : index
    %30 = vector.load %arg4[%c0_11, %c0_12] : memref<384x1152xbf16, #tpu.memory_space<vmem>>, vector<384x1152xbf16>
    %cst_13 = arith.constant dense<0.000000e+00> : vector<5x1152xf32>
    %31 = tpu.matmul %29, %30, %cst_13 {dimension_numbers = #tpu.dot_dimension_numbers<[1], [0], [0], [1], [0, 0, 1, 1], [], []>} : vector<5x384xbf16>, vector<384x1152xbf16>, vector<5x1152xf32> -> vector<5x1152xf32>
    %32 = vector.extract_strided_slice %31 {offsets = [0, 0], sizes = [5, 384], strides = [1, 1]} : vector<5x1152xf32> to vector<5x384xf32>
    %33 = arith.truncf %32 : vector<5x384xf32> to vector<5x384xbf16>
    %34 = vector.extract_strided_slice %33 {offsets = [0, 0], sizes = [5, 48], strides = [1, 1]} : vector<5x384xbf16> to vector<5x48xbf16>
    %35 = vector.extract_strided_slice %33 {offsets = [0, 48], sizes = [5, 48], strides = [1, 1]} : vector<5x384xbf16> to vector<5x48xbf16>
    %36 = vector.extract_strided_slice %33 {offsets = [0, 96], sizes = [5, 48], strides = [1, 1]} : vector<5x384xbf16> to vector<5x48xbf16>
    %37 = vector.extract_strided_slice %33 {offsets = [0, 144], sizes = [5, 48], strides = [1, 1]} : vector<5x384xbf16> to vector<5x48xbf16>
    %38 = vector.extract_strided_slice %33 {offsets = [0, 192], sizes = [5, 48], strides = [1, 1]} : vector<5x384xbf16> to vector<5x48xbf16>
    %39 = vector.extract_strided_slice %33 {offsets = [0, 240], sizes = [5, 48], strides = [1, 1]} : vector<5x384xbf16> to vector<5x48xbf16>
    %40 = vector.extract_strided_slice %33 {offsets = [0, 288], sizes = [5, 48], strides = [1, 1]} : vector<5x384xbf16> to vector<5x48xbf16>
    %41 = vector.extract_strided_slice %33 {offsets = [0, 336], sizes = [5, 48], strides = [1, 1]} : vector<5x384xbf16> to vector<5x48xbf16>
    %42 = vector.shape_cast %34 : vector<5x48xbf16> to vector<1x5x48xbf16>
    %43 = vector.shape_cast %35 : vector<5x48xbf16> to vector<1x5x48xbf16>
    %44 = vector.shape_cast %36 : vector<5x48xbf16> to vector<1x5x48xbf16>
    %45 = vector.shape_cast %37 : vector<5x48xbf16> to vector<1x5x48xbf16>
    %46 = vector.shape_cast %38 : vector<5x48xbf16> to vector<1x5x48xbf16>
    %47 = vector.shape_cast %39 : vector<5x48xbf16> to vector<1x5x48xbf16>
    %48 = vector.shape_cast %40 : vector<5x48xbf16> to vector<1x5x48xbf16>
    %49 = vector.shape_cast %41 : vector<5x48xbf16> to vector<1x5x48xbf16>
    %50 = tpu.concatenate %42, %43, %44, %45, %46, %47, %48, %49 in 0 : vector<1x5x48xbf16>, vector<1x5x48xbf16>, vector<1x5x48xbf16>, vector<1x5x48xbf16>, vector<1x5x48xbf16>, vector<1x5x48xbf16>, vector<1x5x48xbf16>, vector<1x5x48xbf16> -> vector<8x5x48xbf16>
    %51 = vector.extract_strided_slice %31 {offsets = [0, 384], sizes = [5, 384], strides = [1, 1]} : vector<5x1152xf32> to vector<5x384xf32>
    %52 = arith.truncf %51 : vector<5x384xf32> to vector<5x384xbf16>
    %53 = vector.extract_strided_slice %52 {offsets = [0, 0], sizes = [5, 48], strides = [1, 1]} : vector<5x384xbf16> to vector<5x48xbf16>
    %54 = vector.extract_strided_slice %52 {offsets = [0, 48], sizes = [5, 48], strides = [1, 1]} : vector<5x384xbf16> to vector<5x48xbf16>
    %55 = vector.extract_strided_slice %52 {offsets = [0, 96], sizes = [5, 48], strides = [1, 1]} : vector<5x384xbf16> to vector<5x48xbf16>
    %56 = vector.extract_strided_slice %52 {offsets = [0, 144], sizes = [5, 48], strides = [1, 1]} : vector<5x384xbf16> to vector<5x48xbf16>
    %57 = vector.extract_strided_slice %52 {offsets = [0, 192], sizes = [5, 48], strides = [1, 1]} : vector<5x384xbf16> to vector<5x48xbf16>
    %58 = vector.extract_strided_slice %52 {offsets = [0, 240], sizes = [5, 48], strides = [1, 1]} : vector<5x384xbf16> to vector<5x48xbf16>
    %59 = vector.extract_strided_slice %52 {offsets = [0, 288], sizes = [5, 48], strides = [1, 1]} : vector<5x384xbf16> to vector<5x48xbf16>
    %60 = vector.extract_strided_slice %52 {offsets = [0, 336], sizes = [5, 48], strides = [1, 1]} : vector<5x384xbf16> to vector<5x48xbf16>
    %61 = vector.shape_cast %53 : vector<5x48xbf16> to vector<1x5x48xbf16>
    %62 = vector.shape_cast %54 : vector<5x48xbf16> to vector<1x5x48xbf16>
    %63 = vector.shape_cast %55 : vector<5x48xbf16> to vector<1x5x48xbf16>
    %64 = vector.shape_cast %56 : vector<5x48xbf16> to vector<1x5x48xbf16>
    %65 = vector.shape_cast %57 : vector<5x48xbf16> to vector<1x5x48xbf16>
    %66 = vector.shape_cast %58 : vector<5x48xbf16> to vector<1x5x48xbf16>
    %67 = vector.shape_cast %59 : vector<5x48xbf16> to vector<1x5x48xbf16>
    %68 = vector.shape_cast %60 : vector<5x48xbf16> to vector<1x5x48xbf16>
    %69 = tpu.concatenate %61, %62, %63, %64, %65, %66, %67, %68 in 0 : vector<1x5x48xbf16>, vector<1x5x48xbf16>, vector<1x5x48xbf16>, vector<1x5x48xbf16>, vector<1x5x48xbf16>, vector<1x5x48xbf16>, vector<1x5x48xbf16>, vector<1x5x48xbf16> -> vector<8x5x48xbf16>
    %70 = vector.extract_strided_slice %31 {offsets = [0, 768], sizes = [5, 384], strides = [1, 1]} : vector<5x1152xf32> to vector<5x384xf32>
    %71 = arith.truncf %70 : vector<5x384xf32> to vector<5x384xbf16>
    %72 = vector.extract_strided_slice %71 {offsets = [0, 0], sizes = [5, 48], strides = [1, 1]} : vector<5x384xbf16> to vector<5x48xbf16>
    %73 = vector.extract_strided_slice %71 {offsets = [0, 48], sizes = [5, 48], strides = [1, 1]} : vector<5x384xbf16> to vector<5x48xbf16>
    %74 = vector.extract_strided_slice %71 {offsets = [0, 96], sizes = [5, 48], strides = [1, 1]} : vector<5x384xbf16> to vector<5x48xbf16>
    %75 = vector.extract_strided_slice %71 {offsets = [0, 144], sizes = [5, 48], strides = [1, 1]} : vector<5x384xbf16> to vector<5x48xbf16>
    %76 = vector.extract_strided_slice %71 {offsets = [0, 192], sizes = [5, 48], strides = [1, 1]} : vector<5x384xbf16> to vector<5x48xbf16>
    %77 = vector.extract_strided_slice %71 {offsets = [0, 240], sizes = [5, 48], strides = [1, 1]} : vector<5x384xbf16> to vector<5x48xbf16>
    %78 = vector.extract_strided_slice %71 {offsets = [0, 288], sizes = [5, 48], strides = [1, 1]} : vector<5x384xbf16> to vector<5x48xbf16>
    %79 = vector.extract_strided_slice %71 {offsets = [0, 336], sizes = [5, 48], strides = [1, 1]} : vector<5x384xbf16> to vector<5x48xbf16>
    %80 = vector.shape_cast %72 : vector<5x48xbf16> to vector<1x5x48xbf16>
    %81 = vector.shape_cast %73 : vector<5x48xbf16> to vector<1x5x48xbf16>
    %82 = vector.shape_cast %74 : vector<5x48xbf16> to vector<1x5x48xbf16>
    %83 = vector.shape_cast %75 : vector<5x48xbf16> to vector<1x5x48xbf16>
    %84 = vector.shape_cast %76 : vector<5x48xbf16> to vector<1x5x48xbf16>
    %85 = vector.shape_cast %77 : vector<5x48xbf16> to vector<1x5x48xbf16>
    %86 = vector.shape_cast %78 : vector<5x48xbf16> to vector<1x5x48xbf16>
    %87 = vector.shape_cast %79 : vector<5x48xbf16> to vector<1x5x48xbf16>
    %88 = tpu.concatenate %80, %81, %82, %83, %84, %85, %86, %87 in 0 : vector<1x5x48xbf16>, vector<1x5x48xbf16>, vector<1x5x48xbf16>, vector<1x5x48xbf16>, vector<1x5x48xbf16>, vector<1x5x48xbf16>, vector<1x5x48xbf16>, vector<1x5x48xbf16> -> vector<8x5x48xbf16>
    "tpu.trace_start"() <{level = 10 : i32, message = "hnd,hmd->hnm"}> : () -> ()
    %cst_14 = arith.constant dense<0.000000e+00> : vector<8x5x5xf32>
    %89 = tpu.matmul %50, %69, %cst_14 {dimension_numbers = #tpu.dot_dimension_numbers<[2], [2], [1], [1], [0, 0, 0, 1, 1, 1], [0], [0]>} : vector<8x5x48xbf16>, vector<8x5x48xbf16>, vector<8x5x5xf32> -> vector<8x5x5xf32>
    "tpu.trace_stop"() : () -> ()
    %cst_15 = arith.constant dense<0xFF800000> : vector<8x5xf32>
    %90 = vector.multi_reduction <maximumf>, %89, %cst_15 [2] : vector<8x5x5xf32> to vector<8x5xf32>
    %91 = vector.shape_cast %90 : vector<8x5xf32> to vector<8x5x1xf32>
    %92 = vector.broadcast %91 : vector<8x5x1xf32> to vector<8x5x5xf32>
    %93 = arith.subf %89, %92 : vector<8x5x5xf32>
    %94 = math.exp %93 : vector<8x5x5xf32>
    %cst_16 = arith.constant dense<0.000000e+00> : vector<8x5xf32>
    %95 = vector.multi_reduction <add>, %94, %cst_16 [2] : vector<8x5x5xf32> to vector<8x5xf32>
    %96 = vector.shape_cast %95 : vector<8x5xf32> to vector<8x5x1xf32>
    %97 = tpu.reciprocal %96 {approx = true} : vector<8x5x1xf32> -> vector<8x5x1xf32>
    %98 = vector.broadcast %97 : vector<8x5x1xf32> to vector<8x5x5xf32>
    %99 = arith.mulf %94, %98 : vector<8x5x5xf32>
    %100 = arith.truncf %99 : vector<8x5x5xf32> to vector<8x5x5xbf16>
    "tpu.trace_start"() <{level = 10 : i32, message = "hnm,hmd->hnd"}> : () -> ()
    %cst_17 = arith.constant dense<0.000000e+00> : vector<8x5x48xf32>
    %101 = tpu.matmul %100, %88, %cst_17 {dimension_numbers = #tpu.dot_dimension_numbers<[2], [1], [1], [2], [0, 0, 0, 1, 1, 2], [0], [0]>} : vector<8x5x5xbf16>, vector<8x5x48xbf16>, vector<8x5x48xf32> -> vector<8x5x48xf32>
    "tpu.trace_stop"() : () -> ()
    %102 = vector.extract_strided_slice %101 {offsets = [0, 0, 0], sizes = [1, 5, 48], strides = [1, 1, 1]} : vector<8x5x48xf32> to vector<1x5x48xf32>
    %103 = vector.shape_cast %102 : vector<1x5x48xf32> to vector<5x48xf32>
    %104 = vector.extract_strided_slice %101 {offsets = [1, 0, 0], sizes = [1, 5, 48], strides = [1, 1, 1]} : vector<8x5x48xf32> to vector<1x5x48xf32>
    %105 = vector.shape_cast %104 : vector<1x5x48xf32> to vector<5x48xf32>
    %106 = vector.extract_strided_slice %101 {offsets = [2, 0, 0], sizes = [1, 5, 48], strides = [1, 1, 1]} : vector<8x5x48xf32> to vector<1x5x48xf32>
    %107 = vector.shape_cast %106 : vector<1x5x48xf32> to vector<5x48xf32>
    %108 = vector.extract_strided_slice %101 {offsets = [3, 0, 0], sizes = [1, 5, 48], strides = [1, 1, 1]} : vector<8x5x48xf32> to vector<1x5x48xf32>
    %109 = vector.shape_cast %108 : vector<1x5x48xf32> to vector<5x48xf32>
    %110 = vector.extract_strided_slice %101 {offsets = [4, 0, 0], sizes = [1, 5, 48], strides = [1, 1, 1]} : vector<8x5x48xf32> to vector<1x5x48xf32>
    %111 = vector.shape_cast %110 : vector<1x5x48xf32> to vector<5x48xf32>
    %112 = vector.extract_strided_slice %101 {offsets = [5, 0, 0], sizes = [1, 5, 48], strides = [1, 1, 1]} : vector<8x5x48xf32> to vector<1x5x48xf32>
    %113 = vector.shape_cast %112 : vector<1x5x48xf32> to vector<5x48xf32>
    %114 = vector.extract_strided_slice %101 {offsets = [6, 0, 0], sizes = [1, 5, 48], strides = [1, 1, 1]} : vector<8x5x48xf32> to vector<1x5x48xf32>
    %115 = vector.shape_cast %114 : vector<1x5x48xf32> to vector<5x48xf32>
    %116 = vector.extract_strided_slice %101 {offsets = [7, 0, 0], sizes = [1, 5, 48], strides = [1, 1, 1]} : vector<8x5x48xf32> to vector<1x5x48xf32>
    %117 = vector.shape_cast %116 : vector<1x5x48xf32> to vector<5x48xf32>
    %118 = tpu.concatenate %103, %105, %107, %109, %111, %113, %115, %117 in 1 : vector<5x48xf32>, vector<5x48xf32>, vector<5x48xf32>, vector<5x48xf32>, vector<5x48xf32>, vector<5x48xf32>, vector<5x48xf32>, vector<5x48xf32> -> vector<5x384xf32>
    %119 = arith.truncf %118 : vector<5x384xf32> to vector<5x384xbf16>
    %c0_18 = arith.constant 0 : index
    %c0_19 = arith.constant 0 : index
    %120 = vector.load %arg5[%c0_18, %c0_19] : memref<384x384xbf16, #tpu.memory_space<vmem>>, vector<384x384xbf16>
    %cst_20 = arith.constant dense<0.000000e+00> : vector<5x384xf32>
    %121 = tpu.matmul %119, %120, %cst_20 {dimension_numbers = #tpu.dot_dimension_numbers<[1], [0], [0], [1], [0, 0, 1, 1], [], []>} : vector<5x384xbf16>, vector<384x384xbf16>, vector<5x384xf32> -> vector<5x384xf32>
    %c0_21 = arith.constant 0 : index
    %c0_22 = arith.constant 0 : index
    %122 = vector.load %arg6[%c0_21, %c0_22] : memref<1x384xf32, #tpu.memory_space<vmem>>, vector<1x384xf32>
    %123 = vector.broadcast %122 : vector<1x384xf32> to vector<5x384xf32>
    %124 = arith.addf %121, %123 : vector<5x384xf32>
    %125 = arith.addf %4, %124 : vector<5x384xf32>
    %c0_i32_23 = arith.constant 0 : i32
    %126 = arith.cmpi eq, %arg0, %c0_i32_23 : i32
    %127 = arith.extui %126 : i1 to i32
    %c0_i32_24 = arith.constant 0 : i32
    %128 = arith.cmpi ne, %127, %c0_i32_24 : i32
    scf.if %128 {
      %c0_i32_50 = arith.constant 0 : i32
      %177 = tpu.memref_slice %arg16[%c0_i32_50] : memref<2x!tpu.dma_semaphore, #tpu.memory_space<semaphore_mem>> -> memref<1x!tpu.dma_semaphore, #tpu.memory_space<semaphore_mem>>
      %178 = tpu.memref_squeeze %177 : memref<1x!tpu.dma_semaphore, #tpu.memory_space<semaphore_mem>> -> memref<!tpu.dma_semaphore, #tpu.memory_space<semaphore_mem>>
      tpu.wait_dma2 semaphore(%178 : memref<!tpu.dma_semaphore, #tpu.memory_space<semaphore_mem>>) src(%arg9 : memref<384x1536xbf16, #tpu.memory_space<any>>) dst(%arg14 : memref<384x1536xbf16, #tpu.memory_space<vmem>>)
      %c1_i32 = arith.constant 1 : i32
      %179 = tpu.memref_slice %arg16[%c1_i32] : memref<2x!tpu.dma_semaphore, #tpu.memory_space<semaphore_mem>> -> memref<1x!tpu.dma_semaphore, #tpu.memory_space<semaphore_mem>>
      %180 = tpu.memref_squeeze %179 : memref<1x!tpu.dma_semaphore, #tpu.memory_space<semaphore_mem>> -> memref<!tpu.dma_semaphore, #tpu.memory_space<semaphore_mem>>
      tpu.wait_dma2 semaphore(%180 : memref<!tpu.dma_semaphore, #tpu.memory_space<semaphore_mem>>) src(%arg11 : memref<1536x384xbf16, #tpu.memory_space<any>>) dst(%arg15 : memref<1536x384xbf16, #tpu.memory_space<vmem>>)
    } else {
    }
    %c0_25 = arith.constant 0 : index
    %c0_26 = arith.constant 0 : index
    %129 = vector.load %arg7[%c0_25, %c0_26] : memref<1x384xf32, #tpu.memory_space<vmem>>, vector<1x384xf32>
    %c0_27 = arith.constant 0 : index
    %c0_28 = arith.constant 0 : index
    %130 = vector.load %arg8[%c0_27, %c0_28] : memref<1x384xf32, #tpu.memory_space<vmem>>, vector<1x384xf32>
    %cst_29 = arith.constant dense<0.000000e+00> : vector<5xf32>
    %131 = vector.multi_reduction <add>, %125, %cst_29 [1] : vector<5x384xf32> to vector<5xf32>
    %132 = vector.shape_cast %131 : vector<5xf32> to vector<5x1xf32>
    %cst_30 = arith.constant 3.840000e+02 : f32
    %133 = vector.broadcast %cst_30 : f32 to vector<5x1xf32>
    %134 = arith.divf %132, %133 : vector<5x1xf32>
    %135 = vector.broadcast %134 : vector<5x1xf32> to vector<5x384xf32>
    %136 = arith.subf %125, %135 : vector<5x384xf32>
    %137 = arith.mulf %136, %136 : vector<5x384xf32>
    %cst_31 = arith.constant dense<0.000000e+00> : vector<5xf32>
    %138 = vector.multi_reduction <add>, %137, %cst_31 [1] : vector<5x384xf32> to vector<5xf32>
    %139 = vector.shape_cast %138 : vector<5xf32> to vector<5x1xf32>
    %cst_32 = arith.constant 3.840000e+02 : f32
    %140 = vector.broadcast %cst_32 : f32 to vector<5x1xf32>
    %141 = arith.divf %139, %140 : vector<5x1xf32>
    %142 = vector.broadcast %134 : vector<5x1xf32> to vector<5x384xf32>
    %143 = arith.subf %125, %142 : vector<5x384xf32>
    %cst_33 = arith.constant 9.99999974E-6 : f32
    %144 = vector.broadcast %cst_33 : f32 to vector<5x1xf32>
    %145 = arith.addf %141, %144 : vector<5x1xf32>
    %146 = math.rsqrt %145 : vector<5x1xf32>
    %147 = vector.broadcast %146 : vector<5x1xf32> to vector<5x384xf32>
    %148 = arith.mulf %143, %147 : vector<5x384xf32>
    %149 = vector.broadcast %129 : vector<1x384xf32> to vector<5x384xf32>
    %150 = arith.mulf %148, %149 : vector<5x384xf32>
    %151 = vector.broadcast %130 : vector<1x384xf32> to vector<5x384xf32>
    %152 = arith.addf %150, %151 : vector<5x384xf32>
    %153 = arith.truncf %152 : vector<5x384xf32> to vector<5x384xbf16>
    %c0_34 = arith.constant 0 : index
    %c0_35 = arith.constant 0 : index
    %154 = vector.load %arg14[%c0_34, %c0_35] : memref<384x1536xbf16, #tpu.memory_space<vmem>>, vector<384x1536xbf16>
    %cst_36 = arith.constant dense<0.000000e+00> : vector<5x1536xf32>
    %155 = tpu.matmul %153, %154, %cst_36 {dimension_numbers = #tpu.dot_dimension_numbers<[1], [0], [0], [1], [0, 0, 1, 1], [], []>} : vector<5x384xbf16>, vector<384x1536xbf16>, vector<5x1536xf32> -> vector<5x1536xf32>
    %c0_37 = arith.constant 0 : index
    %c0_38 = arith.constant 0 : index
    %156 = vector.load %arg10[%c0_37, %c0_38] : memref<1x1536xf32, #tpu.memory_space<vmem>>, vector<1x1536xf32>
    %157 = vector.broadcast %156 : vector<1x1536xf32> to vector<5x1536xf32>
    %158 = arith.addf %155, %157 : vector<5x1536xf32>
    %cst_39 = arith.constant 5.000000e-01 : f32
    %159 = vector.broadcast %cst_39 : f32 to vector<5x1536xf32>
    %160 = arith.mulf %159, %158 : vector<5x1536xf32>
    %cst_40 = arith.constant 0.707106769 : f32
    %161 = vector.broadcast %cst_40 : f32 to vector<5x1536xf32>
    %162 = arith.mulf %158, %161 : vector<5x1536xf32>
    %163 = math.erf %162 : vector<5x1536xf32>
    %cst_41 = arith.constant 1.000000e+00 : f32
    %164 = vector.broadcast %cst_41 : f32 to vector<5x1536xf32>
    %165 = arith.addf %164, %163 : vector<5x1536xf32>
    %166 = arith.mulf %160, %165 : vector<5x1536xf32>
    %167 = arith.truncf %166 : vector<5x1536xf32> to vector<5x1536xbf16>
    %c0_42 = arith.constant 0 : index
    %c0_43 = arith.constant 0 : index
    %168 = vector.load %arg15[%c0_42, %c0_43] : memref<1536x384xbf16, #tpu.memory_space<vmem>>, vector<1536x384xbf16>
    %cst_44 = arith.constant dense<0.000000e+00> : vector<5x384xf32>
    %169 = tpu.matmul %167, %168, %cst_44 {dimension_numbers = #tpu.dot_dimension_numbers<[1], [0], [0], [1], [0, 0, 1, 1], [], []>} : vector<5x1536xbf16>, vector<1536x384xbf16>, vector<5x384xf32> -> vector<5x384xf32>
    %c0_45 = arith.constant 0 : index
    %c0_46 = arith.constant 0 : index
    %170 = vector.load %arg12[%c0_45, %c0_46] : memref<1x384xf32, #tpu.memory_space<vmem>>, vector<1x384xf32>
    %171 = vector.broadcast %170 : vector<1x384xf32> to vector<5x384xf32>
    %172 = arith.addf %169, %171 : vector<5x384xf32>
    %173 = arith.addf %125, %172 : vector<5x384xf32>
    %c0_47 = arith.constant 0 : index
    %c0_48 = arith.constant 0 : index
    %c0_49 = arith.constant 0 : index
    %174 = vector.load %arg13[%c0_47, %c0_48, %c0_49] : memref<1x5x384xf32, #tpu.memory_space<vmem>>, vector<1x5x384xf32>
    %175 = vector.shape_cast %174 : vector<1x5x384xf32> to vector<5x384xf32>
    %176 = vector.shape_cast %173 : vector<5x384xf32> to vector<1x5x384xf32>
    tpu.vector_store %arg13[%c0_47, %c0_48, %c0_49], %176 {strides = array<i32>} : memref<1x5x384xf32, #tpu.memory_space<vmem>>, vector<1x5x384xf32>,
    return
  }
  func.func @transform_0(%arg0: i32) -> (i32, i32, i32) {
    %c0_i32 = arith.constant 0 : i32
    %c0_i32_0 = arith.constant 0 : i32
    %c0_i32_1 = arith.constant 0 : i32
    return %arg0, %c0_i32, %c0_i32_0 : i32, i32, i32
  }
  func.func @transform_1(%arg0: i32) -> (i32, i32) {
    %c0_i32 = arith.constant 0 : i32
    %c0_i32_0 = arith.constant 0 : i32
    %c0_i32_1 = arith.constant 0 : i32
    return %c0_i32, %c0_i32_0 : i32, i32
  }
  func.func @transform_2(%arg0: i32) -> (i32, i32) {
    %c0_i32 = arith.constant 0 : i32
    %c0_i32_0 = arith.constant 0 : i32
    %c0_i32_1 = arith.constant 0 : i32
    return %c0_i32, %c0_i32_0 : i32, i32
  }
  func.func @transform_3(%arg0: i32) -> (i32, i32) {
    %c0_i32 = arith.constant 0 : i32
    %c0_i32_0 = arith.constant 0 : i32
    %c0_i32_1 = arith.constant 0 : i32
    return %c0_i32, %c0_i32_0 : i32, i32
  }
  func.func @transform_4(%arg0: i32) -> (i32, i32) {
    %c0_i32 = arith.constant 0 : i32
    %c0_i32_0 = arith.constant 0 : i32
    %c0_i32_1 = arith.constant 0 : i32
    return %c0_i32, %c0_i32_0 : i32, i32
  }
  func.func @transform_5(%arg0: i32) -> (i32, i32) {
    %c0_i32 = arith.constant 0 : i32
    %c0_i32_0 = arith.constant 0 : i32
    %c0_i32_1 = arith.constant 0 : i32
    return %c0_i32, %c0_i32_0 : i32, i32
  }
  func.func @transform_6(%arg0: i32) -> (i32, i32) {
    %c0_i32 = arith.constant 0 : i32
    %c0_i32_0 = arith.constant 0 : i32
    %c0_i32_1 = arith.constant 0 : i32
    return %c0_i32, %c0_i32_0 : i32, i32
  }
  func.func @transform_7(%arg0: i32) -> (i32, i32) {
    %c0_i32 = arith.constant 0 : i32
    %c0_i32_0 = arith.constant 0 : i32
    %c0_i32_1 = arith.constant 0 : i32
    return %c0_i32, %c0_i32_0 : i32, i32
  }
  func.func @transform_9(%arg0: i32) -> (i32, i32) {
    %c0_i32 = arith.constant 0 : i32
    %c0_i32_0 = arith.constant 0 : i32
    %c0_i32_1 = arith.constant 0 : i32
    return %c0_i32, %c0_i32_0 : i32, i32
  }
  func.func @transform_11(%arg0: i32) -> (i32, i32) {
    %c0_i32 = arith.constant 0 : i32
    %c0_i32_0 = arith.constant 0 : i32
    %c0_i32_1 = arith.constant 0 : i32
    return %c0_i32, %c0_i32_0 : i32, i32
  }
  func.func @transform_12(%arg0: i32) -> (i32, i32, i32) {
    %c0_i32 = arith.constant 0 : i32
    %c0_i32_0 = arith.constant 0 : i32
    %c0_i32_1 = arith.constant 0 : i32
    return %arg0, %c0_i32, %c0_i32_0 : i32, i32, i32
  }
}

</mosaic_0001>

<llo_original>
// kernel: tpu_custom_call.1
$region0: #{tpu_custom_call.1}
  #allocation0 [shape = 'u32[]', space=smem, size = 0x4, offset = 0x4, fixed_abs, tag = 'smem constant byte address 0x4 - core index']
  #allocation1 [shape = 'u32[144,128]{1,0:T(1,128)}', space=vmem, size = 0x12000, scoped, tag = 'internal scratch']
  #allocation2 [shape = 'bf16[384,1536]{1,0:T(16,128)(2,1)}', space=vmem, size = 0x120000, scoped, tag = 'scratch operand']
  #allocation3 [shape = 'bf16[1536,384]{1,0:T(16,128)(2,1)}', space=vmem, size = 0x120000, scoped, tag = 'scratch operand']
  #allocation4 [shape = 's32[2]{0}', space=sflag, size = 0x8, scoped, tag = 'scratch operand']
  #allocation19 [shape = 's32[]', space=sflag, size = 0x4, offset = 0, fixed_abs, tag = 'sflag constant byte address 0x0 - dummy sync flag']
  #allocation21 [shape = 's32[]', space=sflag, size = 0x4, offset = 0, fixed_abs, tag = 'sflag constant byte address 0x0 - dummy sync flag']
  %s0 = inlined_call_operand.vmem [shape: f32[2,5,384], index: 0, kind: input, shape index: {}]
  %s1 = inlined_call_operand.hbm [shape: f32[1,384], index: 1, kind: input, shape index: {}]
  %s2 = inlined_call_operand.hbm [shape: f32[1,384], index: 2, kind: input, shape index: {}]
  %s3 = inlined_call_operand.hbm [shape: bf16[384,1152], index: 3, kind: input, shape index: {}]
  %s4 = inlined_call_operand.hbm [shape: bf16[384,384], index: 4, kind: input, shape index: {}]
  %s5 = inlined_call_operand.hbm [shape: f32[1,384], index: 5, kind: input, shape index: {}]
  %s6 = inlined_call_operand.hbm [shape: f32[1,384], index: 6, kind: input, shape index: {}]
  %s7 = inlined_call_operand.hbm [shape: f32[1,384], index: 7, kind: input, shape index: {}]
  %s8 = inlined_call_operand.hbm [shape: bf16[384,1536], index: 8, kind: input, shape index: {}]
  %s9 = inlined_call_operand.hbm [shape: f32[1,1536], index: 9, kind: input, shape index: {}]
  %s10 = inlined_call_operand.hbm [shape: bf16[1536,384], index: 10, kind: input, shape index: {}]
  %s11 = inlined_call_operand.hbm [shape: f32[1,384], index: 11, kind: input, shape index: {}]
  %s12 = inlined_call_operand.vmem [shape: f32[2,5,384], index: 12, kind: output, shape index: {}]
  %s13 = sld [smem:[#allocation0]]
  $region117: #{tpu_custom_call.1} parent=0
    _
  %s15 = ssub.s32 1, %s13
  %s16 = scalar_select 0, %s15, %s13
  $region1: #{tpu_custom_call.1} parent=0
    #allocation5 [shape = 'u8[1536]{0}', space=vmem, size = 0x800, scoped, tag = 'input window, operand 1, single buffered']
    #allocation6 [shape = 's32[2]{0}', space=sflag, size = 0x8, scoped, tag = 'scoped memory for tpu_custom_call.1']
    #allocation7 [shape = 'u8[1536]{0}', space=vmem, size = 0x800, scoped, tag = 'input window, operand 2, single buffered']
    #allocation8 [shape = 's32[1]{0}', space=sflag, size = 0x4, scoped, tag = 'scoped memory for tpu_custom_call.1']
    #allocation9 [shape = 'u8[884736]{0}', space=vmem, size = 0xd8000, scoped, tag = 'input window, operand 3, single buffered']
    #allocation10 [shape = 'u8[294912]{0}', space=vmem, size = 0x48000, scoped, tag = 'input window, operand 4, single buffered']
    #allocation11 [shape = 's32[1]{0}', space=sflag, size = 0x4, scoped, tag = 'scoped memory for tpu_custom_call.1']
    #allocation12 [shape = 'u8[1536]{0}', space=vmem, size = 0x800, scoped, tag = 'input window, operand 5, single buffered']
    #allocation13 [shape = 'u8[1536]{0}', space=vmem, size = 0x800, scoped, tag = 'input window, operand 6, single buffered']
    #allocation14 [shape = 's32[1]{0}', space=sflag, size = 0x4, scoped, tag = 'scoped memory for tpu_custom_call.1']
    #allocation15 [shape = 'u8[1536]{0}', space=vmem, size = 0x800, scoped, tag = 'input window, operand 7, single buffered']
    #allocation16 [shape = 'u8[6144]{0}', space=vmem, size = 0x1800, scoped, tag = 'input window, operand 9, single buffered']
    #allocation17 [shape = 's32[1]{0}', space=sflag, size = 0x4, scoped, tag = 'scoped memory for tpu_custom_call.1']
    #allocation18 [shape = 'u8[1536]{0}', space=vmem, size = 0x800, scoped, tag = 'input window, operand 11, single buffered']
    %17 = vsyncpa [#allocation6], 0
    %18 = vsyncpa [#allocation8], 0
    %19 = vsyncpa [#allocation11], 0
    %20 = vsyncpa [#allocation14], 0
    %21 = vsyncpa [#allocation17], 0
    loop: start=0, step=1, limit=4
    $region2: #{tpu_custom_call.1} parent=1 // loop_pre_header
      _
    $region3: #{tpu_custom_call.1} parent=1 // loop_header
      %s23 = sphi 0, %s27
      %p24 = scmp.ge.s32.totalorder %s23, 4
      %s33 = sphi 0, %s35
      %s36 = sphi 0, %s33
      %s37 = sphi 0, %s36
      %s53 = sphi 0, %s37
      %s57 = sphi 0, %s57
      %s59 = sphi 0, %s57
      %s60 = sphi 0, %s59
      %s74 = sphi 0, %s60
      %s78 = sphi 0, %s78
      %s80 = sphi 0, %s78
      %s81 = sphi 0, %s80
      %s95 = sphi 0, %s81
      %s99 = sphi 0, %s99
      %s101 = sphi 0, %s99
      %s102 = sphi 0, %s101
      %s116 = sphi 0, %s102
      %s120 = sphi 0, %s120
      %s122 = sphi 0, %s120
      %s123 = sphi 0, %s122
      %s137 = sphi 0, %s123
      %s141 = sphi 0, %s141
      %s143 = sphi 0, %s141
      %s144 = sphi 0, %s143
      %s158 = sphi 0, %s144
      %s162 = sphi 0, %s162
      %s164 = sphi 0, %s162
      %s165 = sphi 0, %s164
      %s179 = sphi 0, %s165
      %s183 = sphi 0, %s183
      %s185 = sphi 0, %s183
      %s186 = sphi 0, %s185
      %s200 = sphi 0, %s186
      %s204 = sphi 0, %s204
      %s206 = sphi 0, %s204
      %s207 = sphi 0, %s206
      %s221 = sphi 0, %s207
      %s225 = sphi 0, %s225
      %s227 = sphi 0, %s225
      %s228 = sphi 0, %s227
      %s242 = sphi 0, %s228
      %s248 = sphi 0, %s250
      %s251 = sphi 0, %s248
      %s252 = sphi 0, %s251
      %s268 = sphi 0, %s252
    $region4: #{tpu_custom_call.1} parent=1 // loop_header_branch
      %26 = sbr.rel (%p24) target = $region8
    $region5: #{tpu_custom_call.1} parent=1 // loop_body
      %s28 = ssub.s32 %s23, 1
      %s29 = ssub.s32 %s23, 2
      %s30 = sadd.s32 %s23, 1
      %s31 = ssub.s32 %s23, %s30
      %p32 = scmp.eq.s32.totalorder %s31, 0
      %s34 = sadd.s32 %s33, 1
      %s35 = scalar_select %p32, %s33, %s34
      %p38 = pneg %p32
      %p39 = scmp.eq.s32.totalorder %s23, 1
      %p40 = por %p38, %p39
      %p41 = scmp.ne.s32.totalorder %s33, %s36
      %p42 = scmp.eq.s32.totalorder %s23, 0
      %p43 = por %p41, %p42
      %p44 = scmp.ne.s32.totalorder %s33, %s36
      %p45 = scmp.eq.s32.totalorder %s28, 1
      %p46 = por %p44, %p45
      %p47 = scmp.ne.s32.totalorder %s36, %s37
      %p48 = scmp.eq.s32.totalorder %s28, 0
      %p49 = por %p47, %p48
      %p50 = scmp.ne.s32.totalorder %s36, %s37
      %p51 = scmp.eq.s32.totalorder %s29, 1
      %p52 = por %p50, %p51
      %p54 = scmp.ne.s32.totalorder %s37, %s53
      %p55 = scmp.eq.s32.totalorder %s29, 0
      %p56 = por %p54, %p55
      %s58 = sadd.s32 %s57, 1
      %p61 = scmp.eq.s32.totalorder %s23, 1
      %p62 = scmp.ne.s32.totalorder %s57, %s59
      %p63 = scmp.eq.s32.totalorder %s23, 0
      %p64 = por %p62, %p63
      %p65 = scmp.ne.s32.totalorder %s57, %s59
      %p66 = scmp.eq.s32.totalorder %s28, 1
      %p67 = por %p65, %p66
      %p68 = scmp.ne.s32.totalorder %s59, %s60
      %p69 = scmp.eq.s32.totalorder %s28, 0
      %p70 = por %p68, %p69
      %p71 = scmp.ne.s32.totalorder %s59, %s60
      %p72 = scmp.eq.s32.totalorder %s29, 1
      %p73 = por %p71, %p72
      %p75 = scmp.ne.s32.totalorder %s60, %s74
      %p76 = scmp.eq.s32.totalorder %s29, 0
      %p77 = por %p75, %p76
      %s79 = sadd.s32 %s78, 1
      %p82 = scmp.eq.s32.totalorder %s23, 1
      %p83 = scmp.ne.s32.totalorder %s78, %s80
      %p84 = scmp.eq.s32.totalorder %s23, 0
      %p85 = por %p83, %p84
      %p86 = scmp.ne.s32.totalorder %s78, %s80
      %p87 = scmp.eq.s32.totalorder %s28, 1
      %p88 = por %p86, %p87
      %p89 = scmp.ne.s32.totalorder %s80, %s81
      %p90 = scmp.eq.s32.totalorder %s28, 0
      %p91 = por %p89, %p90
      %p92 = scmp.ne.s32.totalorder %s80, %s81
      %p93 = scmp.eq.s32.totalorder %s29, 1
      %p94 = por %p92, %p93
      %p96 = scmp.ne.s32.totalorder %s81, %s95
      %p97 = scmp.eq.s32.totalorder %s29, 0
      %p98 = por %p96, %p97
      %s100 = sadd.s32 %s99, 1
      %p103 = scmp.eq.s32.totalorder %s23, 1
      %p104 = scmp.ne.s32.totalorder %s99, %s101
      %p105 = scmp.eq.s32.totalorder %s23, 0
      %p106 = por %p104, %p105
      %p107 = scmp.ne.s32.totalorder %s99, %s101
      %p108 = scmp.eq.s32.totalorder %s28, 1
      %p109 = por %p107, %p108
      %p110 = scmp.ne.s32.totalorder %s101, %s102
      %p111 = scmp.eq.s32.totalorder %s28, 0
      %p112 = por %p110, %p111
      %p113 = scmp.ne.s32.totalorder %s101, %s102
      %p114 = scmp.eq.s32.totalorder %s29, 1
      %p115 = por %p113, %p114
      %p117 = scmp.ne.s32.totalorder %s102, %s116
      %p118 = scmp.eq.s32.totalorder %s29, 0
      %p119 = por %p117, %p118
      %s121 = sadd.s32 %s120, 1
      %p124 = scmp.eq.s32.totalorder %s23, 1
      %p125 = scmp.ne.s32.totalorder %s120, %s122
      %p126 = scmp.eq.s32.totalorder %s23, 0
      %p127 = por %p125, %p126
      %p128 = scmp.ne.s32.totalorder %s120, %s122
      %p129 = scmp.eq.s32.totalorder %s28, 1
      %p130 = por %p128, %p129
      %p131 = scmp.ne.s32.totalorder %s122, %s123
      %p132 = scmp.eq.s32.totalorder %s28, 0
      %p133 = por %p131, %p132
      %p134 = scmp.ne.s32.totalorder %s122, %s123
      %p135 = scmp.eq.s32.totalorder %s29, 1
      %p136 = por %p134, %p135
      %p138 = scmp.ne.s32.totalorder %s123, %s137
      %p139 = scmp.eq.s32.totalorder %s29, 0
      %p140 = por %p138, %p139
      %s142 = sadd.s32 %s141, 1
      %p145 = scmp.eq.s32.totalorder %s23, 1
      %p146 = scmp.ne.s32.totalorder %s141, %s143
      %p147 = scmp.eq.s32.totalorder %s23, 0
      %p148 = por %p146, %p147
      %p149 = scmp.ne.s32.totalorder %s141, %s143
      %p150 = scmp.eq.s32.totalorder %s28, 1
      %p151 = por %p149, %p150
      %p152 = scmp.ne.s32.totalorder %s143, %s144
      %p153 = scmp.eq.s32.totalorder %s28, 0
      %p154 = por %p152, %p153
      %p155 = scmp.ne.s32.totalorder %s143, %s144
      %p156 = scmp.eq.s32.totalorder %s29, 1
      %p157 = por %p155, %p156
      %p159 = scmp.ne.s32.totalorder %s144, %s158
      %p160 = scmp.eq.s32.totalorder %s29, 0
      %p161 = por %p159, %p160
      %s163 = sadd.s32 %s162, 1
      %p166 = scmp.eq.s32.totalorder %s23, 1
      %p167 = scmp.ne.s32.totalorder %s162, %s164
      %p168 = scmp.eq.s32.totalorder %s23, 0
      %p169 = por %p167, %p168
      %p170 = scmp.ne.s32.totalorder %s162, %s164
      %p171 = scmp.eq.s32.totalorder %s28, 1
      %p172 = por %p170, %p171
      %p173 = scmp.ne.s32.totalorder %s164, %s165
      %p174 = scmp.eq.s32.totalorder %s28, 0
      %p175 = por %p173, %p174
      %p176 = scmp.ne.s32.totalorder %s164, %s165
      %p177 = scmp.eq.s32.totalorder %s29, 1
      %p178 = por %p176, %p177
      %p180 = scmp.ne.s32.totalorder %s165, %s179
      %p181 = scmp.eq.s32.totalorder %s29, 0
      %p182 = por %p180, %p181
      %s184 = sadd.s32 %s183, 1
      %p187 = scmp.eq.s32.totalorder %s23, 1
      %p188 = scmp.ne.s32.totalorder %s183, %s185
      %p189 = scmp.eq.s32.totalorder %s23, 0
      %p190 = por %p188, %p189
      %p191 = scmp.ne.s32.totalorder %s183, %s185
      %p192 = scmp.eq.s32.totalorder %s28, 1
      %p193 = por %p191, %p192
      %p194 = scmp.ne.s32.totalorder %s185, %s186
      %p195 = scmp.eq.s32.totalorder %s28, 0
      %p196 = por %p194, %p195
      %p197 = scmp.ne.s32.totalorder %s185, %s186
      %p198 = scmp.eq.s32.totalorder %s29, 1
      %p199 = por %p197, %p198
      %p201 = scmp.ne.s32.totalorder %s186, %s200
      %p202 = scmp.eq.s32.totalorder %s29, 0
      %p203 = por %p201, %p202
      %s205 = sadd.s32 %s204, 1
      %p208 = scmp.eq.s32.totalorder %s23, 1
      %p209 = scmp.ne.s32.totalorder %s204, %s206
      %p210 = scmp.eq.s32.totalorder %s23, 0
      %p211 = por %p209, %p210
      %p212 = scmp.ne.s32.totalorder %s204, %s206
      %p213 = scmp.eq.s32.totalorder %s28, 1
      %p214 = por %p212, %p213
      %p215 = scmp.ne.s32.totalorder %s206, %s207
      %p216 = scmp.eq.s32.totalorder %s28, 0
      %p217 = por %p215, %p216
      %p218 = scmp.ne.s32.totalorder %s206, %s207
      %p219 = scmp.eq.s32.totalorder %s29, 1
      %p220 = por %p218, %p219
      %p222 = scmp.ne.s32.totalorder %s207, %s221
      %p223 = scmp.eq.s32.totalorder %s29, 0
      %p224 = por %p222, %p223
      %s226 = sadd.s32 %s225, 1
      %p229 = scmp.eq.s32.totalorder %s23, 1
      %p230 = scmp.ne.s32.totalorder %s225, %s227
      %p231 = scmp.eq.s32.totalorder %s23, 0
      %p232 = por %p230, %p231
      %p233 = scmp.ne.s32.totalorder %s225, %s227
      %p234 = scmp.eq.s32.totalorder %s28, 1
      %p235 = por %p233, %p234
      %p236 = scmp.ne.s32.totalorder %s227, %s228
      %p237 = scmp.eq.s32.totalorder %s28, 0
      %p238 = por %p236, %p237
      %p239 = scmp.ne.s32.totalorder %s227, %s228
      %p240 = scmp.eq.s32.totalorder %s29, 1
      %p241 = por %p239, %p240
      %p243 = scmp.ne.s32.totalorder %s228, %s242
      %p244 = scmp.eq.s32.totalorder %s29, 0
      %p245 = por %p243, %p244
      %s246 = ssub.s32 %s23, %s30
      %p247 = scmp.eq.s32.totalorder %s246, 0
      %s249 = sadd.s32 %s248, 1
      %s250 = scalar_select %p247, %s248, %s249
      %p253 = pneg %p247
      %p254 = scmp.eq.s32.totalorder %s23, 1
      %p255 = por %p253, %p254
      %p256 = scmp.ne.s32.totalorder %s248, %s251
      %p257 = scmp.eq.s32.totalorder %s23, 0
      %p258 = por %p256, %p257
      %p259 = scmp.ne.s32.totalorder %s248, %s251
      %p260 = scmp.eq.s32.totalorder %s28, 1
      %p261 = por %p259, %p260
      %p262 = scmp.ne.s32.totalorder %s251, %s252
      %p263 = scmp.eq.s32.totalorder %s28, 0
      %p264 = por %p262, %p263
      %p265 = scmp.ne.s32.totalorder %s251, %s252
      %p266 = scmp.eq.s32.totalorder %s29, 1
      %p267 = por %p265, %p266
      %p269 = scmp.ne.s32.totalorder %s252, %s268
      %p270 = scmp.eq.s32.totalorder %s29, 0
      %p271 = por %p269, %p270
      %p272 = scmp.le.s32.totalorder 1, %s23
      %p273 = scmp.lt.s32.totalorder %s23, 3
      %p274 = pnand %p272, %p273
      %p275 = pneg %p274
      // Predicated region
      $region9: #{tpu_custom_call.1} parent=5 // pred_check
        _
      $region10: #{tpu_custom_call.1} parent=5 // pred_check_branch
        %277 = sbr.rel (%p274) target = $region12
      $region11: #{tpu_custom_call.1} parent=5 // pred_region
        %s278 = ssub.s32 %s23, 1
        // Predicated region
        $region13: #{tpu_custom_call.1} parent=11 // pred_check
          %p279 = pneg %p70
        $region14: #{tpu_custom_call.1} parent=11 // pred_check_branch
          %281 = sbr.rel (%p279) target = $region16
        $region15: #{tpu_custom_call.1} parent=11 // pred_region
          %s283 = ssub.s32 48, 48
          %284 = vsyncadd [#allocation6], %s283
          %s286 = sshll.u32 [#allocation5], 4
          %s287 = int_to_ptr.vmem [resolvable:$true] %s286
          %289 = dma.hbm_to_vmem [thread:$0]  %s1, 48, %s287, [#allocation6]
        $region16: #{tpu_custom_call.1} parent=11 // pred_fallthru
          _
        // Predicated region
        $region17: #{tpu_custom_call.1} parent=11 // pred_check
          %p290 = pneg %p91
        $region18: #{tpu_custom_call.1} parent=11 // pred_check_branch
          %292 = sbr.rel (%p290) target = $region20
        $region19: #{tpu_custom_call.1} parent=11 // pred_region
          %s294 = ssub.s32 48, 48
          %295 = vsyncadd [#allocation8], %s294
          %s297 = sshll.u32 [#allocation7], 4
          %s298 = int_to_ptr.vmem [resolvable:$true] %s297
          %300 = dma.hbm_to_vmem [thread:$0]  %s2, 48, %s298, [#allocation8]
        $region20: #{tpu_custom_call.1} parent=11 // pred_fallthru
          _
        // Predicated region
        $region21: #{tpu_custom_call.1} parent=11 // pred_check
          %p301 = pneg %p112
        $region22: #{tpu_custom_call.1} parent=11 // pred_check_branch
          %303 = sbr.rel (%p301) target = $region24
        $region23: #{tpu_custom_call.1} parent=11 // pred_region
          %s305 = ssub.s32 27648, 27648
          %306 = vsyncadd [#allocation8], %s305
          %s307 = sshll.u32 [#allocation9], 4
          %s308 = int_to_ptr.vmem [resolvable:$true] %s307
          %313 = dma.hbm_to_vmem [thread:$0]  %s3, 27648, %s308, [#allocation8], 576, 576, 36
        $region24: #{tpu_custom_call.1} parent=11 // pred_fallthru
          _
        // Predicated region
        $region25: #{tpu_custom_call.1} parent=11 // pred_check
          %p314 = pneg %p133
        $region26: #{tpu_custom_call.1} parent=11 // pred_check_branch
          %316 = sbr.rel (%p314) target = $region28
        $region27: #{tpu_custom_call.1} parent=11 // pred_region
          %s318 = ssub.s32 9216, 9216
          %319 = vsyncadd [#allocation11], %s318
          %s320 = sshll.u32 [#allocation10], 4
          %s321 = int_to_ptr.vmem [resolvable:$true] %s320
          %326 = dma.hbm_to_vmem [thread:$0]  %s4, 9216, %s321, [#allocation11], 192, 192, 12
        $region28: #{tpu_custom_call.1} parent=11 // pred_fallthru
          _
        // Predicated region
        $region29: #{tpu_custom_call.1} parent=11 // pred_check
          %p327 = pneg %p154
        $region30: #{tpu_custom_call.1} parent=11 // pred_check_branch
          %329 = sbr.rel (%p327) target = $region32
        $region31: #{tpu_custom_call.1} parent=11 // pred_region
          %s331 = ssub.s32 48, 48
          %332 = vsyncadd [#allocation11], %s331
          %s334 = sshll.u32 [#allocation12], 4
          %s335 = int_to_ptr.vmem [resolvable:$true] %s334
          %337 = dma.hbm_to_vmem [thread:$0]  %s5, 48, %s335, [#allocation11]
        $region32: #{tpu_custom_call.1} parent=11 // pred_fallthru
          _
        // Predicated region
        $region33: #{tpu_custom_call.1} parent=11 // pred_check
          %p338 = pneg %p175
        $region34: #{tpu_custom_call.1} parent=11 // pred_check_branch
          %340 = sbr.rel (%p338) target = $region36
        $region35: #{tpu_custom_call.1} parent=11 // pred_region
          %s342 = ssub.s32 48, 48
          %343 = vsyncadd [#allocation14], %s342
          %s345 = sshll.u32 [#allocation13], 4
          %s346 = int_to_ptr.vmem [resolvable:$true] %s345
          %348 = dma.hbm_to_vmem [thread:$0]  %s6, 48, %s346, [#allocation14]
        $region36: #{tpu_custom_call.1} parent=11 // pred_fallthru
          _
        // Predicated region
        $region37: #{tpu_custom_call.1} parent=11 // pred_check
          %p349 = pneg %p196
        $region38: #{tpu_custom_call.1} parent=11 // pred_check_branch
          %351 = sbr.rel (%p349) target = $region40
        $region39: #{tpu_custom_call.1} parent=11 // pred_region
          %s353 = ssub.s32 48, 48
          %354 = vsyncadd [#allocation14], %s353
          %s356 = sshll.u32 [#allocation15], 4
          %s357 = int_to_ptr.vmem [resolvable:$true] %s356
          %359 = dma.hbm_to_vmem [thread:$0]  %s7, 48, %s357, [#allocation14]
        $region40: #{tpu_custom_call.1} parent=11 // pred_fallthru
          _
        // Predicated region
        $region41: #{tpu_custom_call.1} parent=11 // pred_check
          %p360 = pneg %p217
        $region42: #{tpu_custom_call.1} parent=11 // pred_check_branch
          %362 = sbr.rel (%p360) target = $region44
        $region43: #{tpu_custom_call.1} parent=11 // pred_region
          %s364 = ssub.s32 192, 192
          %365 = vsyncadd [#allocation17], %s364
          %s367 = sshll.u32 [#allocation16], 4
          %s368 = int_to_ptr.vmem [resolvable:$true] %s367
          %370 = dma.hbm_to_vmem [thread:$0]  %s9, 192, %s368, [#allocation17]
        $region44: #{tpu_custom_call.1} parent=11 // pred_fallthru
          _
        // Predicated region
        $region45: #{tpu_custom_call.1} parent=11 // pred_check
          %p371 = pneg %p238
        $region46: #{tpu_custom_call.1} parent=11 // pred_check_branch
          %373 = sbr.rel (%p371) target = $region48
        $region47: #{tpu_custom_call.1} parent=11 // pred_region
          %s375 = ssub.s32 48, 48
          %376 = vsyncadd [#allocation17], %s375
          %s378 = sshll.u32 [#allocation18], 4
          %s379 = int_to_ptr.vmem [resolvable:$true] %s378
          %381 = dma.hbm_to_vmem [thread:$0]  %s11, 48, %s379, [#allocation17]
        $region48: #{tpu_custom_call.1} parent=11 // pred_fallthru
          _
      $region12: #{tpu_custom_call.1} parent=5 // pred_fallthru
        _
      %p382 = scmp.lt.s32.totalorder %s23, 2
      // Predicated region
      $region49: #{tpu_custom_call.1} parent=5 // pred_check
        %p383 = pneg %p382
      $region50: #{tpu_custom_call.1} parent=5 // pred_check_branch
        %385 = sbr.rel (%p383) target = $region52
      $region51: #{tpu_custom_call.1} parent=5 // pred_region
        // Predicated region
        $region53: #{tpu_custom_call.1} parent=51 // pred_check
          %p386 = pneg %p43
        $region54: #{tpu_custom_call.1} parent=51 // pred_check_branch
          %388 = sbr.rel (%p386) target = $region56
        $region55: #{tpu_custom_call.1} parent=51 // pred_region
          %p389 = scmp.lt.s32.totalorder %s23, 1
          %s390 = scalar_select %p389, %s23, 1
          %s391 = smul.addr %s390, 3
          %s392 = smul.addr %s391, 8
          %s393 = scalar_lea.vmem %s0, %s392
        $region56: #{tpu_custom_call.1} parent=51 // pred_fallthru
          _
      $region52: #{tpu_custom_call.1} parent=5 // pred_fallthru
        _
      %p394 = scmp.le.s32.totalorder 1, %s23
      %p395 = scmp.lt.s32.totalorder %s23, 3
      %p396 = pnand %p394, %p395
      %p397 = pneg %p396
      // Predicated region
      $region57: #{tpu_custom_call.1} parent=5 // pred_check
        _
      $region58: #{tpu_custom_call.1} parent=5 // pred_check_branch
        %399 = sbr.rel (%p396) target = $region60
      $region59: #{tpu_custom_call.1} parent=5 // pred_region
        %s400 = ssub.s32 %s23, 1
        // Predicated region
        $region61: #{tpu_custom_call.1} parent=59 // pred_check
          %p401 = pneg %p70
        $region62: #{tpu_custom_call.1} parent=59 // pred_check_branch
          %403 = sbr.rel (%p401) target = $region64
        $region63: #{tpu_custom_call.1} parent=59 // pred_region
          %404 = dma.done [#allocation6], 48
        $region64: #{tpu_custom_call.1} parent=59 // pred_fallthru
          _
        // Predicated region
        $region65: #{tpu_custom_call.1} parent=59 // pred_check
          %p405 = pneg %p91
        $region66: #{tpu_custom_call.1} parent=59 // pred_check_branch
          %407 = sbr.rel (%p405) target = $region68
        $region67: #{tpu_custom_call.1} parent=59 // pred_region
          %408 = dma.done [#allocation8], 48
        $region68: #{tpu_custom_call.1} parent=59 // pred_fallthru
          _
        // Predicated region
        $region69: #{tpu_custom_call.1} parent=59 // pred_check
          %p409 = pneg %p112
        $region70: #{tpu_custom_call.1} parent=59 // pred_check_branch
          %411 = sbr.rel (%p409) target = $region72
        $region71: #{tpu_custom_call.1} parent=59 // pred_region
          %412 = dma.done [#allocation8], 27648
        $region72: #{tpu_custom_call.1} parent=59 // pred_fallthru
          _
        // Predicated region
        $region73: #{tpu_custom_call.1} parent=59 // pred_check
          %p413 = pneg %p133
        $region74: #{tpu_custom_call.1} parent=59 // pred_check_branch
          %415 = sbr.rel (%p413) target = $region76
        $region75: #{tpu_custom_call.1} parent=59 // pred_region
          %416 = dma.done [#allocation11], 9216
        $region76: #{tpu_custom_call.1} parent=59 // pred_fallthru
          _
        // Predicated region
        $region77: #{tpu_custom_call.1} parent=59 // pred_check
          %p417 = pneg %p154
        $region78: #{tpu_custom_call.1} parent=59 // pred_check_branch
          %419 = sbr.rel (%p417) target = $region80
        $region79: #{tpu_custom_call.1} parent=59 // pred_region
          %420 = dma.done [#allocation11], 48
        $region80: #{tpu_custom_call.1} parent=59 // pred_fallthru
          _
        // Predicated region
        $region81: #{tpu_custom_call.1} parent=59 // pred_check
          %p421 = pneg %p175
        $region82: #{tpu_custom_call.1} parent=59 // pred_check_branch
          %423 = sbr.rel (%p421) target = $region84
        $region83: #{tpu_custom_call.1} parent=59 // pred_region
          %424 = dma.done [#allocation14], 48
        $region84: #{tpu_custom_call.1} parent=59 // pred_fallthru
          _
        // Predicated region
        $region85: #{tpu_custom_call.1} parent=59 // pred_check
          %p425 = pneg %p196
        $region86: #{tpu_custom_call.1} parent=59 // pred_check_branch
          %427 = sbr.rel (%p425) target = $region88
        $region87: #{tpu_custom_call.1} parent=59 // pred_region
          %428 = dma.done [#allocation14], 48
        $region88: #{tpu_custom_call.1} parent=59 // pred_fallthru
          _
        // Predicated region
        $region89: #{tpu_custom_call.1} parent=59 // pred_check
          %p429 = pneg %p217
        $region90: #{tpu_custom_call.1} parent=59 // pred_check_branch
          %431 = sbr.rel (%p429) target = $region92
        $region91: #{tpu_custom_call.1} parent=59 // pred_region
          %432 = dma.done [#allocation17], 192
        $region92: #{tpu_custom_call.1} parent=59 // pred_fallthru
          _
        // Predicated region
        $region93: #{tpu_custom_call.1} parent=59 // pred_check
          %p433 = pneg %p238
        $region94: #{tpu_custom_call.1} parent=59 // pred_check_branch
          %435 = sbr.rel (%p433) target = $region96
        $region95: #{tpu_custom_call.1} parent=59 // pred_region
          %436 = dma.done [#allocation17], 48
        $region96: #{tpu_custom_call.1} parent=59 // pred_fallthru
          _
        %p437 = scmp.lt.s32.totalorder %s28, 1
        %s438 = scalar_select %p437, %s28, 1
        %s439 = smul.addr %s438, 3
        %s440 = smul.addr %s439, 8
        %s441 = scalar_lea.vmem %s0, %s440
        %p442 = pneg %p49
        %p443 = pneg %p46
        %p444 = pneg %p70
        %p445 = pneg %p67
        %p446 = pneg %p91
        %p447 = pneg %p88
        %p448 = pneg %p112
        %p449 = pneg %p109
        %p450 = pneg %p133
        %p451 = pneg %p130
        %p452 = pneg %p154
        %p453 = pneg %p151
        %p454 = pneg %p175
        %p455 = pneg %p172
        %p456 = pneg %p196
        %p457 = pneg %p193
        %p458 = pneg %p217
        %p459 = pneg %p214
        %p460 = pneg %p238
        %p461 = pneg %p235
        %p462 = pneg %p264
        %p463 = pneg %p261
        %p464 = scmp.lt.s32.totalorder %s28, 1
        %s465 = scalar_select %p464, %s28, 1
        %s466 = smul.addr %s465, 3
        %s467 = smul.addr %s466, 8
        %s468 = scalar_lea.vmem %s12, %s467
        %p469 = scmp.lt.s32.totalorder %s28, 1
        %s470 = scalar_select %p469, %s28, 1
        %s471 = smul.addr %s470, 3
        %s472 = smul.addr %s471, 8
        %s473 = scalar_lea.vmem %s0, %s472
        %p474 = scmp.lt.s32.totalorder %s28, 1
        %s475 = scalar_select %p474, %s28, 1
        %s476 = smul.addr %s475, 3
        %s477 = smul.addr %s476, 8
        %s478 = scalar_lea.vmem %s12, %s477
        %p480 = scmp.eq.s32.totalorder %s28, 0
        // Predicated region
        $region97: #{tpu_custom_call.1} parent=59 // pred_check
          %p481 = pneg %p480
        $region98: #{tpu_custom_call.1} parent=59 // pred_check_branch
          %483 = sbr.rel (%p481) target = $region100
        $region99: #{tpu_custom_call.1} parent=59 // pred_region
          #allocation20 [shape = 'u32[9]{0}', space=smem, size = 0x24, scoped, tag = 'DMA stride descriptor']
          #allocation22 [shape = 'u32[9]{0}', space=smem, size = 0x24, scoped, tag = 'DMA stride descriptor']
          %s485 = sshll.u32 1, 14
          %s486 = sxor.u32 4294967295, %s485
          %s488 = sld [smem:[#allocation0]]
          %s489 = sadd.s32 2, %s488
          %s491 = sshll.u32 7, 26
          %s492 = sxor.u32 4294967295, %s491
          %s493 = sand.u32 0, %s492
          %s494 = sshll.u32 %s489, 26
          %s495 = sor.u32 %s493, %s494
          %s496 = sshll.u32 [#allocation2], 4
          %s497 = int_to_ptr.vmem [resolvable:$true] %s496
          %500 = sst [smem:[#allocation20]] 1536
          %s501 = scalar_lea.smem [#allocation20], 1
          %502 = sst [smem:[%s501]] 1536
          %s503 = scalar_lea.smem [#allocation20], 2
          %504 = sst [smem:[%s503]] 12
          %s505 = scalar_lea.smem [#allocation20], 3
          %506 = sst [smem:[%s505]] 64
          %s507 = scalar_lea.smem [#allocation20], 4
          %508 = sst [smem:[%s507]] 128
          %s509 = scalar_lea.smem [#allocation20], 5
          %510 = sst [smem:[%s509]] 2
          %s511 = scalar_lea.smem [#allocation20], 6
          %512 = sst [smem:[%s511]] 768
          %s513 = scalar_lea.smem [#allocation20], 7
          %514 = sst [smem:[%s513]] 64
          %s515 = scalar_lea.smem [#allocation20], 8
          %516 = sst [smem:[%s515]] 4
          %518 = dma.general %s8, 36864, %s497, [#allocation4], [#allocation19], [#allocation20], %s495, 0
          %s519 = scalar_lea.sflag [#allocation4], 1
          %s521 = sshll.u32 1, 14
          %s522 = sxor.u32 4294967295, %s521
          %s524 = sadd.s32 2, %s488
          %s526 = sshll.u32 7, 26
          %s527 = sxor.u32 4294967295, %s526
          %s528 = sand.u32 0, %s527
          %s529 = sshll.u32 %s524, 26
          %s530 = sor.u32 %s528, %s529
          %s531 = sshll.u32 [#allocation3], 4
          %s532 = int_to_ptr.vmem [resolvable:$true] %s531
          %535 = sst [smem:[#allocation22]] 384
          %s536 = scalar_lea.smem [#allocation22], 1
          %537 = sst [smem:[%s536]] 384
          %s538 = scalar_lea.smem [#allocation22], 2
          %539 = sst [smem:[%s538]] 3
          %s540 = scalar_lea.smem [#allocation22], 3
          %541 = sst [smem:[%s540]] 64
          %s542 = scalar_lea.smem [#allocation22], 4
          %543 = sst [smem:[%s542]] 128
          %s544 = scalar_lea.smem [#allocation22], 5
          %545 = sst [smem:[%s544]] 2
          %s546 = scalar_lea.smem [#allocation22], 6
          %547 = sst [smem:[%s546]] 192
          %s548 = scalar_lea.smem [#allocation22], 7
          %549 = sst [smem:[%s548]] 64
          %s550 = scalar_lea.smem [#allocation22], 8
          %551 = sst [smem:[%s550]] 4
          %553 = dma.general %s10, 36864, %s532, %s519, [#allocation21], [#allocation22], %s530, 0
        $region100: #{tpu_custom_call.1} parent=59 // pred_fallthru
          _
        %v554 = vld [vmem:[%s473] sm:$0x1f]
        %v555 = vld [vmem:[%s473 + $0x8] sm:$0x1f]
        %v556 = vld [vmem:[%s473 + $0x10] sm:$0x1f]
        %v557 = vld [vmem:[#allocation5] sm:$0x7]
        %v558 = vld [vmem:[#allocation7] sm:$0x7]
        %vm559 = vcmask 1044480
        %v560 = vsel %vm559, %v554, 0.0
        %v561 = vsel %vm559, %v555, 0.0
        %v562 = vadd.f32 %v560, %v561
        %v563 = vsel %vm559, %v556, 0.0
        %v564 = vadd.f32 %v562, %v563
        %565 = vadd.xlane.f32.xlu0 %v564
        %v566 = vpop.xlane.xlu0 %565
        %v567 = vrcp.pop 384.0
        %v568 = vmul.f32 %v566, %v567
        %v569 = vsub.f32 %v554, %v568
        %v570 = vsub.f32 %v555, %v568
        %v571 = vsub.f32 %v556, %v568
        %v572 = vmul.f32 %v569, %v569
        %v573 = vmul.f32 %v570, %v570
        %v574 = vmul.f32 %v571, %v571
        %v575 = vsel %vm559, %v572, 0.0
        %v576 = vsel %vm559, %v573, 0.0
        %v577 = vadd.f32 %v575, %v576
        %v578 = vsel %vm559, %v574, 0.0
        %v579 = vadd.f32 %v577, %v578
        %580 = vadd.xlane.f32.xlu0 %v579
        %v581 = vpop.xlane.xlu0 %580
        %v582 = vmul.f32 %v581, %v567
        %v583 = vadd.f32 %v582, 1e-05
        %v584 = vrsqrt.pop %v583
        %v585 = vmul.f32 %v569, %v584
        %v586 = vmul.f32 %v570, %v584
        %v587 = vmul.f32 %v571, %v584
        %v589 = vlaneseq
        %v590 = vshrl.u32 %v589, 7
        %v591 = vsub.s32 0, %v590
        %v592 = vrot.slane %v557, %v591
        %v593 = vlaneseq
        %v594 = vshrl.u32 %v593, 7
        %v595 = vsub.s32 1, %v594
        %v596 = vrot.slane %v557, %v595
        %v597 = vlaneseq
        %v598 = vshrl.u32 %v597, 7
        %v599 = vsub.s32 2, %v598
        %v600 = vrot.slane %v557, %v599
        %v604 = vmul.f32 %v585, %v592
        %v605 = vmul.f32 %v586, %v596
        %v606 = vmul.f32 %v587, %v600
        %v608 = vlaneseq
        %v609 = vshrl.u32 %v608, 7
        %v610 = vsub.s32 0, %v609
        %v611 = vrot.slane %v558, %v610
        %v612 = vlaneseq
        %v613 = vshrl.u32 %v612, 7
        %v614 = vsub.s32 1, %v613
        %v615 = vrot.slane %v558, %v614
        %v616 = vlaneseq
        %v617 = vshrl.u32 %v616, 7
        %v618 = vsub.s32 2, %v617
        %v619 = vrot.slane %v558, %v618
        %v623 = vadd.f32 %v604, %v611
        %v624 = vadd.f32 %v605, %v615
        %v625 = vadd.f32 %v606, %v619
        %v626 = vpack.c.bf16 %v623, %v623
        %v627 = vpack.c.bf16 %v624, %v624
        %v628 = vpack.c.bf16 %v625, %v625
        %v629 = vld [vmem:[#allocation9] sm:$0xff]
        %v630 = vld [vmem:[#allocation9 + $0x8] sm:$0xff]
        %v631 = vld [vmem:[#allocation9 + $0x10] sm:$0xff]
        %v632 = vld [vmem:[#allocation9 + $0x18] sm:$0xff]
        %v633 = vld [vmem:[#allocation9 + $0x20] sm:$0xf]
        %v634 = vld [vmem:[#allocation9 + $0x24] sm:$0xff]
        %v635 = vld [vmem:[#allocation9 + $0x2c] sm:$0xff]
        %v636 = vld [vmem:[#allocation9 + $0x34] sm:$0xff]
        %v637 = vld [vmem:[#allocation9 + $0x3c] sm:$0xff]
        %v638 = vld [vmem:[#allocation9 + $0x44] sm:$0xf]
        %v639 = vld [vmem:[#allocation9 + $0x48] sm:$0xff]
        %v640 = vld [vmem:[#allocation9 + $0x50] sm:$0xff]
        %v641 = vld [vmem:[#allocation9 + $0x58] sm:$0xff]
        %v642 = vld [vmem:[#allocation9 + $0x60] sm:$0xff]
        %v643 = vld [vmem:[#allocation9 + $0x68] sm:$0xf]
        %v644 = vld [vmem:[#allocation9 + $0x6c] sm:$0xff]
        %v645 = vld [vmem:[#allocation9 + $0x74] sm:$0xff]
        %v646 = vld [vmem:[#allocation9 + $0x7c] sm:$0xff]
        %v647 = vld [vmem:[#allocation9 + $0x84] sm:$0xff]
        %v648 = vld [vmem:[#allocation9 + $0x8c] sm:$0xf]
        %v649 = vld [vmem:[#allocation9 + $0x90] sm:$0xff]
        %v650 = vld [vmem:[#allocation9 + $0x98] sm:$0xff]
        %v651 = vld [vmem:[#allocation9 + $0xa0] sm:$0xff]
        %v652 = vld [vmem:[#allocation9 + $0xa8] sm:$0xff]
        %v653 = vld [vmem:[#allocation9 + $0xb0] sm:$0xf]
        %v654 = vld [vmem:[#allocation9 + $0xb4] sm:$0xff]
        %v655 = vld [vmem:[#allocation9 + $0xbc] sm:$0xff]
        %v656 = vld [vmem:[#allocation9 + $0xc4] sm:$0xff]
        %v657 = vld [vmem:[#allocation9 + $0xcc] sm:$0xff]
        %v658 = vld [vmem:[#allocation9 + $0xd4] sm:$0xf]
        %v659 = vld [vmem:[#allocation9 + $0xd8] sm:$0xff]
        %v660 = vld [vmem:[#allocation9 + $0xe0] sm:$0xff]
        %v661 = vld [vmem:[#allocation9 + $0xe8] sm:$0xff]
        %v662 = vld [vmem:[#allocation9 + $0xf0] sm:$0xff]
        %v663 = vld [vmem:[#allocation9 + $0xf8] sm:$0xf]
        %v664 = vld [vmem:[#allocation9 + $0xfc] sm:$0xff]
        %v665 = vld [vmem:[#allocation9 + $0x104] sm:$0xff]
        %v666 = vld [vmem:[#allocation9 + $0x10c] sm:$0xff]
        %v667 = vld [vmem:[#allocation9 + $0x114] sm:$0xff]
        %v668 = vld [vmem:[#allocation9 + $0x11c] sm:$0xf]
        %v669 = vld [vmem:[#allocation9 + $0x120] sm:$0xff]
        %v670 = vld [vmem:[#allocation9 + $0x128] sm:$0xff]
        %v671 = vld [vmem:[#allocation9 + $0x130] sm:$0xff]
        %v672 = vld [vmem:[#allocation9 + $0x138] sm:$0xff]
        %v673 = vld [vmem:[#allocation9 + $0x140] sm:$0xf]
        %v674 = vld [vmem:[#allocation9 + $0x144] sm:$0xff]
        %v675 = vld [vmem:[#allocation9 + $0x14c] sm:$0xff]
        %v676 = vld [vmem:[#allocation9 + $0x154] sm:$0xff]
        %v677 = vld [vmem:[#allocation9 + $0x15c] sm:$0xff]
        %v678 = vld [vmem:[#allocation9 + $0x164] sm:$0xf]
        %v679 = vld [vmem:[#allocation9 + $0x168] sm:$0xff]
        %v680 = vld [vmem:[#allocation9 + $0x170] sm:$0xff]
        %v681 = vld [vmem:[#allocation9 + $0x178] sm:$0xff]
        %v682 = vld [vmem:[#allocation9 + $0x180] sm:$0xff]
        %v683 = vld [vmem:[#allocation9 + $0x188] sm:$0xf]
        %v684 = vld [vmem:[#allocation9 + $0x18c] sm:$0xff]
        %v685 = vld [vmem:[#allocation9 + $0x194] sm:$0xff]
        %v686 = vld [vmem:[#allocation9 + $0x19c] sm:$0xff]
        %v687 = vld [vmem:[#allocation9 + $0x1a4] sm:$0xff]
        %v688 = vld [vmem:[#allocation9 + $0x1ac] sm:$0xf]
        %v689 = vld [vmem:[#allocation9 + $0x1b0] sm:$0xff]
        %v690 = vld [vmem:[#allocation9 + $0x1b8] sm:$0xff]
        %v691 = vld [vmem:[#allocation9 + $0x1c0] sm:$0xff]
        %v692 = vld [vmem:[#allocation9 + $0x1c8] sm:$0xff]
        %v693 = vld [vmem:[#allocation9 + $0x1d0] sm:$0xf]
        %v694 = vld [vmem:[#allocation9 + $0x1d4] sm:$0xff]
        %v695 = vld [vmem:[#allocation9 + $0x1dc] sm:$0xff]
        %v696 = vld [vmem:[#allocation9 + $0x1e4] sm:$0xff]
        %v697 = vld [vmem:[#allocation9 + $0x1ec] sm:$0xff]
        %v698 = vld [vmem:[#allocation9 + $0x1f4] sm:$0xf]
        %v699 = vld [vmem:[#allocation9 + $0x1f8] sm:$0xff]
        %v700 = vld [vmem:[#allocation9 + $0x200] sm:$0xff]
        %v701 = vld [vmem:[#allocation9 + $0x208] sm:$0xff]
        %v702 = vld [vmem:[#allocation9 + $0x210] sm:$0xff]
        %v703 = vld [vmem:[#allocation9 + $0x218] sm:$0xf]
        %v704 = vld [vmem:[#allocation9 + $0x21c] sm:$0xff]
        %v705 = vld [vmem:[#allocation9 + $0x224] sm:$0xff]
        %v706 = vld [vmem:[#allocation9 + $0x22c] sm:$0xff]
        %v707 = vld [vmem:[#allocation9 + $0x234] sm:$0xff]
        %v708 = vld [vmem:[#allocation9 + $0x23c] sm:$0xf]
        %v709 = vld [vmem:[#allocation9 + $0x240] sm:$0xff]
        %v710 = vld [vmem:[#allocation9 + $0x248] sm:$0xff]
        %v711 = vld [vmem:[#allocation9 + $0x250] sm:$0xff]
        %v712 = vld [vmem:[#allocation9 + $0x258] sm:$0xff]
        %v713 = vld [vmem:[#allocation9 + $0x260] sm:$0xf]
        %v714 = vld [vmem:[#allocation9 + $0x264] sm:$0xff]
        %v715 = vld [vmem:[#allocation9 + $0x26c] sm:$0xff]
        %v716 = vld [vmem:[#allocation9 + $0x274] sm:$0xff]
        %v717 = vld [vmem:[#allocation9 + $0x27c] sm:$0xff]
        %v718 = vld [vmem:[#allocation9 + $0x284] sm:$0xf]
        %v719 = vld [vmem:[#allocation9 + $0x288] sm:$0xff]
        %v720 = vld [vmem:[#allocation9 + $0x290] sm:$0xff]
        %v721 = vld [vmem:[#allocation9 + $0x298] sm:$0xff]
        %v722 = vld [vmem:[#allocation9 + $0x2a0] sm:$0xff]
        %v723 = vld [vmem:[#allocation9 + $0x2a8] sm:$0xf]
        %v724 = vld [vmem:[#allocation9 + $0x2ac] sm:$0xff]
        %v725 = vld [vmem:[#allocation9 + $0x2b4] sm:$0xff]
        %v726 = vld [vmem:[#allocation9 + $0x2bc] sm:$0xff]
        %v727 = vld [vmem:[#allocation9 + $0x2c4] sm:$0xff]
        %v728 = vld [vmem:[#allocation9 + $0x2cc] sm:$0xf]
        %v729 = vld [vmem:[#allocation9 + $0x2d0] sm:$0xff]
        %v730 = vld [vmem:[#allocation9 + $0x2d8] sm:$0xff]
        %v731 = vld [vmem:[#allocation9 + $0x2e0] sm:$0xff]
        %v732 = vld [vmem:[#allocation9 + $0x2e8] sm:$0xff]
        %v733 = vld [vmem:[#allocation9 + $0x2f0] sm:$0xf]
        %v734 = vld [vmem:[#allocation9 + $0x2f4] sm:$0xff]
        %v735 = vld [vmem:[#allocation9 + $0x2fc] sm:$0xff]
        %v736 = vld [vmem:[#allocation9 + $0x304] sm:$0xff]
        %v737 = vld [vmem:[#allocation9 + $0x30c] sm:$0xff]
        %v738 = vld [vmem:[#allocation9 + $0x314] sm:$0xf]
        %v739 = vld [vmem:[#allocation9 + $0x318] sm:$0xff]
        %v740 = vld [vmem:[#allocation9 + $0x320] sm:$0xff]
        %v741 = vld [vmem:[#allocation9 + $0x328] sm:$0xff]
        %v742 = vld [vmem:[#allocation9 + $0x330] sm:$0xff]
        %v743 = vld [vmem:[#allocation9 + $0x338] sm:$0xf]
        %v744 = vld [vmem:[#allocation9 + $0x33c] sm:$0xff]
        %v745 = vld [vmem:[#allocation9 + $0x344] sm:$0xff]
        %v746 = vld [vmem:[#allocation9 + $0x34c] sm:$0xff]
        %v747 = vld [vmem:[#allocation9 + $0x354] sm:$0xff]
        %v748 = vld [vmem:[#allocation9 + $0x35c] sm:$0xf]
        %v749 = vld [vmem:[#allocation9 + $0x360] sm:$0xff]
        %v750 = vld [vmem:[#allocation9 + $0x368] sm:$0xff]
        %v751 = vld [vmem:[#allocation9 + $0x370] sm:$0xff]
        %v752 = vld [vmem:[#allocation9 + $0x378] sm:$0xff]
        %v753 = vld [vmem:[#allocation9 + $0x380] sm:$0xf]
        %v754 = vld [vmem:[#allocation9 + $0x384] sm:$0xff]
        %v755 = vld [vmem:[#allocation9 + $0x38c] sm:$0xff]
        %v756 = vld [vmem:[#allocation9 + $0x394] sm:$0xff]
        %v757 = vld [vmem:[#allocation9 + $0x39c] sm:$0xff]
        %v758 = vld [vmem:[#allocation9 + $0x3a4] sm:$0xf]
        %v759 = vld [vmem:[#allocation9 + $0x3a8] sm:$0xff]
        %v760 = vld [vmem:[#allocation9 + $0x3b0] sm:$0xff]
        %v761 = vld [vmem:[#allocation9 + $0x3b8] sm:$0xff]
        %v762 = vld [vmem:[#allocation9 + $0x3c0] sm:$0xff]
        %v763 = vld [vmem:[#allocation9 + $0x3c8] sm:$0xf]
        %v764 = vld [vmem:[#allocation9 + $0x3cc] sm:$0xff]
        %v765 = vld [vmem:[#allocation9 + $0x3d4] sm:$0xff]
        %v766 = vld [vmem:[#allocation9 + $0x3dc] sm:$0xff]
        %v767 = vld [vmem:[#allocation9 + $0x3e4] sm:$0xff]
        %v768 = vld [vmem:[#allocation9 + $0x3ec] sm:$0xf]
        %v769 = vld [vmem:[#allocation9 + $0x3f0] sm:$0xff]
        %v770 = vld [vmem:[#allocation9 + $0x3f8] sm:$0xff]
        %v771 = vld [vmem:[#allocation9 + $0x400] sm:$0xff]
        %v772 = vld [vmem:[#allocation9 + $0x408] sm:$0xff]
        %v773 = vld [vmem:[#allocation9 + $0x410] sm:$0xf]
        %v774 = vld [vmem:[#allocation9 + $0x414] sm:$0xff]
        %v775 = vld [vmem:[#allocation9 + $0x41c] sm:$0xff]
        %v776 = vld [vmem:[#allocation9 + $0x424] sm:$0xff]
        %v777 = vld [vmem:[#allocation9 + $0x42c] sm:$0xff]
        %v778 = vld [vmem:[#allocation9 + $0x434] sm:$0xf]
        %v779 = vld [vmem:[#allocation9 + $0x438] sm:$0xff]
        %v780 = vld [vmem:[#allocation9 + $0x440] sm:$0xff]
        %v781 = vld [vmem:[#allocation9 + $0x448] sm:$0xff]
        %v782 = vld [vmem:[#allocation9 + $0x450] sm:$0xff]
        %v783 = vld [vmem:[#allocation9 + $0x458] sm:$0xf]
        %v784 = vld [vmem:[#allocation9 + $0x45c] sm:$0xff]
        %v785 = vld [vmem:[#allocation9 + $0x464] sm:$0xff]
        %v786 = vld [vmem:[#allocation9 + $0x46c] sm:$0xff]
        %v787 = vld [vmem:[#allocation9 + $0x474] sm:$0xff]
        %v788 = vld [vmem:[#allocation9 + $0x47c] sm:$0xf]
        %v789 = vld [vmem:[#allocation9 + $0x480] sm:$0xff]
        %v790 = vld [vmem:[#allocation9 + $0x488] sm:$0xff]
        %v791 = vld [vmem:[#allocation9 + $0x490] sm:$0xff]
        %v792 = vld [vmem:[#allocation9 + $0x498] sm:$0xff]
        %v793 = vld [vmem:[#allocation9 + $0x4a0] sm:$0xf]
        %v794 = vld [vmem:[#allocation9 + $0x4a4] sm:$0xff]
        %v795 = vld [vmem:[#allocation9 + $0x4ac] sm:$0xff]
        %v796 = vld [vmem:[#allocation9 + $0x4b4] sm:$0xff]
        %v797 = vld [vmem:[#allocation9 + $0x4bc] sm:$0xff]
        %v798 = vld [vmem:[#allocation9 + $0x4c4] sm:$0xf]
        %v799 = vld [vmem:[#allocation9 + $0x4c8] sm:$0xff]
        %v800 = vld [vmem:[#allocation9 + $0x4d0] sm:$0xff]
        %v801 = vld [vmem:[#allocation9 + $0x4d8] sm:$0xff]
        %v802 = vld [vmem:[#allocation9 + $0x4e0] sm:$0xff]
        %v803 = vld [vmem:[#allocation9 + $0x4e8] sm:$0xf]
        %v804 = vld [vmem:[#allocation9 + $0x4ec] sm:$0xff]
        %v805 = vld [vmem:[#allocation9 + $0x4f4] sm:$0xff]
        %v806 = vld [vmem:[#allocation9 + $0x4fc] sm:$0xff]
        %v807 = vld [vmem:[#allocation9 + $0x504] sm:$0xff]
        %v808 = vld [vmem:[#allocation9 + $0x50c] sm:$0xf]
        %v809 = vld [vmem:[#allocation9 + $0x510] sm:$0xff]
        %v810 = vld [vmem:[#allocation9 + $0x518] sm:$0xff]
        %v811 = vld [vmem:[#allocation9 + $0x520] sm:$0xff]
        %v812 = vld [vmem:[#allocation9 + $0x528] sm:$0xff]
        %v813 = vld [vmem:[#allocation9 + $0x530] sm:$0xf]
        %v814 = vld [vmem:[#allocation9 + $0x534] sm:$0xff]
        %v815 = vld [vmem:[#allocation9 + $0x53c] sm:$0xff]
        %v816 = vld [vmem:[#allocation9 + $0x544] sm:$0xff]
        %v817 = vld [vmem:[#allocation9 + $0x54c] sm:$0xff]
        %v818 = vld [vmem:[#allocation9 + $0x554] sm:$0xf]
        %v819 = vld [vmem:[#allocation9 + $0x558] sm:$0xff]
        %v820 = vld [vmem:[#allocation9 + $0x560] sm:$0xff]
        %v821 = vld [vmem:[#allocation9 + $0x568] sm:$0xff]
        %v822 = vld [vmem:[#allocation9 + $0x570] sm:$0xff]
        %v823 = vld [vmem:[#allocation9 + $0x578] sm:$0xf]
        %v824 = vld [vmem:[#allocation9 + $0x57c] sm:$0xff]
        %v825 = vld [vmem:[#allocation9 + $0x584] sm:$0xff]
        %v826 = vld [vmem:[#allocation9 + $0x58c] sm:$0xff]
        %v827 = vld [vmem:[#allocation9 + $0x594] sm:$0xff]
        %v828 = vld [vmem:[#allocation9 + $0x59c] sm:$0xf]
        %v829 = vld [vmem:[#allocation9 + $0x5a0] sm:$0xff]
        %v830 = vld [vmem:[#allocation9 + $0x5a8] sm:$0xff]
        %v831 = vld [vmem:[#allocation9 + $0x5b0] sm:$0xff]
        %v832 = vld [vmem:[#allocation9 + $0x5b8] sm:$0xff]
        %v833 = vld [vmem:[#allocation9 + $0x5c0] sm:$0xf]
        %v834 = vld [vmem:[#allocation9 + $0x5c4] sm:$0xff]
        %v835 = vld [vmem:[#allocation9 + $0x5cc] sm:$0xff]
        %v836 = vld [vmem:[#allocation9 + $0x5d4] sm:$0xff]
        %v837 = vld [vmem:[#allocation9 + $0x5dc] sm:$0xff]
        %v838 = vld [vmem:[#allocation9 + $0x5e4] sm:$0xf]
        %v839 = vld [vmem:[#allocation9 + $0x5e8] sm:$0xff]
        %v840 = vld [vmem:[#allocation9 + $0x5f0] sm:$0xff]
        %v841 = vld [vmem:[#allocation9 + $0x5f8] sm:$0xff]
        %v842 = vld [vmem:[#allocation9 + $0x600] sm:$0xff]
        %v843 = vld [vmem:[#allocation9 + $0x608] sm:$0xf]
        %v844 = vld [vmem:[#allocation9 + $0x60c] sm:$0xff]
        %v845 = vld [vmem:[#allocation9 + $0x614] sm:$0xff]
        %v846 = vld [vmem:[#allocation9 + $0x61c] sm:$0xff]
        %v847 = vld [vmem:[#allocation9 + $0x624] sm:$0xff]
        %v848 = vld [vmem:[#allocation9 + $0x62c] sm:$0xf]
        %v849 = vld [vmem:[#allocation9 + $0x630] sm:$0xff]
        %v850 = vld [vmem:[#allocation9 + $0x638] sm:$0xff]
        %v851 = vld [vmem:[#allocation9 + $0x640] sm:$0xff]
        %v852 = vld [vmem:[#allocation9 + $0x648] sm:$0xff]
        %v853 = vld [vmem:[#allocation9 + $0x650] sm:$0xf]
        %v854 = vld [vmem:[#allocation9 + $0x654] sm:$0xff]
        %v855 = vld [vmem:[#allocation9 + $0x65c] sm:$0xff]
        %v856 = vld [vmem:[#allocation9 + $0x664] sm:$0xff]
        %v857 = vld [vmem:[#allocation9 + $0x66c] sm:$0xff]
        %v858 = vld [vmem:[#allocation9 + $0x674] sm:$0xf]
        %v859 = vld [vmem:[#allocation9 + $0x678] sm:$0xff]
        %v860 = vld [vmem:[#allocation9 + $0x680] sm:$0xff]
        %v861 = vld [vmem:[#allocation9 + $0x688] sm:$0xff]
        %v862 = vld [vmem:[#allocation9 + $0x690] sm:$0xff]
        %v863 = vld [vmem:[#allocation9 + $0x698] sm:$0xf]
        %v864 = vld [vmem:[#allocation9 + $0x69c] sm:$0xff]
        %v865 = vld [vmem:[#allocation9 + $0x6a4] sm:$0xff]
        %v866 = vld [vmem:[#allocation9 + $0x6ac] sm:$0xff]
        %v867 = vld [vmem:[#allocation9 + $0x6b4] sm:$0xff]
        %v868 = vld [vmem:[#allocation9 + $0x6bc] sm:$0xf]
        %v1109 = vunpack.c.l.b16 %v629
        %v1110 = vunpack.c.h.b16 %v629
        %v1111 = vunpack.c.l.b16 %v630
        %v1112 = vunpack.c.h.b16 %v630
        %v1113 = vunpack.c.l.b16 %v631
        %v1114 = vunpack.c.h.b16 %v631
        %v1115 = vunpack.c.l.b16 %v632
        %v1116 = vunpack.c.h.b16 %v632
        %v1117 = vunpack.c.l.b16 %v633
        %v1118 = vunpack.c.l.b16 %v634
        %v1119 = vunpack.c.h.b16 %v634
        %v1120 = vunpack.c.l.b16 %v635
        %v1121 = vunpack.c.h.b16 %v635
        %v1122 = vunpack.c.l.b16 %v636
        %v1123 = vunpack.c.h.b16 %v636
        %v1124 = vunpack.c.l.b16 %v637
        %v1125 = vunpack.c.h.b16 %v637
        %v1126 = vunpack.c.l.b16 %v638
        %v1127 = vunpack.c.l.b16 %v639
        %v1128 = vunpack.c.h.b16 %v639
        %v1129 = vunpack.c.l.b16 %v640
        %v1130 = vunpack.c.h.b16 %v640
        %v1131 = vunpack.c.l.b16 %v641
        %v1132 = vunpack.c.h.b16 %v641
        %v1133 = vunpack.c.l.b16 %v642
        %v1134 = vunpack.c.h.b16 %v642
        %v1135 = vunpack.c.l.b16 %v643
        %v1136 = vunpack.c.l.b16 %v644
        %v1137 = vunpack.c.h.b16 %v644
        %v1138 = vunpack.c.l.b16 %v645
        %v1139 = vunpack.c.h.b16 %v645
        %v1140 = vunpack.c.l.b16 %v646
        %v1141 = vunpack.c.h.b16 %v646
        %v1142 = vunpack.c.l.b16 %v647
        %v1143 = vunpack.c.h.b16 %v647
        %v1144 = vunpack.c.l.b16 %v648
        %v1145 = vunpack.c.l.b16 %v649
        %v1146 = vunpack.c.h.b16 %v649
        %v1147 = vunpack.c.l.b16 %v650
        %v1148 = vunpack.c.h.b16 %v650
        %v1149 = vunpack.c.l.b16 %v651
        %v1150 = vunpack.c.h.b16 %v651
        %v1151 = vunpack.c.l.b16 %v652
        %v1152 = vunpack.c.h.b16 %v652
        %v1153 = vunpack.c.l.b16 %v653
        %v1154 = vunpack.c.l.b16 %v654
        %v1155 = vunpack.c.h.b16 %v654
        %v1156 = vunpack.c.l.b16 %v655
        %v1157 = vunpack.c.h.b16 %v655
        %v1158 = vunpack.c.l.b16 %v656
        %v1159 = vunpack.c.h.b16 %v656
        %v1160 = vunpack.c.l.b16 %v657
        %v1161 = vunpack.c.h.b16 %v657
        %v1162 = vunpack.c.l.b16 %v658
        %v1163 = vunpack.c.l.b16 %v659
        %v1164 = vunpack.c.h.b16 %v659
        %v1165 = vunpack.c.l.b16 %v660
        %v1166 = vunpack.c.h.b16 %v660
        %v1167 = vunpack.c.l.b16 %v661
        %v1168 = vunpack.c.h.b16 %v661
        %v1169 = vunpack.c.l.b16 %v662
        %v1170 = vunpack.c.h.b16 %v662
        %v1171 = vunpack.c.l.b16 %v663
        %v1172 = vunpack.c.l.b16 %v664
        %v1173 = vunpack.c.h.b16 %v664
        %v1174 = vunpack.c.l.b16 %v665
        %v1175 = vunpack.c.h.b16 %v665
        %v1176 = vunpack.c.l.b16 %v666
        %v1177 = vunpack.c.h.b16 %v666
        %v1178 = vunpack.c.l.b16 %v667
        %v1179 = vunpack.c.h.b16 %v667
        %v1180 = vunpack.c.l.b16 %v668
        %v1181 = vunpack.c.l.b16 %v669
        %v1182 = vunpack.c.h.b16 %v669
        %v1183 = vunpack.c.l.b16 %v670
        %v1184 = vunpack.c.h.b16 %v670
        %v1185 = vunpack.c.l.b16 %v671
        %v1186 = vunpack.c.h.b16 %v671
        %v1187 = vunpack.c.l.b16 %v672
        %v1188 = vunpack.c.h.b16 %v672
        %v1189 = vunpack.c.l.b16 %v673
        %v1190 = vunpack.c.l.b16 %v674
        %v1191 = vunpack.c.h.b16 %v674
        %v1192 = vunpack.c.l.b16 %v675
        %v1193 = vunpack.c.h.b16 %v675
        %v1194 = vunpack.c.l.b16 %v676
        %v1195 = vunpack.c.h.b16 %v676
        %v1196 = vunpack.c.l.b16 %v677
        %v1197 = vunpack.c.h.b16 %v677
        %v1198 = vunpack.c.l.b16 %v678
        %v1199 = vunpack.c.l.b16 %v679
        %v1200 = vunpack.c.h.b16 %v679
        %v1201 = vunpack.c.l.b16 %v680
        %v1202 = vunpack.c.h.b16 %v680
        %v1203 = vunpack.c.l.b16 %v681
        %v1204 = vunpack.c.h.b16 %v681
        %v1205 = vunpack.c.l.b16 %v682
        %v1206 = vunpack.c.h.b16 %v682
        %v1207 = vunpack.c.l.b16 %v683
        %v1208 = vunpack.c.l.b16 %v684
        %v1209 = vunpack.c.h.b16 %v684
        %v1210 = vunpack.c.l.b16 %v685
        %v1211 = vunpack.c.h.b16 %v685
        %v1212 = vunpack.c.l.b16 %v686
        %v1213 = vunpack.c.h.b16 %v686
        %v1214 = vunpack.c.l.b16 %v687
        %v1215 = vunpack.c.h.b16 %v687
        %v1216 = vunpack.c.l.b16 %v688
        %v1217 = vunpack.c.l.b16 %v689
        %v1218 = vunpack.c.h.b16 %v689
        %v1219 = vunpack.c.l.b16 %v690
        %v1220 = vunpack.c.h.b16 %v690
        %v1221 = vunpack.c.l.b16 %v691
        %v1222 = vunpack.c.h.b16 %v691
        %v1223 = vunpack.c.l.b16 %v692
        %v1224 = vunpack.c.h.b16 %v692
        %v1225 = vunpack.c.l.b16 %v693
        %v1226 = vunpack.c.l.b16 %v694
        %v1227 = vunpack.c.h.b16 %v694
        %v1228 = vunpack.c.l.b16 %v695
        %v1229 = vunpack.c.h.b16 %v695
        %v1230 = vunpack.c.l.b16 %v696
        %v1231 = vunpack.c.h.b16 %v696
        %v1232 = vunpack.c.l.b16 %v697
        %v1233 = vunpack.c.h.b16 %v697
        %v1234 = vunpack.c.l.b16 %v698
        %v1235 = vunpack.c.l.b16 %v699
        %v1236 = vunpack.c.h.b16 %v699
        %v1237 = vunpack.c.l.b16 %v700
        %v1238 = vunpack.c.h.b16 %v700
        %v1239 = vunpack.c.l.b16 %v701
        %v1240 = vunpack.c.h.b16 %v701
        %v1241 = vunpack.c.l.b16 %v702
        %v1242 = vunpack.c.h.b16 %v702
        %v1243 = vunpack.c.l.b16 %v703
        %v1244 = vunpack.c.l.b16 %v704
        %v1245 = vunpack.c.h.b16 %v704
        %v1246 = vunpack.c.l.b16 %v705
        %v1247 = vunpack.c.h.b16 %v705
        %v1248 = vunpack.c.l.b16 %v706
        %v1249 = vunpack.c.h.b16 %v706
        %v1250 = vunpack.c.l.b16 %v707
        %v1251 = vunpack.c.h.b16 %v707
        %v1252 = vunpack.c.l.b16 %v708
        %v1253 = vunpack.c.l.b16 %v709
        %v1254 = vunpack.c.h.b16 %v709
        %v1255 = vunpack.c.l.b16 %v710
        %v1256 = vunpack.c.h.b16 %v710
        %v1257 = vunpack.c.l.b16 %v711
        %v1258 = vunpack.c.h.b16 %v711
        %v1259 = vunpack.c.l.b16 %v712
        %v1260 = vunpack.c.h.b16 %v712
        %v1261 = vunpack.c.l.b16 %v713
        %v1262 = vunpack.c.l.b16 %v714
        %v1263 = vunpack.c.h.b16 %v714
        %v1264 = vunpack.c.l.b16 %v715
        %v1265 = vunpack.c.h.b16 %v715
        %v1266 = vunpack.c.l.b16 %v716
        %v1267 = vunpack.c.h.b16 %v716
        %v1268 = vunpack.c.l.b16 %v717
        %v1269 = vunpack.c.h.b16 %v717
        %v1270 = vunpack.c.l.b16 %v718
        %v1271 = vunpack.c.l.b16 %v719
        %v1272 = vunpack.c.h.b16 %v719
        %v1273 = vunpack.c.l.b16 %v720
        %v1274 = vunpack.c.h.b16 %v720
        %v1275 = vunpack.c.l.b16 %v721
        %v1276 = vunpack.c.h.b16 %v721
        %v1277 = vunpack.c.l.b16 %v722
        %v1278 = vunpack.c.h.b16 %v722
        %v1279 = vunpack.c.l.b16 %v723
        %v1280 = vunpack.c.l.b16 %v724
        %v1281 = vunpack.c.h.b16 %v724
        %v1282 = vunpack.c.l.b16 %v725
        %v1283 = vunpack.c.h.b16 %v725
        %v1284 = vunpack.c.l.b16 %v726
        %v1285 = vunpack.c.h.b16 %v726
        %v1286 = vunpack.c.l.b16 %v727
        %v1287 = vunpack.c.h.b16 %v727
        %v1288 = vunpack.c.l.b16 %v728
        %v1289 = vunpack.c.l.b16 %v729
        %v1290 = vunpack.c.h.b16 %v729
        %v1291 = vunpack.c.l.b16 %v730
        %v1292 = vunpack.c.h.b16 %v730
        %v1293 = vunpack.c.l.b16 %v731
        %v1294 = vunpack.c.h.b16 %v731
        %v1295 = vunpack.c.l.b16 %v732
        %v1296 = vunpack.c.h.b16 %v732
        %v1297 = vunpack.c.l.b16 %v733
        %v1298 = vunpack.c.l.b16 %v734
        %v1299 = vunpack.c.h.b16 %v734
        %v1300 = vunpack.c.l.b16 %v735
        %v1301 = vunpack.c.h.b16 %v735
        %v1302 = vunpack.c.l.b16 %v736
        %v1303 = vunpack.c.h.b16 %v736
        %v1304 = vunpack.c.l.b16 %v737
        %v1305 = vunpack.c.h.b16 %v737
        %v1306 = vunpack.c.l.b16 %v738
        %v1307 = vunpack.c.l.b16 %v739
        %v1308 = vunpack.c.h.b16 %v739
        %v1309 = vunpack.c.l.b16 %v740
        %v1310 = vunpack.c.h.b16 %v740
        %v1311 = vunpack.c.l.b16 %v741
        %v1312 = vunpack.c.h.b16 %v741
        %v1313 = vunpack.c.l.b16 %v742
        %v1314 = vunpack.c.h.b16 %v742
        %v1315 = vunpack.c.l.b16 %v743
        %v1316 = vunpack.c.l.b16 %v744
        %v1317 = vunpack.c.h.b16 %v744
        %v1318 = vunpack.c.l.b16 %v745
        %v1319 = vunpack.c.h.b16 %v745
        %v1320 = vunpack.c.l.b16 %v746
        %v1321 = vunpack.c.h.b16 %v746
        %v1322 = vunpack.c.l.b16 %v747
        %v1323 = vunpack.c.h.b16 %v747
        %v1324 = vunpack.c.l.b16 %v748
        %v1325 = vunpack.c.l.b16 %v749
        %v1326 = vunpack.c.h.b16 %v749
        %v1327 = vunpack.c.l.b16 %v750
        %v1328 = vunpack.c.h.b16 %v750
        %v1329 = vunpack.c.l.b16 %v751
        %v1330 = vunpack.c.h.b16 %v751
        %v1331 = vunpack.c.l.b16 %v752
        %v1332 = vunpack.c.h.b16 %v752
        %v1333 = vunpack.c.l.b16 %v753
        %v1334 = vunpack.c.l.b16 %v754
        %v1335 = vunpack.c.h.b16 %v754
        %v1336 = vunpack.c.l.b16 %v755
        %v1337 = vunpack.c.h.b16 %v755
        %v1338 = vunpack.c.l.b16 %v756
        %v1339 = vunpack.c.h.b16 %v756
        %v1340 = vunpack.c.l.b16 %v757
        %v1341 = vunpack.c.h.b16 %v757
        %v1342 = vunpack.c.l.b16 %v758
        %v1343 = vunpack.c.l.b16 %v759
        %v1344 = vunpack.c.h.b16 %v759
        %v1345 = vunpack.c.l.b16 %v760
        %v1346 = vunpack.c.h.b16 %v760
        %v1347 = vunpack.c.l.b16 %v761
        %v1348 = vunpack.c.h.b16 %v761
        %v1349 = vunpack.c.l.b16 %v762
        %v1350 = vunpack.c.h.b16 %v762
        %v1351 = vunpack.c.l.b16 %v763
        %v1352 = vunpack.c.l.b16 %v764
        %v1353 = vunpack.c.h.b16 %v764
        %v1354 = vunpack.c.l.b16 %v765
        %v1355 = vunpack.c.h.b16 %v765
        %v1356 = vunpack.c.l.b16 %v766
        %v1357 = vunpack.c.h.b16 %v766
        %v1358 = vunpack.c.l.b16 %v767
        %v1359 = vunpack.c.h.b16 %v767
        %v1360 = vunpack.c.l.b16 %v768
        %v1361 = vunpack.c.l.b16 %v769
        %v1362 = vunpack.c.h.b16 %v769
        %v1363 = vunpack.c.l.b16 %v770
        %v1364 = vunpack.c.h.b16 %v770
        %v1365 = vunpack.c.l.b16 %v771
        %v1366 = vunpack.c.h.b16 %v771
        %v1367 = vunpack.c.l.b16 %v772
        %v1368 = vunpack.c.h.b16 %v772
        %v1369 = vunpack.c.l.b16 %v773
        %v1370 = vunpack.c.l.b16 %v774
        %v1371 = vunpack.c.h.b16 %v774
        %v1372 = vunpack.c.l.b16 %v775
        %v1373 = vunpack.c.h.b16 %v775
        %v1374 = vunpack.c.l.b16 %v776
        %v1375 = vunpack.c.h.b16 %v776
        %v1376 = vunpack.c.l.b16 %v777
        %v1377 = vunpack.c.h.b16 %v777
        %v1378 = vunpack.c.l.b16 %v778
        %v1379 = vunpack.c.l.b16 %v779
        %v1380 = vunpack.c.h.b16 %v779
        %v1381 = vunpack.c.l.b16 %v780
        %v1382 = vunpack.c.h.b16 %v780
        %v1383 = vunpack.c.l.b16 %v781
        %v1384 = vunpack.c.h.b16 %v781
        %v1385 = vunpack.c.l.b16 %v782
        %v1386 = vunpack.c.h.b16 %v782
        %v1387 = vunpack.c.l.b16 %v783
        %v1388 = vunpack.c.l.b16 %v784
        %v1389 = vunpack.c.h.b16 %v784
        %v1390 = vunpack.c.l.b16 %v785
        %v1391 = vunpack.c.h.b16 %v785
        %v1392 = vunpack.c.l.b16 %v786
        %v1393 = vunpack.c.h.b16 %v786
        %v1394 = vunpack.c.l.b16 %v787
        %v1395 = vunpack.c.h.b16 %v787
        %v1396 = vunpack.c.l.b16 %v788
        %v1397 = vunpack.c.l.b16 %v789
        %v1398 = vunpack.c.h.b16 %v789
        %v1399 = vunpack.c.l.b16 %v790
        %v1400 = vunpack.c.h.b16 %v790
        %v1401 = vunpack.c.l.b16 %v791
        %v1402 = vunpack.c.h.b16 %v791
        %v1403 = vunpack.c.l.b16 %v792
        %v1404 = vunpack.c.h.b16 %v792
        %v1405 = vunpack.c.l.b16 %v793
        %v1406 = vunpack.c.l.b16 %v794
        %v1407 = vunpack.c.h.b16 %v794
        %v1408 = vunpack.c.l.b16 %v795
        %v1409 = vunpack.c.h.b16 %v795
        %v1410 = vunpack.c.l.b16 %v796
        %v1411 = vunpack.c.h.b16 %v796
        %v1412 = vunpack.c.l.b16 %v797
        %v1413 = vunpack.c.h.b16 %v797
        %v1414 = vunpack.c.l.b16 %v798
        %v1415 = vunpack.c.l.b16 %v799
        %v1416 = vunpack.c.h.b16 %v799
        %v1417 = vunpack.c.l.b16 %v800
        %v1418 = vunpack.c.h.b16 %v800
        %v1419 = vunpack.c.l.b16 %v801
        %v1420 = vunpack.c.h.b16 %v801
        %v1421 = vunpack.c.l.b16 %v802
        %v1422 = vunpack.c.h.b16 %v802
        %v1423 = vunpack.c.l.b16 %v803
        %v1424 = vunpack.c.l.b16 %v804
        %v1425 = vunpack.c.h.b16 %v804
        %v1426 = vunpack.c.l.b16 %v805
        %v1427 = vunpack.c.h.b16 %v805
        %v1428 = vunpack.c.l.b16 %v806
        %v1429 = vunpack.c.h.b16 %v806
        %v1430 = vunpack.c.l.b16 %v807
        %v1431 = vunpack.c.h.b16 %v807
        %v1432 = vunpack.c.l.b16 %v808
        %v1433 = vunpack.c.l.b16 %v809
        %v1434 = vunpack.c.h.b16 %v809
        %v1435 = vunpack.c.l.b16 %v810
        %v1436 = vunpack.c.h.b16 %v810
        %v1437 = vunpack.c.l.b16 %v811
        %v1438 = vunpack.c.h.b16 %v811
        %v1439 = vunpack.c.l.b16 %v812
        %v1440 = vunpack.c.h.b16 %v812
        %v1441 = vunpack.c.l.b16 %v813
        %v1442 = vunpack.c.l.b16 %v814
        %v1443 = vunpack.c.h.b16 %v814
        %v1444 = vunpack.c.l.b16 %v815
        %v1445 = vunpack.c.h.b16 %v815
        %v1446 = vunpack.c.l.b16 %v816
        %v1447 = vunpack.c.h.b16 %v816
        %v1448 = vunpack.c.l.b16 %v817
        %v1449 = vunpack.c.h.b16 %v817
        %v1450 = vunpack.c.l.b16 %v818
        %v1451 = vunpack.c.l.b16 %v819
        %v1452 = vunpack.c.h.b16 %v819
        %v1453 = vunpack.c.l.b16 %v820
        %v1454 = vunpack.c.h.b16 %v820
        %v1455 = vunpack.c.l.b16 %v821
        %v1456 = vunpack.c.h.b16 %v821
        %v1457 = vunpack.c.l.b16 %v822
        %v1458 = vunpack.c.h.b16 %v822
        %v1459 = vunpack.c.l.b16 %v823
        %v1460 = vunpack.c.l.b16 %v824
        %v1461 = vunpack.c.h.b16 %v824
        %v1462 = vunpack.c.l.b16 %v825
        %v1463 = vunpack.c.h.b16 %v825
        %v1464 = vunpack.c.l.b16 %v826
        %v1465 = vunpack.c.h.b16 %v826
        %v1466 = vunpack.c.l.b16 %v827
        %v1467 = vunpack.c.h.b16 %v827
        %v1468 = vunpack.c.l.b16 %v828
        %v1469 = vunpack.c.l.b16 %v829
        %v1470 = vunpack.c.h.b16 %v829
        %v1471 = vunpack.c.l.b16 %v830
        %v1472 = vunpack.c.h.b16 %v830
        %v1473 = vunpack.c.l.b16 %v831
        %v1474 = vunpack.c.h.b16 %v831
        %v1475 = vunpack.c.l.b16 %v832
        %v1476 = vunpack.c.h.b16 %v832
        %v1477 = vunpack.c.l.b16 %v833
        %v1478 = vunpack.c.l.b16 %v834
        %v1479 = vunpack.c.h.b16 %v834
        %v1480 = vunpack.c.l.b16 %v835
        %v1481 = vunpack.c.h.b16 %v835
        %v1482 = vunpack.c.l.b16 %v836
        %v1483 = vunpack.c.h.b16 %v836
        %v1484 = vunpack.c.l.b16 %v837
        %v1485 = vunpack.c.h.b16 %v837
        %v1486 = vunpack.c.l.b16 %v838
        %v1487 = vunpack.c.l.b16 %v839
        %v1488 = vunpack.c.h.b16 %v839
        %v1489 = vunpack.c.l.b16 %v840
        %v1490 = vunpack.c.h.b16 %v840
        %v1491 = vunpack.c.l.b16 %v841
        %v1492 = vunpack.c.h.b16 %v841
        %v1493 = vunpack.c.l.b16 %v842
        %v1494 = vunpack.c.h.b16 %v842
        %v1495 = vunpack.c.l.b16 %v843
        %v1496 = vunpack.c.l.b16 %v844
        %v1497 = vunpack.c.h.b16 %v844
        %v1498 = vunpack.c.l.b16 %v845
        %v1499 = vunpack.c.h.b16 %v845
        %v1500 = vunpack.c.l.b16 %v846
        %v1501 = vunpack.c.h.b16 %v846
        %v1502 = vunpack.c.l.b16 %v847
        %v1503 = vunpack.c.h.b16 %v847
        %v1504 = vunpack.c.l.b16 %v848
        %v1505 = vunpack.c.l.b16 %v849
        %v1506 = vunpack.c.h.b16 %v849
        %v1507 = vunpack.c.l.b16 %v850
        %v1508 = vunpack.c.h.b16 %v850
        %v1509 = vunpack.c.l.b16 %v851
        %v1510 = vunpack.c.h.b16 %v851
        %v1511 = vunpack.c.l.b16 %v852
        %v1512 = vunpack.c.h.b16 %v852
        %v1513 = vunpack.c.l.b16 %v853
        %v1514 = vunpack.c.l.b16 %v854
        %v1515 = vunpack.c.h.b16 %v854
        %v1516 = vunpack.c.l.b16 %v855
        %v1517 = vunpack.c.h.b16 %v855
        %v1518 = vunpack.c.l.b16 %v856
        %v1519 = vunpack.c.h.b16 %v856
        %v1520 = vunpack.c.l.b16 %v857
        %v1521 = vunpack.c.h.b16 %v857
        %v1522 = vunpack.c.l.b16 %v858
        %v1523 = vunpack.c.l.b16 %v859
        %v1524 = vunpack.c.h.b16 %v859
        %v1525 = vunpack.c.l.b16 %v860
        %v1526 = vunpack.c.h.b16 %v860
        %v1527 = vunpack.c.l.b16 %v861
        %v1528 = vunpack.c.h.b16 %v861
        %v1529 = vunpack.c.l.b16 %v862
        %v1530 = vunpack.c.h.b16 %v862
        %v1531 = vunpack.c.l.b16 %v863
        %v1532 = vunpack.c.l.b16 %v864
        %v1533 = vunpack.c.h.b16 %v864
        %v1534 = vunpack.c.l.b16 %v865
        %v1535 = vunpack.c.h.b16 %v865
        %v1536 = vunpack.c.l.b16 %v866
        %v1537 = vunpack.c.h.b16 %v866
        %v1538 = vunpack.c.l.b16 %v867
        %v1539 = vunpack.c.h.b16 %v867
        %v1540 = vunpack.c.l.b16 %v868
        %v1541 = vpack.c.b16 %v1118, %v1109
        %v1542 = vpack.c.b16 %v1119, %v1110
        %v1543 = vpack.c.b16 %v1120, %v1111
        %v1544 = vpack.c.b16 %v1121, %v1112
        %v1545 = vpack.c.b16 %v1122, %v1113
        %v1546 = vpack.c.b16 %v1123, %v1114
        %v1547 = vpack.c.b16 %v1124, %v1115
        %v1548 = vpack.c.b16 %v1125, %v1116
        %v1549 = vpack.c.b16 %v1126, %v1117
        %v1550 = vpack.c.b16 %v1136, %v1127
        %v1551 = vpack.c.b16 %v1137, %v1128
        %v1552 = vpack.c.b16 %v1138, %v1129
        %v1553 = vpack.c.b16 %v1139, %v1130
        %v1554 = vpack.c.b16 %v1140, %v1131
        %v1555 = vpack.c.b16 %v1141, %v1132
        %v1556 = vpack.c.b16 %v1142, %v1133
        %v1557 = vpack.c.b16 %v1143, %v1134
        %v1558 = vpack.c.b16 %v1144, %v1135
        %v1559 = vpack.c.b16 %v1154, %v1145
        %v1560 = vpack.c.b16 %v1155, %v1146
        %v1561 = vpack.c.b16 %v1156, %v1147
        %v1562 = vpack.c.b16 %v1157, %v1148
        %v1563 = vpack.c.b16 %v1158, %v1149
        %v1564 = vpack.c.b16 %v1159, %v1150
        %v1565 = vpack.c.b16 %v1160, %v1151
        %v1566 = vpack.c.b16 %v1161, %v1152
        %v1567 = vpack.c.b16 %v1162, %v1153
        %v1568 = vpack.c.b16 %v1172, %v1163
        %v1569 = vpack.c.b16 %v1173, %v1164
        %v1570 = vpack.c.b16 %v1174, %v1165
        %v1571 = vpack.c.b16 %v1175, %v1166
        %v1572 = vpack.c.b16 %v1176, %v1167
        %v1573 = vpack.c.b16 %v1177, %v1168
        %v1574 = vpack.c.b16 %v1178, %v1169
        %v1575 = vpack.c.b16 %v1179, %v1170
        %v1576 = vpack.c.b16 %v1180, %v1171
        %v1577 = vpack.c.b16 %v1190, %v1181
        %v1578 = vpack.c.b16 %v1191, %v1182
        %v1579 = vpack.c.b16 %v1192, %v1183
        %v1580 = vpack.c.b16 %v1193, %v1184
        %v1581 = vpack.c.b16 %v1194, %v1185
        %v1582 = vpack.c.b16 %v1195, %v1186
        %v1583 = vpack.c.b16 %v1196, %v1187
        %v1584 = vpack.c.b16 %v1197, %v1188
        %v1585 = vpack.c.b16 %v1198, %v1189
        %v1586 = vpack.c.b16 %v1208, %v1199
        %v1587 = vpack.c.b16 %v1209, %v1200
        %v1588 = vpack.c.b16 %v1210, %v1201
        %v1589 = vpack.c.b16 %v1211, %v1202
        %v1590 = vpack.c.b16 %v1212, %v1203
        %v1591 = vpack.c.b16 %v1213, %v1204
        %v1592 = vpack.c.b16 %v1214, %v1205
        %v1593 = vpack.c.b16 %v1215, %v1206
        %v1594 = vpack.c.b16 %v1216, %v1207
        %v1595 = vpack.c.b16 %v1226, %v1217
        %v1596 = vpack.c.b16 %v1227, %v1218
        %v1597 = vpack.c.b16 %v1228, %v1219
        %v1598 = vpack.c.b16 %v1229, %v1220
        %v1599 = vpack.c.b16 %v1230, %v1221
        %v1600 = vpack.c.b16 %v1231, %v1222
        %v1601 = vpack.c.b16 %v1232, %v1223
        %v1602 = vpack.c.b16 %v1233, %v1224
        %v1603 = vpack.c.b16 %v1234, %v1225
        %v1604 = vpack.c.b16 %v1244, %v1235
        %v1605 = vpack.c.b16 %v1245, %v1236
        %v1606 = vpack.c.b16 %v1246, %v1237
        %v1607 = vpack.c.b16 %v1247, %v1238
        %v1608 = vpack.c.b16 %v1248, %v1239
        %v1609 = vpack.c.b16 %v1249, %v1240
        %v1610 = vpack.c.b16 %v1250, %v1241
        %v1611 = vpack.c.b16 %v1251, %v1242
        %v1612 = vpack.c.b16 %v1252, %v1243
        %v1613 = vpack.c.b16 %v1262, %v1253
        %v1614 = vpack.c.b16 %v1263, %v1254
        %v1615 = vpack.c.b16 %v1264, %v1255
        %v1616 = vpack.c.b16 %v1265, %v1256
        %v1617 = vpack.c.b16 %v1266, %v1257
        %v1618 = vpack.c.b16 %v1267, %v1258
        %v1619 = vpack.c.b16 %v1268, %v1259
        %v1620 = vpack.c.b16 %v1269, %v1260
        %v1621 = vpack.c.b16 %v1270, %v1261
        %v1622 = vpack.c.b16 %v1280, %v1271
        %v1623 = vpack.c.b16 %v1281, %v1272
        %v1624 = vpack.c.b16 %v1282, %v1273
        %v1625 = vpack.c.b16 %v1283, %v1274
        %v1626 = vpack.c.b16 %v1284, %v1275
        %v1627 = vpack.c.b16 %v1285, %v1276
        %v1628 = vpack.c.b16 %v1286, %v1277
        %v1629 = vpack.c.b16 %v1287, %v1278
        %v1630 = vpack.c.b16 %v1288, %v1279
        %v1631 = vpack.c.b16 %v1298, %v1289
        %v1632 = vpack.c.b16 %v1299, %v1290
        %v1633 = vpack.c.b16 %v1300, %v1291
        %v1634 = vpack.c.b16 %v1301, %v1292
        %v1635 = vpack.c.b16 %v1302, %v1293
        %v1636 = vpack.c.b16 %v1303, %v1294
        %v1637 = vpack.c.b16 %v1304, %v1295
        %v1638 = vpack.c.b16 %v1305, %v1296
        %v1639 = vpack.c.b16 %v1306, %v1297
        %v1640 = vpack.c.b16 %v1316, %v1307
        %v1641 = vpack.c.b16 %v1317, %v1308
        %v1642 = vpack.c.b16 %v1318, %v1309
        %v1643 = vpack.c.b16 %v1319, %v1310
        %v1644 = vpack.c.b16 %v1320, %v1311
        %v1645 = vpack.c.b16 %v1321, %v1312
        %v1646 = vpack.c.b16 %v1322, %v1313
        %v1647 = vpack.c.b16 %v1323, %v1314
        %v1648 = vpack.c.b16 %v1324, %v1315
        %v1649 = vpack.c.b16 %v1334, %v1325
        %v1650 = vpack.c.b16 %v1335, %v1326
        %v1651 = vpack.c.b16 %v1336, %v1327
        %v1652 = vpack.c.b16 %v1337, %v1328
        %v1653 = vpack.c.b16 %v1338, %v1329
        %v1654 = vpack.c.b16 %v1339, %v1330
        %v1655 = vpack.c.b16 %v1340, %v1331
        %v1656 = vpack.c.b16 %v1341, %v1332
        %v1657 = vpack.c.b16 %v1342, %v1333
        %v1658 = vpack.c.b16 %v1352, %v1343
        %v1659 = vpack.c.b16 %v1353, %v1344
        %v1660 = vpack.c.b16 %v1354, %v1345
        %v1661 = vpack.c.b16 %v1355, %v1346
        %v1662 = vpack.c.b16 %v1356, %v1347
        %v1663 = vpack.c.b16 %v1357, %v1348
        %v1664 = vpack.c.b16 %v1358, %v1349
        %v1665 = vpack.c.b16 %v1359, %v1350
        %v1666 = vpack.c.b16 %v1360, %v1351
        %v1667 = vpack.c.b16 %v1370, %v1361
        %v1668 = vpack.c.b16 %v1371, %v1362
        %v1669 = vpack.c.b16 %v1372, %v1363
        %v1670 = vpack.c.b16 %v1373, %v1364
        %v1671 = vpack.c.b16 %v1374, %v1365
        %v1672 = vpack.c.b16 %v1375, %v1366
        %v1673 = vpack.c.b16 %v1376, %v1367
        %v1674 = vpack.c.b16 %v1377, %v1368
        %v1675 = vpack.c.b16 %v1378, %v1369
        %v1676 = vpack.c.b16 %v1388, %v1379
        %v1677 = vpack.c.b16 %v1389, %v1380
        %v1678 = vpack.c.b16 %v1390, %v1381
        %v1679 = vpack.c.b16 %v1391, %v1382
        %v1680 = vpack.c.b16 %v1392, %v1383
        %v1681 = vpack.c.b16 %v1393, %v1384
        %v1682 = vpack.c.b16 %v1394, %v1385
        %v1683 = vpack.c.b16 %v1395, %v1386
        %v1684 = vpack.c.b16 %v1396, %v1387
        %v1685 = vpack.c.b16 %v1406, %v1397
        %v1686 = vpack.c.b16 %v1407, %v1398
        %v1687 = vpack.c.b16 %v1408, %v1399
        %v1688 = vpack.c.b16 %v1409, %v1400
        %v1689 = vpack.c.b16 %v1410, %v1401
        %v1690 = vpack.c.b16 %v1411, %v1402
        %v1691 = vpack.c.b16 %v1412, %v1403
        %v1692 = vpack.c.b16 %v1413, %v1404
        %v1693 = vpack.c.b16 %v1414, %v1405
        %v1694 = vpack.c.b16 %v1424, %v1415
        %v1695 = vpack.c.b16 %v1425, %v1416
        %v1696 = vpack.c.b16 %v1426, %v1417
        %v1697 = vpack.c.b16 %v1427, %v1418
        %v1698 = vpack.c.b16 %v1428, %v1419
        %v1699 = vpack.c.b16 %v1429, %v1420
        %v1700 = vpack.c.b16 %v1430, %v1421
        %v1701 = vpack.c.b16 %v1431, %v1422
        %v1702 = vpack.c.b16 %v1432, %v1423
        %v1703 = vpack.c.b16 %v1442, %v1433
        %v1704 = vpack.c.b16 %v1443, %v1434
        %v1705 = vpack.c.b16 %v1444, %v1435
        %v1706 = vpack.c.b16 %v1445, %v1436
        %v1707 = vpack.c.b16 %v1446, %v1437
        %v1708 = vpack.c.b16 %v1447, %v1438
        %v1709 = vpack.c.b16 %v1448, %v1439
        %v1710 = vpack.c.b16 %v1449, %v1440
        %v1711 = vpack.c.b16 %v1450, %v1441
        %v1712 = vpack.c.b16 %v1460, %v1451
        %v1713 = vpack.c.b16 %v1461, %v1452
        %v1714 = vpack.c.b16 %v1462, %v1453
        %v1715 = vpack.c.b16 %v1463, %v1454
        %v1716 = vpack.c.b16 %v1464, %v1455
        %v1717 = vpack.c.b16 %v1465, %v1456
        %v1718 = vpack.c.b16 %v1466, %v1457
        %v1719 = vpack.c.b16 %v1467, %v1458
        %v1720 = vpack.c.b16 %v1468, %v1459
        %v1721 = vpack.c.b16 %v1478, %v1469
        %v1722 = vpack.c.b16 %v1479, %v1470
        %v1723 = vpack.c.b16 %v1480, %v1471
        %v1724 = vpack.c.b16 %v1481, %v1472
        %v1725 = vpack.c.b16 %v1482, %v1473
        %v1726 = vpack.c.b16 %v1483, %v1474
        %v1727 = vpack.c.b16 %v1484, %v1475
        %v1728 = vpack.c.b16 %v1485, %v1476
        %v1729 = vpack.c.b16 %v1486, %v1477
        %v1730 = vpack.c.b16 %v1496, %v1487
        %v1731 = vpack.c.b16 %v1497, %v1488
        %v1732 = vpack.c.b16 %v1498, %v1489
        %v1733 = vpack.c.b16 %v1499, %v1490
        %v1734 = vpack.c.b16 %v1500, %v1491
        %v1735 = vpack.c.b16 %v1501, %v1492
        %v1736 = vpack.c.b16 %v1502, %v1493
        %v1737 = vpack.c.b16 %v1503, %v1494
        %v1738 = vpack.c.b16 %v1504, %v1495
        %v1739 = vpack.c.b16 %v1514, %v1505
        %v1740 = vpack.c.b16 %v1515, %v1506
        %v1741 = vpack.c.b16 %v1516, %v1507
        %v1742 = vpack.c.b16 %v1517, %v1508
        %v1743 = vpack.c.b16 %v1518, %v1509
        %v1744 = vpack.c.b16 %v1519, %v1510
        %v1745 = vpack.c.b16 %v1520, %v1511
        %v1746 = vpack.c.b16 %v1521, %v1512
        %v1747 = vpack.c.b16 %v1522, %v1513
        %v1748 = vpack.c.b16 %v1532, %v1523
        %v1749 = vpack.c.b16 %v1533, %v1524
        %v1750 = vpack.c.b16 %v1534, %v1525
        %v1751 = vpack.c.b16 %v1535, %v1526
        %v1752 = vpack.c.b16 %v1536, %v1527
        %v1753 = vpack.c.b16 %v1537, %v1528
        %v1754 = vpack.c.b16 %v1538, %v1529
        %v1755 = vpack.c.b16 %v1539, %v1530
        %v1756 = vpack.c.b16 %v1540, %v1531
        %1973 = vmatprep.subr.bf16.mxu0 %v1542
        %1974 = vmatpush1.bf16.msra.mxu0 %v1541
        %1975 = vmatprep.subr.bf16.mxu0 %v1551
        %1976 = vmatpush1.bf16.msra.mxu0 %v1550
        %1977 = vmatprep.subr.bf16.mxu0 %v1560
        %1978 = vmatpush1.bf16.msra.mxu0 %v1559
        %1979 = vmatprep.subr.bf16.mxu0 %v1569
        %1980 = vmatpush1.bf16.msra.mxu0 %v1568
        %1981 = vmatprep.subr.bf16.mxu0 %v1578
        %1982 = vmatpush1.bf16.msra.mxu0 %v1577
        %1983 = vmatprep.subr.bf16.mxu0 %v1587
        %1984 = vmatpush1.bf16.msra.mxu0 %v1586
        %1985 = vmatprep.subr.bf16.mxu0 %v1596
        %1986 = vmatpush1.bf16.msra.mxu0 %v1595
        %1987 = vmatprep.subr.bf16.mxu0 %v1605
        %1988 = vmatpush1.bf16.msra.mxu0 %v1604
        %1989 = vmatprep.subr.bf16.mxu0 %v1614
        %1990 = vmatpush1.bf16.msra.mxu0 %v1613
        %1991 = vmatprep.subr.bf16.mxu0 %v1623
        %1992 = vmatpush1.bf16.msra.mxu0 %v1622
        %1993 = vmatprep.subr.bf16.mxu0 %v1632
        %1994 = vmatpush1.bf16.msra.mxu0 %v1631
        %1995 = vmatprep.subr.bf16.mxu0 %v1641
        %1996 = vmatpush1.bf16.msra.mxu0 %v1640
        %1997 = vmatprep.subr.bf16.mxu0 %v1650
        %1998 = vmatpush1.bf16.msra.mxu0 %v1649
        %1999 = vmatprep.subr.bf16.mxu0 %v1659
        %2000 = vmatpush1.bf16.msra.mxu0 %v1658
        %2001 = vmatprep.subr.bf16.mxu0 %v1668
        %2002 = vmatpush1.bf16.msra.mxu0 %v1667
        %2003 = vmatprep.subr.bf16.mxu0 %v1677
        %2004 = vmatpush1.bf16.msra.mxu0 %v1676
        %2005 = vmatprep.mubr.bf16.mxu0 %v627
        %2006 = vmatmul.mubr.bf16.gmra.mrb[0].mxu0 %v626
        %v2007 = vpop.f32.mrb[0].mxu0
        %v2008 = vadd.f32 0.0, %v2007
        %v2009 = vpop.f32.mrb[0].mxu0
        %v2010 = vadd.f32 0.0, %v2009
        %v2011 = vpop.f32.mrb[0].mxu0
        %v2012 = vpop.f32.mrb[0].mxu0
        %2013 = vdwg.mxu0
        %2014 = vmatprep.subr.bf16.mxu0 %v1686
        %2015 = vmatpush1.bf16.msra.mxu0 %v1685
        %2016 = vmatprep.subr.bf16.mxu0 %v1695
        %2017 = vmatpush1.bf16.msra.mxu0 %v1694
        %2018 = vmatprep.subr.bf16.mxu0 %v1704
        %2019 = vmatpush1.bf16.msra.mxu0 %v1703
        %2020 = vmatprep.subr.bf16.mxu0 %v1713
        %2021 = vmatpush1.bf16.msra.mxu0 %v1712
        %2022 = vmatprep.subr.bf16.mxu0 %v1722
        %2023 = vmatpush1.bf16.msra.mxu0 %v1721
        %2024 = vmatprep.subr.bf16.mxu0 %v1731
        %2025 = vmatpush1.bf16.msra.mxu0 %v1730
        %2026 = vmatprep.subr.bf16.mxu0 %v1740
        %2027 = vmatpush1.bf16.msra.mxu0 %v1739
        %2028 = vmatprep.subr.bf16.mxu0 %v1749
        %2029 = vmatpush1.bf16.msra.mxu0 %v1748
        %2030 = vmatprep.subr.bf16.mxu0 0
        %2031 = vmatpush1.bf16.msra.mxu0 0
        %2032 = vmatprep.subr.bf16.mxu0 0
        %2033 = vmatpush1.bf16.msra.mxu0 0
        %2034 = vmatprep.subr.bf16.mxu0 0
        %2035 = vmatpush1.bf16.msra.mxu0 0
        %2036 = vmatprep.subr.bf16.mxu0 0
        %2037 = vmatpush1.bf16.msra.mxu0 0
        %2038 = vmatprep.subr.bf16.mxu0 0
        %2039 = vmatpush1.bf16.msra.mxu0 0
        %2040 = vmatprep.subr.bf16.mxu0 0
        %2041 = vmatpush1.bf16.msra.mxu0 0
        %2042 = vmatprep.subr.bf16.mxu0 0
        %2043 = vmatpush1.bf16.msra.mxu0 0
        %2044 = vmatprep.subr.bf16.mxu0 0
        %2045 = vmatpush1.bf16.msra.mxu0 0
        %2046 = vmatprep.mubr.bf16.mxu0 0
        %2047 = vmatmul.mubr.bf16.gmra.mrb[0].mxu0 %v628
        %v2048 = vpop.f32.mrb[0].mxu0
        %v2049 = vadd.f32 %v2008, %v2048
        %v2050 = vpop.f32.mrb[0].mxu0
        %v2051 = vadd.f32 %v2010, %v2050
        %v2052 = vpop.f32.mrb[0].mxu0
        %v2053 = vpop.f32.mrb[0].mxu0
        %2054 = vdwg.mxu0
        %2055 = vmatprep.subr.bf16.mxu0 %v1544
        %2056 = vmatpush1.bf16.msra.mxu0 %v1543
        %2057 = vmatprep.subr.bf16.mxu0 %v1553
        %2058 = vmatpush1.bf16.msra.mxu0 %v1552
        %2059 = vmatprep.subr.bf16.mxu0 %v1562
        %2060 = vmatpush1.bf16.msra.mxu0 %v1561
        %2061 = vmatprep.subr.bf16.mxu0 %v1571
        %2062 = vmatpush1.bf16.msra.mxu0 %v1570
        %2063 = vmatprep.subr.bf16.mxu0 %v1580
        %2064 = vmatpush1.bf16.msra.mxu0 %v1579
        %2065 = vmatprep.subr.bf16.mxu0 %v1589
        %2066 = vmatpush1.bf16.msra.mxu0 %v1588
        %2067 = vmatprep.subr.bf16.mxu0 %v1598
        %2068 = vmatpush1.bf16.msra.mxu0 %v1597
        %2069 = vmatprep.subr.bf16.mxu0 %v1607
        %2070 = vmatpush1.bf16.msra.mxu0 %v1606
        %2071 = vmatprep.subr.bf16.mxu0 %v1616
        %2072 = vmatpush1.bf16.msra.mxu0 %v1615
        %2073 = vmatprep.subr.bf16.mxu0 %v1625
        %2074 = vmatpush1.bf16.msra.mxu0 %v1624
        %2075 = vmatprep.subr.bf16.mxu0 %v1634
        %2076 = vmatpush1.bf16.msra.mxu0 %v1633
        %2077 = vmatprep.subr.bf16.mxu0 %v1643
        %2078 = vmatpush1.bf16.msra.mxu0 %v1642
        %2079 = vmatprep.subr.bf16.mxu0 %v1652
        %2080 = vmatpush1.bf16.msra.mxu0 %v1651
        %2081 = vmatprep.subr.bf16.mxu0 %v1661
        %2082 = vmatpush1.bf16.msra.mxu0 %v1660
        %2083 = vmatprep.subr.bf16.mxu0 %v1670
        %2084 = vmatpush1.bf16.msra.mxu0 %v1669
        %2085 = vmatprep.subr.bf16.mxu0 %v1679
        %2086 = vmatpush1.bf16.msra.mxu0 %v1678
        %2087 = vmatprep.mubr.bf16.mxu0 %v627
        %2088 = vmatmul.mubr.bf16.gmra.mrb[0].mxu0 %v626
        %v2089 = vpop.f32.mrb[0].mxu0
        %v2090 = vadd.f32 0.0, %v2089
        %v2091 = vpop.f32.mrb[0].mxu0
        %v2092 = vadd.f32 0.0, %v2091
        %v2093 = vpop.f32.mrb[0].mxu0
        %v2094 = vpop.f32.mrb[0].mxu0
        %2095 = vdwg.mxu0
        %2096 = vmatprep.subr.bf16.mxu0 %v1688
        %2097 = vmatpush1.bf16.msra.mxu0 %v1687
        %2098 = vmatprep.subr.bf16.mxu0 %v1697
        %2099 = vmatpush1.bf16.msra.mxu0 %v1696
        %2100 = vmatprep.subr.bf16.mxu0 %v1706
        %2101 = vmatpush1.bf16.msra.mxu0 %v1705
        %2102 = vmatprep.subr.bf16.mxu0 %v1715
        %2103 = vmatpush1.bf16.msra.mxu0 %v1714
        %2104 = vmatprep.subr.bf16.mxu0 %v1724
        %2105 = vmatpush1.bf16.msra.mxu0 %v1723
        %2106 = vmatprep.subr.bf16.mxu0 %v1733
        %2107 = vmatpush1.bf16.msra.mxu0 %v1732
        %2108 = vmatprep.subr.bf16.mxu0 %v1742
        %2109 = vmatpush1.bf16.msra.mxu0 %v1741
        %2110 = vmatprep.subr.bf16.mxu0 %v1751
        %2111 = vmatpush1.bf16.msra.mxu0 %v1750
        %2112 = vmatprep.subr.bf16.mxu0 0
        %2113 = vmatpush1.bf16.msra.mxu0 0
        %2114 = vmatprep.subr.bf16.mxu0 0
        %2115 = vmatpush1.bf16.msra.mxu0 0
        %2116 = vmatprep.subr.bf16.mxu0 0
        %2117 = vmatpush1.bf16.msra.mxu0 0
        %2118 = vmatprep.subr.bf16.mxu0 0
        %2119 = vmatpush1.bf16.msra.mxu0 0
        %2120 = vmatprep.subr.bf16.mxu0 0
        %2121 = vmatpush1.bf16.msra.mxu0 0
        %2122 = vmatprep.subr.bf16.mxu0 0
        %2123 = vmatpush1.bf16.msra.mxu0 0
        %2124 = vmatprep.subr.bf16.mxu0 0
        %2125 = vmatpush1.bf16.msra.mxu0 0
        %2126 = vmatprep.subr.bf16.mxu0 0
        %2127 = vmatpush1.bf16.msra.mxu0 0
        %2128 = vmatprep.mubr.bf16.mxu0 0
        %2129 = vmatmul.mubr.bf16.gmra.mrb[0].mxu0 %v628
        %v2130 = vpop.f32.mrb[0].mxu0
        %v2131 = vadd.f32 %v2090, %v2130
        %v2132 = vpop.f32.mrb[0].mxu0
        %v2133 = vadd.f32 %v2092, %v2132
        %v2134 = vpop.f32.mrb[0].mxu0
        %v2135 = vpop.f32.mrb[0].mxu0
        %2136 = vdwg.mxu0
        %2137 = vmatprep.subr.bf16.mxu0 %v1546
        %2138 = vmatpush1.bf16.msra.mxu0 %v1545
        %2139 = vmatprep.subr.bf16.mxu0 %v1555
        %2140 = vmatpush1.bf16.msra.mxu0 %v1554
        %2141 = vmatprep.subr.bf16.mxu0 %v1564
        %2142 = vmatpush1.bf16.msra.mxu0 %v1563
        %2143 = vmatprep.subr.bf16.mxu0 %v1573
        %2144 = vmatpush1.bf16.msra.mxu0 %v1572
        %2145 = vmatprep.subr.bf16.mxu0 %v1582
        %2146 = vmatpush1.bf16.msra.mxu0 %v1581
        %2147 = vmatprep.subr.bf16.mxu0 %v1591
        %2148 = vmatpush1.bf16.msra.mxu0 %v1590
        %2149 = vmatprep.subr.bf16.mxu0 %v1600
        %2150 = vmatpush1.bf16.msra.mxu0 %v1599
        %2151 = vmatprep.subr.bf16.mxu0 %v1609
        %2152 = vmatpush1.bf16.msra.mxu0 %v1608
        %2153 = vmatprep.subr.bf16.mxu0 %v1618
        %2154 = vmatpush1.bf16.msra.mxu0 %v1617
        %2155 = vmatprep.subr.bf16.mxu0 %v1627
        %2156 = vmatpush1.bf16.msra.mxu0 %v1626
        %2157 = vmatprep.subr.bf16.mxu0 %v1636
        %2158 = vmatpush1.bf16.msra.mxu0 %v1635
        %2159 = vmatprep.subr.bf16.mxu0 %v1645
        %2160 = vmatpush1.bf16.msra.mxu0 %v1644
        %2161 = vmatprep.subr.bf16.mxu0 %v1654
        %2162 = vmatpush1.bf16.msra.mxu0 %v1653
        %2163 = vmatprep.subr.bf16.mxu0 %v1663
        %2164 = vmatpush1.bf16.msra.mxu0 %v1662
        %2165 = vmatprep.subr.bf16.mxu0 %v1672
        %2166 = vmatpush1.bf16.msra.mxu0 %v1671
        %2167 = vmatprep.subr.bf16.mxu0 %v1681
        %2168 = vmatpush1.bf16.msra.mxu0 %v1680
        %2169 = vmatprep.mubr.bf16.mxu0 %v627
        %2170 = vmatmul.mubr.bf16.gmra.mrb[0].mxu0 %v626
        %v2171 = vpop.f32.mrb[0].mxu0
        %v2172 = vadd.f32 0.0, %v2171
        %v2173 = vpop.f32.mrb[0].mxu0
        %v2174 = vadd.f32 0.0, %v2173
        %v2175 = vpop.f32.mrb[0].mxu0
        %v2176 = vpop.f32.mrb[0].mxu0
        %2177 = vdwg.mxu0
        %2178 = vmatprep.subr.bf16.mxu0 %v1690
        %2179 = vmatpush1.bf16.msra.mxu0 %v1689
        %2180 = vmatprep.subr.bf16.mxu0 %v1699
        %2181 = vmatpush1.bf16.msra.mxu0 %v1698
        %2182 = vmatprep.subr.bf16.mxu0 %v1708
        %2183 = vmatpush1.bf16.msra.mxu0 %v1707
        %2184 = vmatprep.subr.bf16.mxu0 %v1717
        %2185 = vmatpush1.bf16.msra.mxu0 %v1716
        %2186 = vmatprep.subr.bf16.mxu0 %v1726
        %2187 = vmatpush1.bf16.msra.mxu0 %v1725
        %2188 = vmatprep.subr.bf16.mxu0 %v1735
        %2189 = vmatpush1.bf16.msra.mxu0 %v1734
        %2190 = vmatprep.subr.bf16.mxu0 %v1744
        %2191 = vmatpush1.bf16.msra.mxu0 %v1743
        %2192 = vmatprep.subr.bf16.mxu0 %v1753
        %2193 = vmatpush1.bf16.msra.mxu0 %v1752
        %2194 = vmatprep.subr.bf16.mxu0 0
        %2195 = vmatpush1.bf16.msra.mxu0 0
        %2196 = vmatprep.subr.bf16.mxu0 0
        %2197 = vmatpush1.bf16.msra.mxu0 0
        %2198 = vmatprep.subr.bf16.mxu0 0
        %2199 = vmatpush1.bf16.msra.mxu0 0
        %2200 = vmatprep.subr.bf16.mxu0 0
        %2201 = vmatpush1.bf16.msra.mxu0 0
        %2202 = vmatprep.subr.bf16.mxu0 0
        %2203 = vmatpush1.bf16.msra.mxu0 0
        %2204 = vmatprep.subr.bf16.mxu0 0
        %2205 = vmatpush1.bf16.msra.mxu0 0
        %2206 = vmatprep.subr.bf16.mxu0 0
        %2207 = vmatpush1.bf16.msra.mxu0 0
        %2208 = vmatprep.subr.bf16.mxu0 0
        %2209 = vmatpush1.bf16.msra.mxu0 0
        %2210 = vmatprep.mubr.bf16.mxu0 0
        %2211 = vmatmul.mubr.bf16.gmra.mrb[0].mxu0 %v628
        %v2212 = vpop.f32.mrb[0].mxu0
        %v2213 = vadd.f32 %v2172, %v2212
        %v2214 = vpop.f32.mrb[0].mxu0
        %v2215 = vadd.f32 %v2174, %v2214
        %v2216 = vpop.f32.mrb[0].mxu0
        %v2217 = vpop.f32.mrb[0].mxu0
        %2218 = vdwg.mxu0
        %2219 = vmatprep.subr.bf16.mxu0 %v1548
        %2220 = vmatpush1.bf16.msra.mxu0 %v1547
        %2221 = vmatprep.subr.bf16.mxu0 %v1557
        %2222 = vmatpush1.bf16.msra.mxu0 %v1556
        %2223 = vmatprep.subr.bf16.mxu0 %v1566
        %2224 = vmatpush1.bf16.msra.mxu0 %v1565
        %2225 = vmatprep.subr.bf16.mxu0 %v1575
        %2226 = vmatpush1.bf16.msra.mxu0 %v1574
        %2227 = vmatprep.subr.bf16.mxu0 %v1584
        %2228 = vmatpush1.bf16.msra.mxu0 %v1583
        %2229 = vmatprep.subr.bf16.mxu0 %v1593
        %2230 = vmatpush1.bf16.msra.mxu0 %v1592
        %2231 = vmatprep.subr.bf16.mxu0 %v1602
        %2232 = vmatpush1.bf16.msra.mxu0 %v1601
        %2233 = vmatprep.subr.bf16.mxu0 %v1611
        %2234 = vmatpush1.bf16.msra.mxu0 %v1610
        %2235 = vmatprep.subr.bf16.mxu0 %v1620
        %2236 = vmatpush1.bf16.msra.mxu0 %v1619
        %2237 = vmatprep.subr.bf16.mxu0 %v1629
        %2238 = vmatpush1.bf16.msra.mxu0 %v1628
        %2239 = vmatprep.subr.bf16.mxu0 %v1638
        %2240 = vmatpush1.bf16.msra.mxu0 %v1637
        %2241 = vmatprep.subr.bf16.mxu0 %v1647
        %2242 = vmatpush1.bf16.msra.mxu0 %v1646
        %2243 = vmatprep.subr.bf16.mxu0 %v1656
        %2244 = vmatpush1.bf16.msra.mxu0 %v1655
        %2245 = vmatprep.subr.bf16.mxu0 %v1665
        %2246 = vmatpush1.bf16.msra.mxu0 %v1664
        %2247 = vmatprep.subr.bf16.mxu0 %v1674
        %2248 = vmatpush1.bf16.msra.mxu0 %v1673
        %2249 = vmatprep.subr.bf16.mxu0 %v1683
        %2250 = vmatpush1.bf16.msra.mxu0 %v1682
        %2251 = vmatprep.mubr.bf16.mxu0 %v627
        %2252 = vmatmul.mubr.bf16.gmra.mrb[0].mxu0 %v626
        %v2253 = vpop.f32.mrb[0].mxu0
        %v2254 = vadd.f32 0.0, %v2253
        %v2255 = vpop.f32.mrb[0].mxu0
        %v2256 = vadd.f32 0.0, %v2255
        %v2257 = vpop.f32.mrb[0].mxu0
        %v2258 = vpop.f32.mrb[0].mxu0
        %2259 = vdwg.mxu0
        %2260 = vmatprep.subr.bf16.mxu0 %v1692
        %2261 = vmatpush1.bf16.msra.mxu0 %v1691
        %2262 = vmatprep.subr.bf16.mxu0 %v1701
        %2263 = vmatpush1.bf16.msra.mxu0 %v1700
        %2264 = vmatprep.subr.bf16.mxu0 %v1710
        %2265 = vmatpush1.bf16.msra.mxu0 %v1709
        %2266 = vmatprep.subr.bf16.mxu0 %v1719
        %2267 = vmatpush1.bf16.msra.mxu0 %v1718
        %2268 = vmatprep.subr.bf16.mxu0 %v1728
        %2269 = vmatpush1.bf16.msra.mxu0 %v1727
        %2270 = vmatprep.subr.bf16.mxu0 %v1737
        %2271 = vmatpush1.bf16.msra.mxu0 %v1736
        %2272 = vmatprep.subr.bf16.mxu0 %v1746
        %2273 = vmatpush1.bf16.msra.mxu0 %v1745
        %2274 = vmatprep.subr.bf16.mxu0 %v1755
        %2275 = vmatpush1.bf16.msra.mxu0 %v1754
        %2276 = vmatprep.subr.bf16.mxu0 0
        %2277 = vmatpush1.bf16.msra.mxu0 0
        %2278 = vmatprep.subr.bf16.mxu0 0
        %2279 = vmatpush1.bf16.msra.mxu0 0
        %2280 = vmatprep.subr.bf16.mxu0 0
        %2281 = vmatpush1.bf16.msra.mxu0 0
        %2282 = vmatprep.subr.bf16.mxu0 0
        %2283 = vmatpush1.bf16.msra.mxu0 0
        %2284 = vmatprep.subr.bf16.mxu0 0
        %2285 = vmatpush1.bf16.msra.mxu0 0
        %2286 = vmatprep.subr.bf16.mxu0 0
        %2287 = vmatpush1.bf16.msra.mxu0 0
        %2288 = vmatprep.subr.bf16.mxu0 0
        %2289 = vmatpush1.bf16.msra.mxu0 0
        %2290 = vmatprep.subr.bf16.mxu0 0
        %2291 = vmatpush1.bf16.msra.mxu0 0
        %2292 = vmatprep.mubr.bf16.mxu0 0
        %2293 = vmatmul.mubr.bf16.gmra.mrb[0].mxu0 %v628
        %v2294 = vpop.f32.mrb[0].mxu0
        %v2295 = vadd.f32 %v2254, %v2294
        %v2296 = vpop.f32.mrb[0].mxu0
        %v2297 = vadd.f32 %v2256, %v2296
        %v2298 = vpop.f32.mrb[0].mxu0
        %v2299 = vpop.f32.mrb[0].mxu0
        %2300 = vdwg.mxu0
        %2301 = vmatprep.subr.bf16.mxu0 0
        %2302 = vmatpush1.bf16.msra.mxu0 %v1549
        %2303 = vmatprep.subr.bf16.mxu0 0
        %2304 = vmatpush1.bf16.msra.mxu0 %v1558
        %2305 = vmatprep.subr.bf16.mxu0 0
        %2306 = vmatpush1.bf16.msra.mxu0 %v1567
        %2307 = vmatprep.subr.bf16.mxu0 0
        %2308 = vmatpush1.bf16.msra.mxu0 %v1576
        %2309 = vmatprep.subr.bf16.mxu0 0
        %2310 = vmatpush1.bf16.msra.mxu0 %v1585
        %2311 = vmatprep.subr.bf16.mxu0 0
        %2312 = vmatpush1.bf16.msra.mxu0 %v1594
        %2313 = vmatprep.subr.bf16.mxu0 0
        %2314 = vmatpush1.bf16.msra.mxu0 %v1603
        %2315 = vmatprep.subr.bf16.mxu0 0
        %2316 = vmatpush1.bf16.msra.mxu0 %v1612
        %2317 = vmatprep.subr.bf16.mxu0 0
        %2318 = vmatpush1.bf16.msra.mxu0 %v1621
        %2319 = vmatprep.subr.bf16.mxu0 0
        %2320 = vmatpush1.bf16.msra.mxu0 %v1630
        %2321 = vmatprep.subr.bf16.mxu0 0
        %2322 = vmatpush1.bf16.msra.mxu0 %v1639
        %2323 = vmatprep.subr.bf16.mxu0 0
        %2324 = vmatpush1.bf16.msra.mxu0 %v1648
        %2325 = vmatprep.subr.bf16.mxu0 0
        %2326 = vmatpush1.bf16.msra.mxu0 %v1657
        %2327 = vmatprep.subr.bf16.mxu0 0
        %2328 = vmatpush1.bf16.msra.mxu0 %v1666
        %2329 = vmatprep.subr.bf16.mxu0 0
        %2330 = vmatpush1.bf16.msra.mxu0 %v1675
        %2331 = vmatprep.subr.bf16.mxu0 0
        %2332 = vmatpush1.bf16.msra.mxu0 %v1684
        %2333 = vmatprep.mubr.bf16.mxu0 %v627
        %2334 = vmatmul.mubr.bf16.gmra.mrb[0].mxu0 %v626
        %v2335 = vpop.f32.mrb[0].mxu0
        %v2336 = vadd.f32 0.0, %v2335
        %v2337 = vpop.f32.mrb[0].mxu0
        %v2338 = vpop.f32.mrb[0].mxu0
        %v2339 = vpop.f32.mrb[0].mxu0
        %2340 = vdwg.mxu0
        %2341 = vmatprep.subr.bf16.mxu0 0
        %2342 = vmatpush1.bf16.msra.mxu0 %v1693
        %2343 = vmatprep.subr.bf16.mxu0 0
        %2344 = vmatpush1.bf16.msra.mxu0 %v1702
        %2345 = vmatprep.subr.bf16.mxu0 0
        %2346 = vmatpush1.bf16.msra.mxu0 %v1711
        %2347 = vmatprep.subr.bf16.mxu0 0
        %2348 = vmatpush1.bf16.msra.mxu0 %v1720
        %2349 = vmatprep.subr.bf16.mxu0 0
        %2350 = vmatpush1.bf16.msra.mxu0 %v1729
        %2351 = vmatprep.subr.bf16.mxu0 0
        %2352 = vmatpush1.bf16.msra.mxu0 %v1738
        %2353 = vmatprep.subr.bf16.mxu0 0
        %2354 = vmatpush1.bf16.msra.mxu0 %v1747
        %2355 = vmatprep.subr.bf16.mxu0 0
        %2356 = vmatpush1.bf16.msra.mxu0 %v1756
        %2357 = vmatprep.subr.bf16.mxu0 0
        %2358 = vmatpush1.bf16.msra.mxu0 0
        %2359 = vmatprep.subr.bf16.mxu0 0
        %2360 = vmatpush1.bf16.msra.mxu0 0
        %2361 = vmatprep.subr.bf16.mxu0 0
        %2362 = vmatpush1.bf16.msra.mxu0 0
        %2363 = vmatprep.subr.bf16.mxu0 0
        %2364 = vmatpush1.bf16.msra.mxu0 0
        %2365 = vmatprep.subr.bf16.mxu0 0
        %2366 = vmatpush1.bf16.msra.mxu0 0
        %2367 = vmatprep.subr.bf16.mxu0 0
        %2368 = vmatpush1.bf16.msra.mxu0 0
        %2369 = vmatprep.subr.bf16.mxu0 0
        %2370 = vmatpush1.bf16.msra.mxu0 0
        %2371 = vmatprep.subr.bf16.mxu0 0
        %2372 = vmatpush1.bf16.msra.mxu0 0
        %2373 = vmatprep.mubr.bf16.mxu0 0
        %2374 = vmatmul.mubr.bf16.gmra.mrb[0].mxu0 %v628
        %v2375 = vpop.f32.mrb[0].mxu0
        %v2376 = vadd.f32 %v2336, %v2375
        %v2377 = vpop.f32.mrb[0].mxu0
        %v2378 = vpop.f32.mrb[0].mxu0
        %v2379 = vpop.f32.mrb[0].mxu0
        %2380 = vdwg.mxu0
        %v2381 = vpack.c.bf16 %v2049, %v2049
        %v2382 = vpack.c.bf16 %v2051, %v2051
        %v2383 = vpack.c.bf16 %v2131, %v2131
        %2385 = vrot.lane.b32.xlu0 %v2381, 80
        %v2386 = vpop.permute.xlu0 %2385
        %2388 = vrot.lane.b32.xlu0 %v2381, 32
        %v2389 = vpop.permute.xlu0 %2388
        %2390 = vrot.lane.b32.xlu0 %v2382, 32
        %v2391 = vpop.permute.xlu0 %2390
        %vm2392 = vcmask 261120
        %v2393 = vsel %vm2392, %v2389, %v2391
        %2394 = vrot.lane.b32.xlu0 %v2382, 112
        %v2395 = vpop.permute.xlu0 %2394
        %2396 = vrot.lane.b32.xlu0 %v2382, 64
        %v2397 = vpop.permute.xlu0 %2396
        %2399 = vrot.lane.b32.xlu0 %v2382, 16
        %v2400 = vpop.permute.xlu0 %2399
        %2401 = vrot.lane.b32.xlu0 %v2383, 16
        %v2402 = vpop.permute.xlu0 %2401
        %vm2403 = vcmask 130048
        %v2404 = vsel %vm2403, %v2400, %v2402
        %2405 = vrot.lane.b32.xlu0 %v2383, 96
        %v2406 = vpop.permute.xlu0 %2405
        %2407 = vrot.lane.b32.xlu0 %v2383, 48
        %v2408 = vpop.permute.xlu0 %2407
        %v2409 = vpack.c.bf16 %v2133, %v2133
        %v2410 = vpack.c.bf16 %v2213, %v2213
        %v2411 = vpack.c.bf16 %v2215, %v2215
        %2413 = vrot.lane.b32.xlu0 %v2409, 80
        %v2414 = vpop.permute.xlu0 %2413
        %2416 = vrot.lane.b32.xlu0 %v2409, 32
        %v2417 = vpop.permute.xlu0 %2416
        %2418 = vrot.lane.b32.xlu0 %v2410, 32
        %v2419 = vpop.permute.xlu0 %2418
        %v2420 = vsel %vm2392, %v2417, %v2419
        %2421 = vrot.lane.b32.xlu0 %v2410, 112
        %v2422 = vpop.permute.xlu0 %2421
        %2423 = vrot.lane.b32.xlu0 %v2410, 64
        %v2424 = vpop.permute.xlu0 %2423
        %2426 = vrot.lane.b32.xlu0 %v2410, 16
        %v2427 = vpop.permute.xlu0 %2426
        %2428 = vrot.lane.b32.xlu0 %v2411, 16
        %v2429 = vpop.permute.xlu0 %2428
        %v2430 = vsel %vm2403, %v2427, %v2429
        %2431 = vrot.lane.b32.xlu0 %v2411, 96
        %v2432 = vpop.permute.xlu0 %2431
        %2433 = vrot.lane.b32.xlu0 %v2411, 48
        %v2434 = vpop.permute.xlu0 %2433
        %v2435 = vpack.c.bf16 %v2295, %v2295
        %v2436 = vpack.c.bf16 %v2297, %v2297
        %v2437 = vpack.c.bf16 %v2376, %v2376
        %2439 = vrot.lane.b32.xlu0 %v2435, 80
        %v2440 = vpop.permute.xlu0 %2439
        %2442 = vrot.lane.b32.xlu0 %v2435, 32
        %v2443 = vpop.permute.xlu0 %2442
        %2444 = vrot.lane.b32.xlu0 %v2436, 32
        %v2445 = vpop.permute.xlu0 %2444
        %v2446 = vsel %vm2392, %v2443, %v2445
        %2447 = vrot.lane.b32.xlu0 %v2436, 112
        %v2448 = vpop.permute.xlu0 %2447
        %2449 = vrot.lane.b32.xlu0 %v2436, 64
        %v2450 = vpop.permute.xlu0 %2449
        %2452 = vrot.lane.b32.xlu0 %v2436, 16
        %v2453 = vpop.permute.xlu0 %2452
        %2454 = vrot.lane.b32.xlu0 %v2437, 16
        %v2455 = vpop.permute.xlu0 %2454
        %v2456 = vsel %vm2403, %v2453, %v2455
        %2457 = vrot.lane.b32.xlu0 %v2437, 96
        %v2458 = vpop.permute.xlu0 %2457
        %2459 = vrot.lane.b32.xlu0 %v2437, 48
        %v2460 = vpop.permute.xlu0 %2459
        %vm2461 = vcmask 392192
        %v2463 = vsel %vm2461, %v2381, 0
        %v2466 = vsel %vm2461, %v2409, 0
        %2468 = vmatprep.subr.bf16.mxu0 0
        %2469 = vmatpush1.bf16.xpose.msra.mxu0 %v2466
        %2470 = vmatprep.subr.bf16.mxu0 0
        %2471 = vmatpush1.bf16.xpose.msra.mxu0 0
        %2472 = vmatprep.subr.bf16.mxu0 0
        %2473 = vmatpush1.bf16.xpose.msra.mxu0 0
        %2474 = vmatprep.subr.bf16.mxu0 0
        %2475 = vmatpush1.bf16.xpose.msra.mxu0 0
        %2476 = vmatprep.subr.bf16.mxu0 0
        %2477 = vmatpush1.bf16.xpose.msra.mxu0 0
        %2478 = vmatprep.subr.bf16.mxu0 0
        %2479 = vmatpush1.bf16.xpose.msra.mxu0 0
        %2480 = vmatprep.subr.bf16.mxu0 0
        %2481 = vmatpush1.bf16.xpose.msra.mxu0 0
        %2482 = vmatprep.subr.bf16.mxu0 0
        %2483 = vmatpush1.bf16.xpose.msra.mxu0 0
        %2484 = vmatprep.subr.bf16.mxu0 0
        %2485 = vmatpush1.bf16.xpose.msra.mxu0 0
        %2486 = vmatprep.subr.bf16.mxu0 0
        %2487 = vmatpush1.bf16.xpose.msra.mxu0 0
        %2488 = vmatprep.subr.bf16.mxu0 0
        %2489 = vmatpush1.bf16.xpose.msra.mxu0 0
        %2490 = vmatprep.subr.bf16.mxu0 0
        %2491 = vmatpush1.bf16.xpose.msra.mxu0 0
        %2492 = vmatprep.subr.bf16.mxu0 0
        %2493 = vmatpush1.bf16.xpose.msra.mxu0 0
        %2494 = vmatprep.subr.bf16.mxu0 0
        %2495 = vmatpush1.bf16.xpose.msra.mxu0 0
        %2496 = vmatprep.subr.bf16.mxu0 0
        %2497 = vmatpush1.bf16.xpose.msra.mxu0 0
        %2498 = vmatprep.subr.bf16.mxu0 0
        %2499 = vmatpush1.bf16.xpose.msra.mxu0 0
        %2500 = vmatprep.mubr.bf16.mxu0 0
        %2501 = vmatmul.mubr.bf16.gmra.mrb[0].mxu0 %v2463
        %v2502 = vpop.f32.mrb[0].mxu0
        %v2503 = vadd.f32 0.0, %v2502
        %v2504 = vpop.f32.mrb[0].mxu0
        %v2505 = vpop.f32.mrb[0].mxu0
        %v2506 = vpop.f32.mrb[0].mxu0
        %2507 = vdwg.mxu0
        %v2509 = vsel %vm2461, %v2386, 0
        %v2512 = vsel %vm2461, %v2414, 0
        %2514 = vmatprep.subr.bf16.mxu0 0
        %2515 = vmatpush1.bf16.xpose.msra.mxu0 %v2512
        %2516 = vmatprep.subr.bf16.mxu0 0
        %2517 = vmatpush1.bf16.xpose.msra.mxu0 0
        %2518 = vmatprep.subr.bf16.mxu0 0
        %2519 = vmatpush1.bf16.xpose.msra.mxu0 0
        %2520 = vmatprep.subr.bf16.mxu0 0
        %2521 = vmatpush1.bf16.xpose.msra.mxu0 0
        %2522 = vmatprep.subr.bf16.mxu0 0
        %2523 = vmatpush1.bf16.xpose.msra.mxu0 0
        %2524 = vmatprep.subr.bf16.mxu0 0
        %2525 = vmatpush1.bf16.xpose.msra.mxu0 0
        %2526 = vmatprep.subr.bf16.mxu0 0
        %2527 = vmatpush1.bf16.xpose.msra.mxu0 0
        %2528 = vmatprep.subr.bf16.mxu0 0
        %2529 = vmatpush1.bf16.xpose.msra.mxu0 0
        %2530 = vmatprep.subr.bf16.mxu0 0
        %2531 = vmatpush1.bf16.xpose.msra.mxu0 0
        %2532 = vmatprep.subr.bf16.mxu0 0
        %2533 = vmatpush1.bf16.xpose.msra.mxu0 0
        %2534 = vmatprep.subr.bf16.mxu0 0
        %2535 = vmatpush1.bf16.xpose.msra.mxu0 0
        %2536 = vmatprep.subr.bf16.mxu0 0
        %2537 = vmatpush1.bf16.xpose.msra.mxu0 0
        %2538 = vmatprep.subr.bf16.mxu0 0
        %2539 = vmatpush1.bf16.xpose.msra.mxu0 0
        %2540 = vmatprep.subr.bf16.mxu0 0
        %2541 = vmatpush1.bf16.xpose.msra.mxu0 0
        %2542 = vmatprep.subr.bf16.mxu0 0
        %2543 = vmatpush1.bf16.xpose.msra.mxu0 0
        %2544 = vmatprep.subr.bf16.mxu0 0
        %2545 = vmatpush1.bf16.xpose.msra.mxu0 0
        %2546 = vmatprep.mubr.bf16.mxu0 0
        %2547 = vmatmul.mubr.bf16.gmra.mrb[0].mxu0 %v2509
        %v2548 = vpop.f32.mrb[0].mxu0
        %v2549 = vadd.f32 0.0, %v2548
        %v2550 = vpop.f32.mrb[0].mxu0
        %v2551 = vpop.f32.mrb[0].mxu0
        %v2552 = vpop.f32.mrb[0].mxu0
        %2553 = vdwg.mxu0
        %v2555 = vsel %vm2461, %v2393, 0
        %v2558 = vsel %vm2461, %v2420, 0
        %2560 = vmatprep.subr.bf16.mxu0 0
        %2561 = vmatpush1.bf16.xpose.msra.mxu0 %v2558
        %2562 = vmatprep.subr.bf16.mxu0 0
        %2563 = vmatpush1.bf16.xpose.msra.mxu0 0
        %2564 = vmatprep.subr.bf16.mxu0 0
        %2565 = vmatpush1.bf16.xpose.msra.mxu0 0
        %2566 = vmatprep.subr.bf16.mxu0 0
        %2567 = vmatpush1.bf16.xpose.msra.mxu0 0
        %2568 = vmatprep.subr.bf16.mxu0 0
        %2569 = vmatpush1.bf16.xpose.msra.mxu0 0
        %2570 = vmatprep.subr.bf16.mxu0 0
        %2571 = vmatpush1.bf16.xpose.msra.mxu0 0
        %2572 = vmatprep.subr.bf16.mxu0 0
        %2573 = vmatpush1.bf16.xpose.msra.mxu0 0
        %2574 = vmatprep.subr.bf16.mxu0 0
        %2575 = vmatpush1.bf16.xpose.msra.mxu0 0
        %2576 = vmatprep.subr.bf16.mxu0 0
        %2577 = vmatpush1.bf16.xpose.msra.mxu0 0
        %2578 = vmatprep.subr.bf16.mxu0 0
        %2579 = vmatpush1.bf16.xpose.msra.mxu0 0
        %2580 = vmatprep.subr.bf16.mxu0 0
        %2581 = vmatpush1.bf16.xpose.msra.mxu0 0
        %2582 = vmatprep.subr.bf16.mxu0 0
        %2583 = vmatpush1.bf16.xpose.msra.mxu0 0
        %2584 = vmatprep.subr.bf16.mxu0 0
        %2585 = vmatpush1.bf16.xpose.msra.mxu0 0
        %2586 = vmatprep.subr.bf16.mxu0 0
        %2587 = vmatpush1.bf16.xpose.msra.mxu0 0
        %2588 = vmatprep.subr.bf16.mxu0 0
        %2589 = vmatpush1.bf16.xpose.msra.mxu0 0
        %2590 = vmatprep.subr.bf16.mxu0 0
        %2591 = vmatpush1.bf16.xpose.msra.mxu0 0
        %2592 = vmatprep.mubr.bf16.mxu0 0
        %2593 = vmatmul.mubr.bf16.gmra.mrb[0].mxu0 %v2555
        %v2594 = vpop.f32.mrb[0].mxu0
        %v2595 = vadd.f32 0.0, %v2594
        %v2596 = vpop.f32.mrb[0].mxu0
        %v2597 = vpop.f32.mrb[0].mxu0
        %v2598 = vpop.f32.mrb[0].mxu0
        %2599 = vdwg.mxu0
        %v2601 = vsel %vm2461, %v2395, 0
        %v2604 = vsel %vm2461, %v2422, 0
        %2606 = vmatprep.subr.bf16.mxu0 0
        %2607 = vmatpush1.bf16.xpose.msra.mxu0 %v2604
        %2608 = vmatprep.subr.bf16.mxu0 0
        %2609 = vmatpush1.bf16.xpose.msra.mxu0 0
        %2610 = vmatprep.subr.bf16.mxu0 0
        %2611 = vmatpush1.bf16.xpose.msra.mxu0 0
        %2612 = vmatprep.subr.bf16.mxu0 0
        %2613 = vmatpush1.bf16.xpose.msra.mxu0 0
        %2614 = vmatprep.subr.bf16.mxu0 0
        %2615 = vmatpush1.bf16.xpose.msra.mxu0 0
        %2616 = vmatprep.subr.bf16.mxu0 0
        %2617 = vmatpush1.bf16.xpose.msra.mxu0 0
        %2618 = vmatprep.subr.bf16.mxu0 0
        %2619 = vmatpush1.bf16.xpose.msra.mxu0 0
        %2620 = vmatprep.subr.bf16.mxu0 0
        %2621 = vmatpush1.bf16.xpose.msra.mxu0 0
        %2622 = vmatprep.subr.bf16.mxu0 0
        %2623 = vmatpush1.bf16.xpose.msra.mxu0 0
        %2624 = vmatprep.subr.bf16.mxu0 0
        %2625 = vmatpush1.bf16.xpose.msra.mxu0 0
        %2626 = vmatprep.subr.bf16.mxu0 0
        %2627 = vmatpush1.bf16.xpose.msra.mxu0 0
        %2628 = vmatprep.subr.bf16.mxu0 0
        %2629 = vmatpush1.bf16.xpose.msra.mxu0 0
        %2630 = vmatprep.subr.bf16.mxu0 0
        %2631 = vmatpush1.bf16.xpose.msra.mxu0 0
        %2632 = vmatprep.subr.bf16.mxu0 0
        %2633 = vmatpush1.bf16.xpose.msra.mxu0 0
        %2634 = vmatprep.subr.bf16.mxu0 0
        %2635 = vmatpush1.bf16.xpose.msra.mxu0 0
        %2636 = vmatprep.subr.bf16.mxu0 0
        %2637 = vmatpush1.bf16.xpose.msra.mxu0 0
        %2638 = vmatprep.mubr.bf16.mxu0 0
        %2639 = vmatmul.mubr.bf16.gmra.mrb[0].mxu0 %v2601
        %v2640 = vpop.f32.mrb[0].mxu0
        %v2641 = vadd.f32 0.0, %v2640
        %v2642 = vpop.f32.mrb[0].mxu0
        %v2643 = vpop.f32.mrb[0].mxu0
        %v2644 = vpop.f32.mrb[0].mxu0
        %2645 = vdwg.mxu0
        %v2647 = vsel %vm2461, %v2397, 0
        %v2650 = vsel %vm2461, %v2424, 0
        %2652 = vmatprep.subr.bf16.mxu0 0
        %2653 = vmatpush1.bf16.xpose.msra.mxu0 %v2650
        %2654 = vmatprep.subr.bf16.mxu0 0
        %2655 = vmatpush1.bf16.xpose.msra.mxu0 0
        %2656 = vmatprep.subr.bf16.mxu0 0
        %2657 = vmatpush1.bf16.xpose.msra.mxu0 0
        %2658 = vmatprep.subr.bf16.mxu0 0
        %2659 = vmatpush1.bf16.xpose.msra.mxu0 0
        %2660 = vmatprep.subr.bf16.mxu0 0
        %2661 = vmatpush1.bf16.xpose.msra.mxu0 0
        %2662 = vmatprep.subr.bf16.mxu0 0
        %2663 = vmatpush1.bf16.xpose.msra.mxu0 0
        %2664 = vmatprep.subr.bf16.mxu0 0
        %2665 = vmatpush1.bf16.xpose.msra.mxu0 0
        %2666 = vmatprep.subr.bf16.mxu0 0
        %2667 = vmatpush1.bf16.xpose.msra.mxu0 0
        %2668 = vmatprep.subr.bf16.mxu0 0
        %2669 = vmatpush1.bf16.xpose.msra.mxu0 0
        %2670 = vmatprep.subr.bf16.mxu0 0
        %2671 = vmatpush1.bf16.xpose.msra.mxu0 0
        %2672 = vmatprep.subr.bf16.mxu0 0
        %2673 = vmatpush1.bf16.xpose.msra.mxu0 0
        %2674 = vmatprep.subr.bf16.mxu0 0
        %2675 = vmatpush1.bf16.xpose.msra.mxu0 0
        %2676 = vmatprep.subr.bf16.mxu0 0
        %2677 = vmatpush1.bf16.xpose.msra.mxu0 0
        %2678 = vmatprep.subr.bf16.mxu0 0
        %2679 = vmatpush1.bf16.xpose.msra.mxu0 0
        %2680 = vmatprep.subr.bf16.mxu0 0
        %2681 = vmatpush1.bf16.xpose.msra.mxu0 0
        %2682 = vmatprep.subr.bf16.mxu0 0
        %2683 = vmatpush1.bf16.xpose.msra.mxu0 0
        %2684 = vmatprep.mubr.bf16.mxu0 0
        %2685 = vmatmul.mubr.bf16.gmra.mrb[0].mxu0 %v2647
        %v2686 = vpop.f32.mrb[0].mxu0
        %v2687 = vadd.f32 0.0, %v2686
        %v2688 = vpop.f32.mrb[0].mxu0
        %v2689 = vpop.f32.mrb[0].mxu0
        %v2690 = vpop.f32.mrb[0].mxu0
        %2691 = vdwg.mxu0
        %v2693 = vsel %vm2461, %v2404, 0
        %v2696 = vsel %vm2461, %v2430, 0
        %2698 = vmatprep.subr.bf16.mxu0 0
        %2699 = vmatpush1.bf16.xpose.msra.mxu0 %v2696
        %2700 = vmatprep.subr.bf16.mxu0 0
        %2701 = vmatpush1.bf16.xpose.msra.mxu0 0
        %2702 = vmatprep.subr.bf16.mxu0 0
        %2703 = vmatpush1.bf16.xpose.msra.mxu0 0
        %2704 = vmatprep.subr.bf16.mxu0 0
        %2705 = vmatpush1.bf16.xpose.msra.mxu0 0
        %2706 = vmatprep.subr.bf16.mxu0 0
        %2707 = vmatpush1.bf16.xpose.msra.mxu0 0
        %2708 = vmatprep.subr.bf16.mxu0 0
        %2709 = vmatpush1.bf16.xpose.msra.mxu0 0
        %2710 = vmatprep.subr.bf16.mxu0 0
        %2711 = vmatpush1.bf16.xpose.msra.mxu0 0
        %2712 = vmatprep.subr.bf16.mxu0 0
        %2713 = vmatpush1.bf16.xpose.msra.mxu0 0
        %2714 = vmatprep.subr.bf16.mxu0 0
        %2715 = vmatpush1.bf16.xpose.msra.mxu0 0
        %2716 = vmatprep.subr.bf16.mxu0 0
        %2717 = vmatpush1.bf16.xpose.msra.mxu0 0
        %2718 = vmatprep.subr.bf16.mxu0 0
        %2719 = vmatpush1.bf16.xpose.msra.mxu0 0
        %2720 = vmatprep.subr.bf16.mxu0 0
        %2721 = vmatpush1.bf16.xpose.msra.mxu0 0
        %2722 = vmatprep.subr.bf16.mxu0 0
        %2723 = vmatpush1.bf16.xpose.msra.mxu0 0
        %2724 = vmatprep.subr.bf16.mxu0 0
        %2725 = vmatpush1.bf16.xpose.msra.mxu0 0
        %2726 = vmatprep.subr.bf16.mxu0 0
        %2727 = vmatpush1.bf16.xpose.msra.mxu0 0
        %2728 = vmatprep.subr.bf16.mxu0 0
        %2729 = vmatpush1.bf16.xpose.msra.mxu0 0
        %2730 = vmatprep.mubr.bf16.mxu0 0
        %2731 = vmatmul.mubr.bf16.gmra.mrb[0].mxu0 %v2693
        %v2732 = vpop.f32.mrb[0].mxu0
        %v2733 = vadd.f32 0.0, %v2732
        %v2734 = vpop.f32.mrb[0].mxu0
        %v2735 = vpop.f32.mrb[0].mxu0
        %v2736 = vpop.f32.mrb[0].mxu0
        %2737 = vdwg.mxu0
        %v2739 = vsel %vm2461, %v2406, 0
        %v2742 = vsel %vm2461, %v2432, 0
        %2744 = vmatprep.subr.bf16.mxu0 0
        %2745 = vmatpush1.bf16.xpose.msra.mxu0 %v2742
        %2746 = vmatprep.subr.bf16.mxu0 0
        %2747 = vmatpush1.bf16.xpose.msra.mxu0 0
        %2748 = vmatprep.subr.bf16.mxu0 0
        %2749 = vmatpush1.bf16.xpose.msra.mxu0 0
        %2750 = vmatprep.subr.bf16.mxu0 0
        %2751 = vmatpush1.bf16.xpose.msra.mxu0 0
        %2752 = vmatprep.subr.bf16.mxu0 0
        %2753 = vmatpush1.bf16.xpose.msra.mxu0 0
        %2754 = vmatprep.subr.bf16.mxu0 0
        %2755 = vmatpush1.bf16.xpose.msra.mxu0 0
        %2756 = vmatprep.subr.bf16.mxu0 0
        %2757 = vmatpush1.bf16.xpose.msra.mxu0 0
        %2758 = vmatprep.subr.bf16.mxu0 0
        %2759 = vmatpush1.bf16.xpose.msra.mxu0 0
        %2760 = vmatprep.subr.bf16.mxu0 0
        %2761 = vmatpush1.bf16.xpose.msra.mxu0 0
        %2762 = vmatprep.subr.bf16.mxu0 0
        %2763 = vmatpush1.bf16.xpose.msra.mxu0 0
        %2764 = vmatprep.subr.bf16.mxu0 0
        %2765 = vmatpush1.bf16.xpose.msra.mxu0 0
        %2766 = vmatprep.subr.bf16.mxu0 0
        %2767 = vmatpush1.bf16.xpose.msra.mxu0 0
        %2768 = vmatprep.subr.bf16.mxu0 0
        %2769 = vmatpush1.bf16.xpose.msra.mxu0 0
        %2770 = vmatprep.subr.bf16.mxu0 0
        %2771 = vmatpush1.bf16.xpose.msra.mxu0 0
        %2772 = vmatprep.subr.bf16.mxu0 0
        %2773 = vmatpush1.bf16.xpose.msra.mxu0 0
        %2774 = vmatprep.subr.bf16.mxu0 0
        %2775 = vmatpush1.bf16.xpose.msra.mxu0 0
        %2776 = vmatprep.mubr.bf16.mxu0 0
        %2777 = vmatmul.mubr.bf16.gmra.mrb[0].mxu0 %v2739
        %v2778 = vpop.f32.mrb[0].mxu0
        %v2779 = vadd.f32 0.0, %v2778
        %v2780 = vpop.f32.mrb[0].mxu0
        %v2781 = vpop.f32.mrb[0].mxu0
        %v2782 = vpop.f32.mrb[0].mxu0
        %2783 = vdwg.mxu0
        %v2785 = vsel %vm2461, %v2408, 0
        %v2788 = vsel %vm2461, %v2434, 0
        %2790 = vmatprep.subr.bf16.mxu0 0
        %2791 = vmatpush1.bf16.xpose.msra.mxu0 %v2788
        %2792 = vmatprep.subr.bf16.mxu0 0
        %2793 = vmatpush1.bf16.xpose.msra.mxu0 0
        %2794 = vmatprep.subr.bf16.mxu0 0
        %2795 = vmatpush1.bf16.xpose.msra.mxu0 0
        %2796 = vmatprep.subr.bf16.mxu0 0
        %2797 = vmatpush1.bf16.xpose.msra.mxu0 0
        %2798 = vmatprep.subr.bf16.mxu0 0
        %2799 = vmatpush1.bf16.xpose.msra.mxu0 0
        %2800 = vmatprep.subr.bf16.mxu0 0
        %2801 = vmatpush1.bf16.xpose.msra.mxu0 0
        %2802 = vmatprep.subr.bf16.mxu0 0
        %2803 = vmatpush1.bf16.xpose.msra.mxu0 0
        %2804 = vmatprep.subr.bf16.mxu0 0
        %2805 = vmatpush1.bf16.xpose.msra.mxu0 0
        %2806 = vmatprep.subr.bf16.mxu0 0
        %2807 = vmatpush1.bf16.xpose.msra.mxu0 0
        %2808 = vmatprep.subr.bf16.mxu0 0
        %2809 = vmatpush1.bf16.xpose.msra.mxu0 0
        %2810 = vmatprep.subr.bf16.mxu0 0
        %2811 = vmatpush1.bf16.xpose.msra.mxu0 0
        %2812 = vmatprep.subr.bf16.mxu0 0
        %2813 = vmatpush1.bf16.xpose.msra.mxu0 0
        %2814 = vmatprep.subr.bf16.mxu0 0
        %2815 = vmatpush1.bf16.xpose.msra.mxu0 0
        %2816 = vmatprep.subr.bf16.mxu0 0
        %2817 = vmatpush1.bf16.xpose.msra.mxu0 0
        %2818 = vmatprep.subr.bf16.mxu0 0
        %2819 = vmatpush1.bf16.xpose.msra.mxu0 0
        %2820 = vmatprep.subr.bf16.mxu0 0
        %2821 = vmatpush1.bf16.xpose.msra.mxu0 0
        %2822 = vmatprep.mubr.bf16.mxu0 0
        %2823 = vmatmul.mubr.bf16.gmra.mrb[0].mxu0 %v2785
        %v2824 = vpop.f32.mrb[0].mxu0
        %v2825 = vadd.f32 0.0, %v2824
        %v2826 = vpop.f32.mrb[0].mxu0
        %v2827 = vpop.f32.mrb[0].mxu0
        %v2828 = vpop.f32.mrb[0].mxu0
        %2829 = vdwg.mxu0
        %vm2830 = vcmask 36864
        %v2831 = vsel %vm2830, %v2503, -inf
        %2832 = vmax.xlane.f32.xlu0 %v2831
        %v2833 = vpop.xlane.xlu0 %2832
        %v2834 = vsel %vm2830, %v2549, -inf
        %2835 = vmax.xlane.f32.xlu0 %v2834
        %v2836 = vpop.xlane.xlu0 %2835
        %v2837 = vsel %vm2830, %v2595, -inf
        %2838 = vmax.xlane.f32.xlu0 %v2837
        %v2839 = vpop.xlane.xlu0 %2838
        %v2840 = vsel %vm2830, %v2641, -inf
        %2841 = vmax.xlane.f32.xlu0 %v2840
        %v2842 = vpop.xlane.xlu0 %2841
        %v2843 = vsel %vm2830, %v2687, -inf
        %2844 = vmax.xlane.f32.xlu0 %v2843
        %v2845 = vpop.xlane.xlu0 %2844
        %v2846 = vsel %vm2830, %v2733, -inf
        %2847 = vmax.xlane.f32.xlu0 %v2846
        %v2848 = vpop.xlane.xlu0 %2847
        %v2849 = vsel %vm2830, %v2779, -inf
        %2850 = vmax.xlane.f32.xlu0 %v2849
        %v2851 = vpop.xlane.xlu0 %2850
        %v2852 = vsel %vm2830, %v2825, -inf
        %2853 = vmax.xlane.f32.xlu0 %v2852
        %v2854 = vpop.xlane.xlu0 %2853
        %v2855 = vsub.f32 %v2503, %v2833
        %v2856 = vsub.f32 %v2549, %v2836
        %v2857 = vsub.f32 %v2595, %v2839
        %v2858 = vsub.f32 %v2641, %v2842
        %v2859 = vsub.f32 %v2687, %v2845
        %v2860 = vsub.f32 %v2733, %v2848
        %v2861 = vsub.f32 %v2779, %v2851
        %v2862 = vsub.f32 %v2825, %v2854
        %v2863 = vmul.f32 %v2855, 1.442695
        %v2864 = vpow.pop %v2863
        %v2865 = vmul.f32 %v2856, 1.442695
        %v2866 = vpow.pop %v2865
        %v2867 = vmul.f32 %v2857, 1.442695
        %v2868 = vpow.pop %v2867
        %v2869 = vmul.f32 %v2858, 1.442695
        %v2870 = vpow.pop %v2869
        %v2871 = vmul.f32 %v2859, 1.442695
        %v2872 = vpow.pop %v2871
        %v2873 = vmul.f32 %v2860, 1.442695
        %v2874 = vpow.pop %v2873
        %v2875 = vmul.f32 %v2861, 1.442695
        %v2876 = vpow.pop %v2875
        %v2877 = vmul.f32 %v2862, 1.442695
        %v2878 = vpow.pop %v2877
        %v2879 = vsel %vm2830, %v2864, 0.0
        %2880 = vadd.xlane.f32.xlu0 %v2879
        %v2881 = vpop.xlane.xlu0 %2880
        %v2882 = vsel %vm2830, %v2866, 0.0
        %2883 = vadd.xlane.f32.xlu0 %v2882
        %v2884 = vpop.xlane.xlu0 %2883
        %v2885 = vsel %vm2830, %v2868, 0.0
        %2886 = vadd.xlane.f32.xlu0 %v2885
        %v2887 = vpop.xlane.xlu0 %2886
        %v2888 = vsel %vm2830, %v2870, 0.0
        %2889 = vadd.xlane.f32.xlu0 %v2888
        %v2890 = vpop.xlane.xlu0 %2889
        %v2891 = vsel %vm2830, %v2872, 0.0
        %2892 = vadd.xlane.f32.xlu0 %v2891
        %v2893 = vpop.xlane.xlu0 %2892
        %v2894 = vsel %vm2830, %v2874, 0.0
        %2895 = vadd.xlane.f32.xlu0 %v2894
        %v2896 = vpop.xlane.xlu0 %2895
        %v2897 = vsel %vm2830, %v2876, 0.0
        %2898 = vadd.xlane.f32.xlu0 %v2897
        %v2899 = vpop.xlane.xlu0 %2898
        %v2900 = vsel %vm2830, %v2878, 0.0
        %2901 = vadd.xlane.f32.xlu0 %v2900
        %v2902 = vpop.xlane.xlu0 %2901
        %v2903 = vrcp.pop %v2881
        %v2904 = vrcp.pop %v2884
        %v2905 = vrcp.pop %v2887
        %v2906 = vrcp.pop %v2890
        %v2907 = vrcp.pop %v2893
        %v2908 = vrcp.pop %v2896
        %v2909 = vrcp.pop %v2899
        %v2910 = vrcp.pop %v2902
        %v2911 = vmul.f32 %v2864, %v2903
        %v2912 = vmul.f32 %v2866, %v2904
        %v2913 = vmul.f32 %v2868, %v2905
        %v2914 = vmul.f32 %v2870, %v2906
        %v2915 = vmul.f32 %v2872, %v2907
        %v2916 = vmul.f32 %v2874, %v2908
        %v2917 = vmul.f32 %v2876, %v2909
        %v2918 = vmul.f32 %v2878, %v2910
        %v2919 = vpack.c.bf16 %v2911, %v2911
        %v2920 = vpack.c.bf16 %v2912, %v2912
        %v2921 = vpack.c.bf16 %v2913, %v2913
        %v2922 = vpack.c.bf16 %v2914, %v2914
        %v2923 = vpack.c.bf16 %v2915, %v2915
        %v2924 = vpack.c.bf16 %v2916, %v2916
        %v2925 = vpack.c.bf16 %v2917, %v2917
        %v2926 = vpack.c.bf16 %v2918, %v2918
        %vm2927 = vcmask 39936
        %v2929 = vsel %vm2927, %v2919, 0
        %vm2931 = vcmask 1041408
        %vm2932 = vcmask 1042432
        %v2933 = vsel %vm2931, 4294967295, 65535
        %v2934 = vsel %vm2932, %v2933, 0
        %v2936 = vand.u32 %v2435, %v2934
        %2938 = vmatprep.subr.bf16.mxu0 0
        %2939 = vmatpush1.bf16.msra.mxu0 %v2936
        %2940 = vmatprep.subr.bf16.mxu0 0
        %2941 = vmatpush1.bf16.msra.mxu0 0
        %2942 = vmatprep.subr.bf16.mxu0 0
        %2943 = vmatpush1.bf16.msra.mxu0 0
        %2944 = vmatprep.subr.bf16.mxu0 0
        %2945 = vmatpush1.bf16.msra.mxu0 0
        %2946 = vmatprep.subr.bf16.mxu0 0
        %2947 = vmatpush1.bf16.msra.mxu0 0
        %2948 = vmatprep.subr.bf16.mxu0 0
        %2949 = vmatpush1.bf16.msra.mxu0 0
        %2950 = vmatprep.subr.bf16.mxu0 0
        %2951 = vmatpush1.bf16.msra.mxu0 0
        %2952 = vmatprep.subr.bf16.mxu0 0
        %2953 = vmatpush1.bf16.msra.mxu0 0
        %2954 = vmatprep.subr.bf16.mxu0 0
        %2955 = vmatpush1.bf16.msra.mxu0 0
        %2956 = vmatprep.subr.bf16.mxu0 0
        %2957 = vmatpush1.bf16.msra.mxu0 0
        %2958 = vmatprep.subr.bf16.mxu0 0
        %2959 = vmatpush1.bf16.msra.mxu0 0
        %2960 = vmatprep.subr.bf16.mxu0 0
        %2961 = vmatpush1.bf16.msra.mxu0 0
        %2962 = vmatprep.subr.bf16.mxu0 0
        %2963 = vmatpush1.bf16.msra.mxu0 0
        %2964 = vmatprep.subr.bf16.mxu0 0
        %2965 = vmatpush1.bf16.msra.mxu0 0
        %2966 = vmatprep.subr.bf16.mxu0 0
        %2967 = vmatpush1.bf16.msra.mxu0 0
        %2968 = vmatprep.subr.bf16.mxu0 0
        %2969 = vmatpush1.bf16.msra.mxu0 0
        %2970 = vmatprep.mubr.bf16.mxu0 0
        %2971 = vmatmul.mubr.bf16.gmra.mrb[0].mxu0 %v2929
        %v2972 = vpop.f32.mrb[0].mxu0
        %v2973 = vadd.f32 0.0, %v2972
        %v2974 = vpop.f32.mrb[0].mxu0
        %v2975 = vpop.f32.mrb[0].mxu0
        %v2976 = vpop.f32.mrb[0].mxu0
        %2977 = vdwg.mxu0
        %v2979 = vsel %vm2927, %v2920, 0
        %v2982 = vand.u32 %v2440, %v2934
        %2984 = vmatprep.subr.bf16.mxu0 0
        %2985 = vmatpush1.bf16.msra.mxu0 %v2982
        %2986 = vmatprep.subr.bf16.mxu0 0
        %2987 = vmatpush1.bf16.msra.mxu0 0
        %2988 = vmatprep.subr.bf16.mxu0 0
        %2989 = vmatpush1.bf16.msra.mxu0 0
        %2990 = vmatprep.subr.bf16.mxu0 0
        %2991 = vmatpush1.bf16.msra.mxu0 0
        %2992 = vmatprep.subr.bf16.mxu0 0
        %2993 = vmatpush1.bf16.msra.mxu0 0
        %2994 = vmatprep.subr.bf16.mxu0 0
        %2995 = vmatpush1.bf16.msra.mxu0 0
        %2996 = vmatprep.subr.bf16.mxu0 0
        %2997 = vmatpush1.bf16.msra.mxu0 0
        %2998 = vmatprep.subr.bf16.mxu0 0
        %2999 = vmatpush1.bf16.msra.mxu0 0
        %3000 = vmatprep.subr.bf16.mxu0 0
        %3001 = vmatpush1.bf16.msra.mxu0 0
        %3002 = vmatprep.subr.bf16.mxu0 0
        %3003 = vmatpush1.bf16.msra.mxu0 0
        %3004 = vmatprep.subr.bf16.mxu0 0
        %3005 = vmatpush1.bf16.msra.mxu0 0
        %3006 = vmatprep.subr.bf16.mxu0 0
        %3007 = vmatpush1.bf16.msra.mxu0 0
        %3008 = vmatprep.subr.bf16.mxu0 0
        %3009 = vmatpush1.bf16.msra.mxu0 0
        %3010 = vmatprep.subr.bf16.mxu0 0
        %3011 = vmatpush1.bf16.msra.mxu0 0
        %3012 = vmatprep.subr.bf16.mxu0 0
        %3013 = vmatpush1.bf16.msra.mxu0 0
        %3014 = vmatprep.subr.bf16.mxu0 0
        %3015 = vmatpush1.bf16.msra.mxu0 0
        %3016 = vmatprep.mubr.bf16.mxu0 0
        %3017 = vmatmul.mubr.bf16.gmra.mrb[0].mxu0 %v2979
        %v3018 = vpop.f32.mrb[0].mxu0
        %v3019 = vadd.f32 0.0, %v3018
        %v3020 = vpop.f32.mrb[0].mxu0
        %v3021 = vpop.f32.mrb[0].mxu0
        %v3022 = vpop.f32.mrb[0].mxu0
        %3023 = vdwg.mxu0
        %v3025 = vsel %vm2927, %v2921, 0
        %v3028 = vand.u32 %v2446, %v2934
        %3030 = vmatprep.subr.bf16.mxu0 0
        %3031 = vmatpush1.bf16.msra.mxu0 %v3028
        %3032 = vmatprep.subr.bf16.mxu0 0
        %3033 = vmatpush1.bf16.msra.mxu0 0
        %3034 = vmatprep.subr.bf16.mxu0 0
        %3035 = vmatpush1.bf16.msra.mxu0 0
        %3036 = vmatprep.subr.bf16.mxu0 0
        %3037 = vmatpush1.bf16.msra.mxu0 0
        %3038 = vmatprep.subr.bf16.mxu0 0
        %3039 = vmatpush1.bf16.msra.mxu0 0
        %3040 = vmatprep.subr.bf16.mxu0 0
        %3041 = vmatpush1.bf16.msra.mxu0 0
        %3042 = vmatprep.subr.bf16.mxu0 0
        %3043 = vmatpush1.bf16.msra.mxu0 0
        %3044 = vmatprep.subr.bf16.mxu0 0
        %3045 = vmatpush1.bf16.msra.mxu0 0
        %3046 = vmatprep.subr.bf16.mxu0 0
        %3047 = vmatpush1.bf16.msra.mxu0 0
        %3048 = vmatprep.subr.bf16.mxu0 0
        %3049 = vmatpush1.bf16.msra.mxu0 0
        %3050 = vmatprep.subr.bf16.mxu0 0
        %3051 = vmatpush1.bf16.msra.mxu0 0
        %3052 = vmatprep.subr.bf16.mxu0 0
        %3053 = vmatpush1.bf16.msra.mxu0 0
        %3054 = vmatprep.subr.bf16.mxu0 0
        %3055 = vmatpush1.bf16.msra.mxu0 0
        %3056 = vmatprep.subr.bf16.mxu0 0
        %3057 = vmatpush1.bf16.msra.mxu0 0
        %3058 = vmatprep.subr.bf16.mxu0 0
        %3059 = vmatpush1.bf16.msra.mxu0 0
        %3060 = vmatprep.subr.bf16.mxu0 0
        %3061 = vmatpush1.bf16.msra.mxu0 0
        %3062 = vmatprep.mubr.bf16.mxu0 0
        %3063 = vmatmul.mubr.bf16.gmra.mrb[0].mxu0 %v3025
        %v3064 = vpop.f32.mrb[0].mxu0
        %v3065 = vadd.f32 0.0, %v3064
        %v3066 = vpop.f32.mrb[0].mxu0
        %v3067 = vpop.f32.mrb[0].mxu0
        %v3068 = vpop.f32.mrb[0].mxu0
        %3069 = vdwg.mxu0
        %v3071 = vsel %vm2927, %v2922, 0
        %v3074 = vand.u32 %v2448, %v2934
        %3076 = vmatprep.subr.bf16.mxu0 0
        %3077 = vmatpush1.bf16.msra.mxu0 %v3074
        %3078 = vmatprep.subr.bf16.mxu0 0
        %3079 = vmatpush1.bf16.msra.mxu0 0
        %3080 = vmatprep.subr.bf16.mxu0 0
        %3081 = vmatpush1.bf16.msra.mxu0 0
        %3082 = vmatprep.subr.bf16.mxu0 0
        %3083 = vmatpush1.bf16.msra.mxu0 0
        %3084 = vmatprep.subr.bf16.mxu0 0
        %3085 = vmatpush1.bf16.msra.mxu0 0
        %3086 = vmatprep.subr.bf16.mxu0 0
        %3087 = vmatpush1.bf16.msra.mxu0 0
        %3088 = vmatprep.subr.bf16.mxu0 0
        %3089 = vmatpush1.bf16.msra.mxu0 0
        %3090 = vmatprep.subr.bf16.mxu0 0
        %3091 = vmatpush1.bf16.msra.mxu0 0
        %3092 = vmatprep.subr.bf16.mxu0 0
        %3093 = vmatpush1.bf16.msra.mxu0 0
        %3094 = vmatprep.subr.bf16.mxu0 0
        %3095 = vmatpush1.bf16.msra.mxu0 0
        %3096 = vmatprep.subr.bf16.mxu0 0
        %3097 = vmatpush1.bf16.msra.mxu0 0
        %3098 = vmatprep.subr.bf16.mxu0 0
        %3099 = vmatpush1.bf16.msra.mxu0 0
        %3100 = vmatprep.subr.bf16.mxu0 0
        %3101 = vmatpush1.bf16.msra.mxu0 0
        %3102 = vmatprep.subr.bf16.mxu0 0
        %3103 = vmatpush1.bf16.msra.mxu0 0
        %3104 = vmatprep.subr.bf16.mxu0 0
        %3105 = vmatpush1.bf16.msra.mxu0 0
        %3106 = vmatprep.subr.bf16.mxu0 0
        %3107 = vmatpush1.bf16.msra.mxu0 0
        %3108 = vmatprep.mubr.bf16.mxu0 0
        %3109 = vmatmul.mubr.bf16.gmra.mrb[0].mxu0 %v3071
        %v3110 = vpop.f32.mrb[0].mxu0
        %v3111 = vadd.f32 0.0, %v3110
        %v3112 = vpop.f32.mrb[0].mxu0
        %v3113 = vpop.f32.mrb[0].mxu0
        %v3114 = vpop.f32.mrb[0].mxu0
        %3115 = vdwg.mxu0
        %v3117 = vsel %vm2927, %v2923, 0
        %v3120 = vand.u32 %v2450, %v2934
        %3122 = vmatprep.subr.bf16.mxu0 0
        %3123 = vmatpush1.bf16.msra.mxu0 %v3120
        %3124 = vmatprep.subr.bf16.mxu0 0
        %3125 = vmatpush1.bf16.msra.mxu0 0
        %3126 = vmatprep.subr.bf16.mxu0 0
        %3127 = vmatpush1.bf16.msra.mxu0 0
        %3128 = vmatprep.subr.bf16.mxu0 0
        %3129 = vmatpush1.bf16.msra.mxu0 0
        %3130 = vmatprep.subr.bf16.mxu0 0
        %3131 = vmatpush1.bf16.msra.mxu0 0
        %3132 = vmatprep.subr.bf16.mxu0 0
        %3133 = vmatpush1.bf16.msra.mxu0 0
        %3134 = vmatprep.subr.bf16.mxu0 0
        %3135 = vmatpush1.bf16.msra.mxu0 0
        %3136 = vmatprep.subr.bf16.mxu0 0
        %3137 = vmatpush1.bf16.msra.mxu0 0
        %3138 = vmatprep.subr.bf16.mxu0 0
        %3139 = vmatpush1.bf16.msra.mxu0 0
        %3140 = vmatprep.subr.bf16.mxu0 0
        %3141 = vmatpush1.bf16.msra.mxu0 0
        %3142 = vmatprep.subr.bf16.mxu0 0
        %3143 = vmatpush1.bf16.msra.mxu0 0
        %3144 = vmatprep.subr.bf16.mxu0 0
        %3145 = vmatpush1.bf16.msra.mxu0 0
        %3146 = vmatprep.subr.bf16.mxu0 0
        %3147 = vmatpush1.bf16.msra.mxu0 0
        %3148 = vmatprep.subr.bf16.mxu0 0
        %3149 = vmatpush1.bf16.msra.mxu0 0
        %3150 = vmatprep.subr.bf16.mxu0 0
        %3151 = vmatpush1.bf16.msra.mxu0 0
        %3152 = vmatprep.subr.bf16.mxu0 0
        %3153 = vmatpush1.bf16.msra.mxu0 0
        %3154 = vmatprep.mubr.bf16.mxu0 0
        %3155 = vmatmul.mubr.bf16.gmra.mrb[0].mxu0 %v3117
        %v3156 = vpop.f32.mrb[0].mxu0
        %v3157 = vadd.f32 0.0, %v3156
        %v3158 = vpop.f32.mrb[0].mxu0
        %v3159 = vpop.f32.mrb[0].mxu0
        %v3160 = vpop.f32.mrb[0].mxu0
        %3161 = vdwg.mxu0
        %v3163 = vsel %vm2927, %v2924, 0
        %v3166 = vand.u32 %v2456, %v2934
        %3168 = vmatprep.subr.bf16.mxu0 0
        %3169 = vmatpush1.bf16.msra.mxu0 %v3166
        %3170 = vmatprep.subr.bf16.mxu0 0
        %3171 = vmatpush1.bf16.msra.mxu0 0
        %3172 = vmatprep.subr.bf16.mxu0 0
        %3173 = vmatpush1.bf16.msra.mxu0 0
        %3174 = vmatprep.subr.bf16.mxu0 0
        %3175 = vmatpush1.bf16.msra.mxu0 0
        %3176 = vmatprep.subr.bf16.mxu0 0
        %3177 = vmatpush1.bf16.msra.mxu0 0
        %3178 = vmatprep.subr.bf16.mxu0 0
        %3179 = vmatpush1.bf16.msra.mxu0 0
        %3180 = vmatprep.subr.bf16.mxu0 0
        %3181 = vmatpush1.bf16.msra.mxu0 0
        %3182 = vmatprep.subr.bf16.mxu0 0
        %3183 = vmatpush1.bf16.msra.mxu0 0
        %3184 = vmatprep.subr.bf16.mxu0 0
        %3185 = vmatpush1.bf16.msra.mxu0 0
        %3186 = vmatprep.subr.bf16.mxu0 0
        %3187 = vmatpush1.bf16.msra.mxu0 0
        %3188 = vmatprep.subr.bf16.mxu0 0
        %3189 = vmatpush1.bf16.msra.mxu0 0
        %3190 = vmatprep.subr.bf16.mxu0 0
        %3191 = vmatpush1.bf16.msra.mxu0 0
        %3192 = vmatprep.subr.bf16.mxu0 0
        %3193 = vmatpush1.bf16.msra.mxu0 0
        %3194 = vmatprep.subr.bf16.mxu0 0
        %3195 = vmatpush1.bf16.msra.mxu0 0
        %3196 = vmatprep.subr.bf16.mxu0 0
        %3197 = vmatpush1.bf16.msra.mxu0 0
        %3198 = vmatprep.subr.bf16.mxu0 0
        %3199 = vmatpush1.bf16.msra.mxu0 0
        %3200 = vmatprep.mubr.bf16.mxu0 0
        %3201 = vmatmul.mubr.bf16.gmra.mrb[0].mxu0 %v3163
        %v3202 = vpop.f32.mrb[0].mxu0
        %v3203 = vadd.f32 0.0, %v3202
        %v3204 = vpop.f32.mrb[0].mxu0
        %v3205 = vpop.f32.mrb[0].mxu0
        %v3206 = vpop.f32.mrb[0].mxu0
        %3207 = vdwg.mxu0
        %v3209 = vsel %vm2927, %v2925, 0
        %v3212 = vand.u32 %v2458, %v2934
        %3214 = vmatprep.subr.bf16.mxu0 0
        %3215 = vmatpush1.bf16.msra.mxu0 %v3212
        %3216 = vmatprep.subr.bf16.mxu0 0
        %3217 = vmatpush1.bf16.msra.mxu0 0
        %3218 = vmatprep.subr.bf16.mxu0 0
        %3219 = vmatpush1.bf16.msra.mxu0 0
        %3220 = vmatprep.subr.bf16.mxu0 0
        %3221 = vmatpush1.bf16.msra.mxu0 0
        %3222 = vmatprep.subr.bf16.mxu0 0
        %3223 = vmatpush1.bf16.msra.mxu0 0
        %3224 = vmatprep.subr.bf16.mxu0 0
        %3225 = vmatpush1.bf16.msra.mxu0 0
        %3226 = vmatprep.subr.bf16.mxu0 0
        %3227 = vmatpush1.bf16.msra.mxu0 0
        %3228 = vmatprep.subr.bf16.mxu0 0
        %3229 = vmatpush1.bf16.msra.mxu0 0
        %3230 = vmatprep.subr.bf16.mxu0 0
        %3231 = vmatpush1.bf16.msra.mxu0 0
        %3232 = vmatprep.subr.bf16.mxu0 0
        %3233 = vmatpush1.bf16.msra.mxu0 0
        %3234 = vmatprep.subr.bf16.mxu0 0
        %3235 = vmatpush1.bf16.msra.mxu0 0
        %3236 = vmatprep.subr.bf16.mxu0 0
        %3237 = vmatpush1.bf16.msra.mxu0 0
        %3238 = vmatprep.subr.bf16.mxu0 0
        %3239 = vmatpush1.bf16.msra.mxu0 0
        %3240 = vmatprep.subr.bf16.mxu0 0
        %3241 = vmatpush1.bf16.msra.mxu0 0
        %3242 = vmatprep.subr.bf16.mxu0 0
        %3243 = vmatpush1.bf16.msra.mxu0 0
        %3244 = vmatprep.subr.bf16.mxu0 0
        %3245 = vmatpush1.bf16.msra.mxu0 0
        %3246 = vmatprep.mubr.bf16.mxu0 0
        %3247 = vmatmul.mubr.bf16.gmra.mrb[0].mxu0 %v3209
        %v3248 = vpop.f32.mrb[0].mxu0
        %v3249 = vadd.f32 0.0, %v3248
        %v3250 = vpop.f32.mrb[0].mxu0
        %v3251 = vpop.f32.mrb[0].mxu0
        %v3252 = vpop.f32.mrb[0].mxu0
        %3253 = vdwg.mxu0
        %v3255 = vsel %vm2927, %v2926, 0
        %v3258 = vand.u32 %v2460, %v2934
        %3260 = vmatprep.subr.bf16.mxu0 0
        %3261 = vmatpush1.bf16.msra.mxu0 %v3258
        %3262 = vmatprep.subr.bf16.mxu0 0
        %3263 = vmatpush1.bf16.msra.mxu0 0
        %3264 = vmatprep.subr.bf16.mxu0 0
        %3265 = vmatpush1.bf16.msra.mxu0 0
        %3266 = vmatprep.subr.bf16.mxu0 0
        %3267 = vmatpush1.bf16.msra.mxu0 0
        %3268 = vmatprep.subr.bf16.mxu0 0
        %3269 = vmatpush1.bf16.msra.mxu0 0
        %3270 = vmatprep.subr.bf16.mxu0 0
        %3271 = vmatpush1.bf16.msra.mxu0 0
        %3272 = vmatprep.subr.bf16.mxu0 0
        %3273 = vmatpush1.bf16.msra.mxu0 0
        %3274 = vmatprep.subr.bf16.mxu0 0
        %3275 = vmatpush1.bf16.msra.mxu0 0
        %3276 = vmatprep.subr.bf16.mxu0 0
        %3277 = vmatpush1.bf16.msra.mxu0 0
        %3278 = vmatprep.subr.bf16.mxu0 0
        %3279 = vmatpush1.bf16.msra.mxu0 0
        %3280 = vmatprep.subr.bf16.mxu0 0
        %3281 = vmatpush1.bf16.msra.mxu0 0
        %3282 = vmatprep.subr.bf16.mxu0 0
        %3283 = vmatpush1.bf16.msra.mxu0 0
        %3284 = vmatprep.subr.bf16.mxu0 0
        %3285 = vmatpush1.bf16.msra.mxu0 0
        %3286 = vmatprep.subr.bf16.mxu0 0
        %3287 = vmatpush1.bf16.msra.mxu0 0
        %3288 = vmatprep.subr.bf16.mxu0 0
        %3289 = vmatpush1.bf16.msra.mxu0 0
        %3290 = vmatprep.subr.bf16.mxu0 0
        %3291 = vmatpush1.bf16.msra.mxu0 0
        %3292 = vmatprep.mubr.bf16.mxu0 0
        %3293 = vmatmul.mubr.bf16.gmra.mrb[0].mxu0 %v3255
        %v3294 = vpop.f32.mrb[0].mxu0
        %v3295 = vadd.f32 0.0, %v3294
        %v3296 = vpop.f32.mrb[0].mxu0
        %v3297 = vpop.f32.mrb[0].mxu0
        %v3298 = vpop.f32.mrb[0].mxu0
        %3299 = vdwg.mxu0
        %3301 = vrot.lane.b32.xlu0 %v3019, 48
        %v3302 = vpop.permute.xlu0 %3301
        %3305 = vrot.lane.b32.xlu0 %v3065, 96
        %v3306 = vpop.permute.xlu0 %3305
        %3309 = vrot.lane.b32.xlu0 %v3111, 16
        %v3310 = vpop.permute.xlu0 %3309
        %3313 = vrot.lane.b32.xlu0 %v3157, 64
        %v3314 = vpop.permute.xlu0 %3313
        %3317 = vrot.lane.b32.xlu0 %v3203, 112
        %v3318 = vpop.permute.xlu0 %3317
        %3321 = vrot.lane.b32.xlu0 %v3249, 32
        %v3322 = vpop.permute.xlu0 %3321
        %3325 = vrot.lane.b32.xlu0 %v3295, 80
        %v3326 = vpop.permute.xlu0 %3325
        %v3328 = vsel %vm2461, %v2973, %v3302
        %vm3329 = vcmask 785408
        %v3330 = vsel %vm3329, %v3328, %v3306
        %vm3331 = vcmask 130048
        %v3332 = vsel %vm3331, %v3306, %v3310
        %vm3333 = vcmask 523264
        %v3334 = vsel %vm3333, %v3332, %v3314
        %vm3335 = vcmask 916480
        %v3336 = vsel %vm3335, %v3334, %v3318
        %vm3337 = vcmask 261120
        %v3338 = vsel %vm3337, %v3318, %v3322
        %vm3339 = vcmask 654336
        %v3340 = vsel %vm3339, %v3338, %v3326
        %v3341 = vpack.c.bf16 %v3330, %v3330
        %v3342 = vpack.c.bf16 %v3336, %v3336
        %v3343 = vpack.c.bf16 %v3340, %v3340
        %v3344 = vld [vmem:[#allocation10] sm:$0xff]
        %v3345 = vld [vmem:[#allocation10 + $0x8] sm:$0xf]
        %v3346 = vld [vmem:[#allocation10 + $0xc] sm:$0xff]
        %v3347 = vld [vmem:[#allocation10 + $0x14] sm:$0xf]
        %v3348 = vld [vmem:[#allocation10 + $0x18] sm:$0xff]
        %v3349 = vld [vmem:[#allocation10 + $0x20] sm:$0xf]
        %v3350 = vld [vmem:[#allocation10 + $0x24] sm:$0xff]
        %v3351 = vld [vmem:[#allocation10 + $0x2c] sm:$0xf]
        %v3352 = vld [vmem:[#allocation10 + $0x30] sm:$0xff]
        %v3353 = vld [vmem:[#allocation10 + $0x38] sm:$0xf]
        %v3354 = vld [vmem:[#allocation10 + $0x3c] sm:$0xff]
        %v3355 = vld [vmem:[#allocation10 + $0x44] sm:$0xf]
        %v3356 = vld [vmem:[#allocation10 + $0x48] sm:$0xff]
        %v3357 = vld [vmem:[#allocation10 + $0x50] sm:$0xf]
        %v3358 = vld [vmem:[#allocation10 + $0x54] sm:$0xff]
        %v3359 = vld [vmem:[#allocation10 + $0x5c] sm:$0xf]
        %v3360 = vld [vmem:[#allocation10 + $0x60] sm:$0xff]
        %v3361 = vld [vmem:[#allocation10 + $0x68] sm:$0xf]
        %v3362 = vld [vmem:[#allocation10 + $0x6c] sm:$0xff]
        %v3363 = vld [vmem:[#allocation10 + $0x74] sm:$0xf]
        %v3364 = vld [vmem:[#allocation10 + $0x78] sm:$0xff]
        %v3365 = vld [vmem:[#allocation10 + $0x80] sm:$0xf]
        %v3366 = vld [vmem:[#allocation10 + $0x84] sm:$0xff]
        %v3367 = vld [vmem:[#allocation10 + $0x8c] sm:$0xf]
        %v3368 = vld [vmem:[#allocation10 + $0x90] sm:$0xff]
        %v3369 = vld [vmem:[#allocation10 + $0x98] sm:$0xf]
        %v3370 = vld [vmem:[#allocation10 + $0x9c] sm:$0xff]
        %v3371 = vld [vmem:[#allocation10 + $0xa4] sm:$0xf]
        %v3372 = vld [vmem:[#allocation10 + $0xa8] sm:$0xff]
        %v3373 = vld [vmem:[#allocation10 + $0xb0] sm:$0xf]
        %v3374 = vld [vmem:[#allocation10 + $0xb4] sm:$0xff]
        %v3375 = vld [vmem:[#allocation10 + $0xbc] sm:$0xf]
        %v3376 = vld [vmem:[#allocation10 + $0xc0] sm:$0xff]
        %v3377 = vld [vmem:[#allocation10 + $0xc8] sm:$0xf]
        %v3378 = vld [vmem:[#allocation10 + $0xcc] sm:$0xff]
        %v3379 = vld [vmem:[#allocation10 + $0xd4] sm:$0xf]
        %v3380 = vld [vmem:[#allocation10 + $0xd8] sm:$0xff]
        %v3381 = vld [vmem:[#allocation10 + $0xe0] sm:$0xf]
        %v3382 = vld [vmem:[#allocation10 + $0xe4] sm:$0xff]
        %v3383 = vld [vmem:[#allocation10 + $0xec] sm:$0xf]
        %v3384 = vld [vmem:[#allocation10 + $0xf0] sm:$0xff]
        %v3385 = vld [vmem:[#allocation10 + $0xf8] sm:$0xf]
        %v3386 = vld [vmem:[#allocation10 + $0xfc] sm:$0xff]
        %v3387 = vld [vmem:[#allocation10 + $0x104] sm:$0xf]
        %v3388 = vld [vmem:[#allocation10 + $0x108] sm:$0xff]
        %v3389 = vld [vmem:[#allocation10 + $0x110] sm:$0xf]
        %v3390 = vld [vmem:[#allocation10 + $0x114] sm:$0xff]
        %v3391 = vld [vmem:[#allocation10 + $0x11c] sm:$0xf]
        %v3392 = vld [vmem:[#allocation10 + $0x120] sm:$0xff]
        %v3393 = vld [vmem:[#allocation10 + $0x128] sm:$0xf]
        %v3394 = vld [vmem:[#allocation10 + $0x12c] sm:$0xff]
        %v3395 = vld [vmem:[#allocation10 + $0x134] sm:$0xf]
        %v3396 = vld [vmem:[#allocation10 + $0x138] sm:$0xff]
        %v3397 = vld [vmem:[#allocation10 + $0x140] sm:$0xf]
        %v3398 = vld [vmem:[#allocation10 + $0x144] sm:$0xff]
        %v3399 = vld [vmem:[#allocation10 + $0x14c] sm:$0xf]
        %v3400 = vld [vmem:[#allocation10 + $0x150] sm:$0xff]
        %v3401 = vld [vmem:[#allocation10 + $0x158] sm:$0xf]
        %v3402 = vld [vmem:[#allocation10 + $0x15c] sm:$0xff]
        %v3403 = vld [vmem:[#allocation10 + $0x164] sm:$0xf]
        %v3404 = vld [vmem:[#allocation10 + $0x168] sm:$0xff]
        %v3405 = vld [vmem:[#allocation10 + $0x170] sm:$0xf]
        %v3406 = vld [vmem:[#allocation10 + $0x174] sm:$0xff]
        %v3407 = vld [vmem:[#allocation10 + $0x17c] sm:$0xf]
        %v3408 = vld [vmem:[#allocation10 + $0x180] sm:$0xff]
        %v3409 = vld [vmem:[#allocation10 + $0x188] sm:$0xf]
        %v3410 = vld [vmem:[#allocation10 + $0x18c] sm:$0xff]
        %v3411 = vld [vmem:[#allocation10 + $0x194] sm:$0xf]
        %v3412 = vld [vmem:[#allocation10 + $0x198] sm:$0xff]
        %v3413 = vld [vmem:[#allocation10 + $0x1a0] sm:$0xf]
        %v3414 = vld [vmem:[#allocation10 + $0x1a4] sm:$0xff]
        %v3415 = vld [vmem:[#allocation10 + $0x1ac] sm:$0xf]
        %v3416 = vld [vmem:[#allocation10 + $0x1b0] sm:$0xff]
        %v3417 = vld [vmem:[#allocation10 + $0x1b8] sm:$0xf]
        %v3418 = vld [vmem:[#allocation10 + $0x1bc] sm:$0xff]
        %v3419 = vld [vmem:[#allocation10 + $0x1c4] sm:$0xf]
        %v3420 = vld [vmem:[#allocation10 + $0x1c8] sm:$0xff]
        %v3421 = vld [vmem:[#allocation10 + $0x1d0] sm:$0xf]
        %v3422 = vld [vmem:[#allocation10 + $0x1d4] sm:$0xff]
        %v3423 = vld [vmem:[#allocation10 + $0x1dc] sm:$0xf]
        %v3424 = vld [vmem:[#allocation10 + $0x1e0] sm:$0xff]
        %v3425 = vld [vmem:[#allocation10 + $0x1e8] sm:$0xf]
        %v3426 = vld [vmem:[#allocation10 + $0x1ec] sm:$0xff]
        %v3427 = vld [vmem:[#allocation10 + $0x1f4] sm:$0xf]
        %v3428 = vld [vmem:[#allocation10 + $0x1f8] sm:$0xff]
        %v3429 = vld [vmem:[#allocation10 + $0x200] sm:$0xf]
        %v3430 = vld [vmem:[#allocation10 + $0x204] sm:$0xff]
        %v3431 = vld [vmem:[#allocation10 + $0x20c] sm:$0xf]
        %v3432 = vld [vmem:[#allocation10 + $0x210] sm:$0xff]
        %v3433 = vld [vmem:[#allocation10 + $0x218] sm:$0xf]
        %v3434 = vld [vmem:[#allocation10 + $0x21c] sm:$0xff]
        %v3435 = vld [vmem:[#allocation10 + $0x224] sm:$0xf]
        %v3436 = vld [vmem:[#allocation10 + $0x228] sm:$0xff]
        %v3437 = vld [vmem:[#allocation10 + $0x230] sm:$0xf]
        %v3438 = vld [vmem:[#allocation10 + $0x234] sm:$0xff]
        %v3439 = vld [vmem:[#allocation10 + $0x23c] sm:$0xf]
        %v3440 = vld [vmem:[#allocation12] sm:$0x7]
        %v3442 = vlaneseq
        %v3443 = vshrl.u32 %v3442, 7
        %v3444 = vsub.s32 0, %v3443
        %v3445 = vrot.slane %v3440, %v3444
        %v3446 = vlaneseq
        %v3447 = vshrl.u32 %v3446, 7
        %v3448 = vsub.s32 1, %v3447
        %v3449 = vrot.slane %v3440, %v3448
        %v3450 = vlaneseq
        %v3451 = vshrl.u32 %v3450, 7
        %v3452 = vsub.s32 2, %v3451
        %v3453 = vrot.slane %v3440, %v3452
        %v3553 = vunpack.c.l.b16 %v3344
        %v3554 = vunpack.c.h.b16 %v3344
        %v3555 = vunpack.c.l.b16 %v3345
        %v3556 = vunpack.c.l.b16 %v3346
        %v3557 = vunpack.c.h.b16 %v3346
        %v3558 = vunpack.c.l.b16 %v3347
        %v3559 = vunpack.c.l.b16 %v3348
        %v3560 = vunpack.c.h.b16 %v3348
        %v3561 = vunpack.c.l.b16 %v3349
        %v3562 = vunpack.c.l.b16 %v3350
        %v3563 = vunpack.c.h.b16 %v3350
        %v3564 = vunpack.c.l.b16 %v3351
        %v3565 = vunpack.c.l.b16 %v3352
        %v3566 = vunpack.c.h.b16 %v3352
        %v3567 = vunpack.c.l.b16 %v3353
        %v3568 = vunpack.c.l.b16 %v3354
        %v3569 = vunpack.c.h.b16 %v3354
        %v3570 = vunpack.c.l.b16 %v3355
        %v3571 = vunpack.c.l.b16 %v3356
        %v3572 = vunpack.c.h.b16 %v3356
        %v3573 = vunpack.c.l.b16 %v3357
        %v3574 = vunpack.c.l.b16 %v3358
        %v3575 = vunpack.c.h.b16 %v3358
        %v3576 = vunpack.c.l.b16 %v3359
        %v3577 = vunpack.c.l.b16 %v3360
        %v3578 = vunpack.c.h.b16 %v3360
        %v3579 = vunpack.c.l.b16 %v3361
        %v3580 = vunpack.c.l.b16 %v3362
        %v3581 = vunpack.c.h.b16 %v3362
        %v3582 = vunpack.c.l.b16 %v3363
        %v3583 = vunpack.c.l.b16 %v3364
        %v3584 = vunpack.c.h.b16 %v3364
        %v3585 = vunpack.c.l.b16 %v3365
        %v3586 = vunpack.c.l.b16 %v3366
        %v3587 = vunpack.c.h.b16 %v3366
        %v3588 = vunpack.c.l.b16 %v3367
        %v3589 = vunpack.c.l.b16 %v3368
        %v3590 = vunpack.c.h.b16 %v3368
        %v3591 = vunpack.c.l.b16 %v3369
        %v3592 = vunpack.c.l.b16 %v3370
        %v3593 = vunpack.c.h.b16 %v3370
        %v3594 = vunpack.c.l.b16 %v3371
        %v3595 = vunpack.c.l.b16 %v3372
        %v3596 = vunpack.c.h.b16 %v3372
        %v3597 = vunpack.c.l.b16 %v3373
        %v3598 = vunpack.c.l.b16 %v3374
        %v3599 = vunpack.c.h.b16 %v3374
        %v3600 = vunpack.c.l.b16 %v3375
        %v3601 = vunpack.c.l.b16 %v3376
        %v3602 = vunpack.c.h.b16 %v3376
        %v3603 = vunpack.c.l.b16 %v3377
        %v3604 = vunpack.c.l.b16 %v3378
        %v3605 = vunpack.c.h.b16 %v3378
        %v3606 = vunpack.c.l.b16 %v3379
        %v3607 = vunpack.c.l.b16 %v3380
        %v3608 = vunpack.c.h.b16 %v3380
        %v3609 = vunpack.c.l.b16 %v3381
        %v3610 = vunpack.c.l.b16 %v3382
        %v3611 = vunpack.c.h.b16 %v3382
        %v3612 = vunpack.c.l.b16 %v3383
        %v3613 = vunpack.c.l.b16 %v3384
        %v3614 = vunpack.c.h.b16 %v3384
        %v3615 = vunpack.c.l.b16 %v3385
        %v3616 = vunpack.c.l.b16 %v3386
        %v3617 = vunpack.c.h.b16 %v3386
        %v3618 = vunpack.c.l.b16 %v3387
        %v3619 = vunpack.c.l.b16 %v3388
        %v3620 = vunpack.c.h.b16 %v3388
        %v3621 = vunpack.c.l.b16 %v3389
        %v3622 = vunpack.c.l.b16 %v3390
        %v3623 = vunpack.c.h.b16 %v3390
        %v3624 = vunpack.c.l.b16 %v3391
        %v3625 = vunpack.c.l.b16 %v3392
        %v3626 = vunpack.c.h.b16 %v3392
        %v3627 = vunpack.c.l.b16 %v3393
        %v3628 = vunpack.c.l.b16 %v3394
        %v3629 = vunpack.c.h.b16 %v3394
        %v3630 = vunpack.c.l.b16 %v3395
        %v3631 = vunpack.c.l.b16 %v3396
        %v3632 = vunpack.c.h.b16 %v3396
        %v3633 = vunpack.c.l.b16 %v3397
        %v3634 = vunpack.c.l.b16 %v3398
        %v3635 = vunpack.c.h.b16 %v3398
        %v3636 = vunpack.c.l.b16 %v3399
        %v3637 = vunpack.c.l.b16 %v3400
        %v3638 = vunpack.c.h.b16 %v3400
        %v3639 = vunpack.c.l.b16 %v3401
        %v3640 = vunpack.c.l.b16 %v3402
        %v3641 = vunpack.c.h.b16 %v3402
        %v3642 = vunpack.c.l.b16 %v3403
        %v3643 = vunpack.c.l.b16 %v3404
        %v3644 = vunpack.c.h.b16 %v3404
        %v3645 = vunpack.c.l.b16 %v3405
        %v3646 = vunpack.c.l.b16 %v3406
        %v3647 = vunpack.c.h.b16 %v3406
        %v3648 = vunpack.c.l.b16 %v3407
        %v3649 = vunpack.c.l.b16 %v3408
        %v3650 = vunpack.c.h.b16 %v3408
        %v3651 = vunpack.c.l.b16 %v3409
        %v3652 = vunpack.c.l.b16 %v3410
        %v3653 = vunpack.c.h.b16 %v3410
        %v3654 = vunpack.c.l.b16 %v3411
        %v3655 = vunpack.c.l.b16 %v3412
        %v3656 = vunpack.c.h.b16 %v3412
        %v3657 = vunpack.c.l.b16 %v3413
        %v3658 = vunpack.c.l.b16 %v3414
        %v3659 = vunpack.c.h.b16 %v3414
        %v3660 = vunpack.c.l.b16 %v3415
        %v3661 = vunpack.c.l.b16 %v3416
        %v3662 = vunpack.c.h.b16 %v3416
        %v3663 = vunpack.c.l.b16 %v3417
        %v3664 = vunpack.c.l.b16 %v3418
        %v3665 = vunpack.c.h.b16 %v3418
        %v3666 = vunpack.c.l.b16 %v3419
        %v3667 = vunpack.c.l.b16 %v3420
        %v3668 = vunpack.c.h.b16 %v3420
        %v3669 = vunpack.c.l.b16 %v3421
        %v3670 = vunpack.c.l.b16 %v3422
        %v3671 = vunpack.c.h.b16 %v3422
        %v3672 = vunpack.c.l.b16 %v3423
        %v3673 = vunpack.c.l.b16 %v3424
        %v3674 = vunpack.c.h.b16 %v3424
        %v3675 = vunpack.c.l.b16 %v3425
        %v3676 = vunpack.c.l.b16 %v3426
        %v3677 = vunpack.c.h.b16 %v3426
        %v3678 = vunpack.c.l.b16 %v3427
        %v3679 = vunpack.c.l.b16 %v3428
        %v3680 = vunpack.c.h.b16 %v3428
        %v3681 = vunpack.c.l.b16 %v3429
        %v3682 = vunpack.c.l.b16 %v3430
        %v3683 = vunpack.c.h.b16 %v3430
        %v3684 = vunpack.c.l.b16 %v3431
        %v3685 = vunpack.c.l.b16 %v3432
        %v3686 = vunpack.c.h.b16 %v3432
        %v3687 = vunpack.c.l.b16 %v3433
        %v3688 = vunpack.c.l.b16 %v3434
        %v3689 = vunpack.c.h.b16 %v3434
        %v3690 = vunpack.c.l.b16 %v3435
        %v3691 = vunpack.c.l.b16 %v3436
        %v3692 = vunpack.c.h.b16 %v3436
        %v3693 = vunpack.c.l.b16 %v3437
        %v3694 = vunpack.c.l.b16 %v3438
        %v3695 = vunpack.c.h.b16 %v3438
        %v3696 = vunpack.c.l.b16 %v3439
        %v3697 = vpack.c.b16 %v3556, %v3553
        %v3698 = vpack.c.b16 %v3557, %v3554
        %v3699 = vpack.c.b16 %v3558, %v3555
        %v3700 = vpack.c.b16 %v3562, %v3559
        %v3701 = vpack.c.b16 %v3563, %v3560
        %v3702 = vpack.c.b16 %v3564, %v3561
        %v3703 = vpack.c.b16 %v3568, %v3565
        %v3704 = vpack.c.b16 %v3569, %v3566
        %v3705 = vpack.c.b16 %v3570, %v3567
        %v3706 = vpack.c.b16 %v3574, %v3571
        %v3707 = vpack.c.b16 %v3575, %v3572
        %v3708 = vpack.c.b16 %v3576, %v3573
        %v3709 = vpack.c.b16 %v3580, %v3577
        %v3710 = vpack.c.b16 %v3581, %v3578
        %v3711 = vpack.c.b16 %v3582, %v3579
        %v3712 = vpack.c.b16 %v3586, %v3583
        %v3713 = vpack.c.b16 %v3587, %v3584
        %v3714 = vpack.c.b16 %v3588, %v3585
        %v3715 = vpack.c.b16 %v3592, %v3589
        %v3716 = vpack.c.b16 %v3593, %v3590
        %v3717 = vpack.c.b16 %v3594, %v3591
        %v3718 = vpack.c.b16 %v3598, %v3595
        %v3719 = vpack.c.b16 %v3599, %v3596
        %v3720 = vpack.c.b16 %v3600, %v3597
        %v3721 = vpack.c.b16 %v3604, %v3601
        %v3722 = vpack.c.b16 %v3605, %v3602
        %v3723 = vpack.c.b16 %v3606, %v3603
        %v3724 = vpack.c.b16 %v3610, %v3607
        %v3725 = vpack.c.b16 %v3611, %v3608
        %v3726 = vpack.c.b16 %v3612, %v3609
        %v3727 = vpack.c.b16 %v3616, %v3613
        %v3728 = vpack.c.b16 %v3617, %v3614
        %v3729 = vpack.c.b16 %v3618, %v3615
        %v3730 = vpack.c.b16 %v3622, %v3619
        %v3731 = vpack.c.b16 %v3623, %v3620
        %v3732 = vpack.c.b16 %v3624, %v3621
        %v3733 = vpack.c.b16 %v3628, %v3625
        %v3734 = vpack.c.b16 %v3629, %v3626
        %v3735 = vpack.c.b16 %v3630, %v3627
        %v3736 = vpack.c.b16 %v3634, %v3631
        %v3737 = vpack.c.b16 %v3635, %v3632
        %v3738 = vpack.c.b16 %v3636, %v3633
        %v3739 = vpack.c.b16 %v3640, %v3637
        %v3740 = vpack.c.b16 %v3641, %v3638
        %v3741 = vpack.c.b16 %v3642, %v3639
        %v3742 = vpack.c.b16 %v3646, %v3643
        %v3743 = vpack.c.b16 %v3647, %v3644
        %v3744 = vpack.c.b16 %v3648, %v3645
        %v3745 = vpack.c.b16 %v3652, %v3649
        %v3746 = vpack.c.b16 %v3653, %v3650
        %v3747 = vpack.c.b16 %v3654, %v3651
        %v3748 = vpack.c.b16 %v3658, %v3655
        %v3749 = vpack.c.b16 %v3659, %v3656
        %v3750 = vpack.c.b16 %v3660, %v3657
        %v3751 = vpack.c.b16 %v3664, %v3661
        %v3752 = vpack.c.b16 %v3665, %v3662
        %v3753 = vpack.c.b16 %v3666, %v3663
        %v3754 = vpack.c.b16 %v3670, %v3667
        %v3755 = vpack.c.b16 %v3671, %v3668
        %v3756 = vpack.c.b16 %v3672, %v3669
        %v3757 = vpack.c.b16 %v3676, %v3673
        %v3758 = vpack.c.b16 %v3677, %v3674
        %v3759 = vpack.c.b16 %v3678, %v3675
        %v3760 = vpack.c.b16 %v3682, %v3679
        %v3761 = vpack.c.b16 %v3683, %v3680
        %v3762 = vpack.c.b16 %v3684, %v3681
        %v3763 = vpack.c.b16 %v3688, %v3685
        %v3764 = vpack.c.b16 %v3689, %v3686
        %v3765 = vpack.c.b16 %v3690, %v3687
        %v3766 = vpack.c.b16 %v3694, %v3691
        %v3767 = vpack.c.b16 %v3695, %v3692
        %v3768 = vpack.c.b16 %v3696, %v3693
        %3841 = vmatprep.subr.bf16.mxu0 %v3698
        %3842 = vmatpush1.bf16.msra.mxu0 %v3697
        %3843 = vmatprep.subr.bf16.mxu0 %v3701
        %3844 = vmatpush1.bf16.msra.mxu0 %v3700
        %3845 = vmatprep.subr.bf16.mxu0 %v3704
        %3846 = vmatpush1.bf16.msra.mxu0 %v3703
        %3847 = vmatprep.subr.bf16.mxu0 %v3707
        %3848 = vmatpush1.bf16.msra.mxu0 %v3706
        %3849 = vmatprep.subr.bf16.mxu0 %v3710
        %3850 = vmatpush1.bf16.msra.mxu0 %v3709
        %3851 = vmatprep.subr.bf16.mxu0 %v3713
        %3852 = vmatpush1.bf16.msra.mxu0 %v3712
        %3853 = vmatprep.subr.bf16.mxu0 %v3716
        %3854 = vmatpush1.bf16.msra.mxu0 %v3715
        %3855 = vmatprep.subr.bf16.mxu0 %v3719
        %3856 = vmatpush1.bf16.msra.mxu0 %v3718
        %3857 = vmatprep.subr.bf16.mxu0 %v3722
        %3858 = vmatpush1.bf16.msra.mxu0 %v3721
        %3859 = vmatprep.subr.bf16.mxu0 %v3725
        %3860 = vmatpush1.bf16.msra.mxu0 %v3724
        %3861 = vmatprep.subr.bf16.mxu0 %v3728
        %3862 = vmatpush1.bf16.msra.mxu0 %v3727
        %3863 = vmatprep.subr.bf16.mxu0 %v3731
        %3864 = vmatpush1.bf16.msra.mxu0 %v3730
        %3865 = vmatprep.subr.bf16.mxu0 %v3734
        %3866 = vmatpush1.bf16.msra.mxu0 %v3733
        %3867 = vmatprep.subr.bf16.mxu0 %v3737
        %3868 = vmatpush1.bf16.msra.mxu0 %v3736
        %3869 = vmatprep.subr.bf16.mxu0 %v3740
        %3870 = vmatpush1.bf16.msra.mxu0 %v3739
        %3871 = vmatprep.subr.bf16.mxu0 %v3743
        %3872 = vmatpush1.bf16.msra.mxu0 %v3742
        %3873 = vmatprep.mubr.bf16.mxu0 %v3342
        %3874 = vmatmul.mubr.bf16.gmra.mrb[0].mxu0 %v3341
        %v3875 = vpop.f32.mrb[0].mxu0
        %v3876 = vadd.f32 %v3445, %v3875
        %v3877 = vpop.f32.mrb[0].mxu0
        %v3878 = vadd.f32 %v3449, %v3877
        %v3879 = vpop.f32.mrb[0].mxu0
        %v3880 = vpop.f32.mrb[0].mxu0
        %3881 = vdwg.mxu0
        %3882 = vmatprep.subr.bf16.mxu0 %v3746
        %3883 = vmatpush1.bf16.msra.mxu0 %v3745
        %3884 = vmatprep.subr.bf16.mxu0 %v3749
        %3885 = vmatpush1.bf16.msra.mxu0 %v3748
        %3886 = vmatprep.subr.bf16.mxu0 %v3752
        %3887 = vmatpush1.bf16.msra.mxu0 %v3751
        %3888 = vmatprep.subr.bf16.mxu0 %v3755
        %3889 = vmatpush1.bf16.msra.mxu0 %v3754
        %3890 = vmatprep.subr.bf16.mxu0 %v3758
        %3891 = vmatpush1.bf16.msra.mxu0 %v3757
        %3892 = vmatprep.subr.bf16.mxu0 %v3761
        %3893 = vmatpush1.bf16.msra.mxu0 %v3760
        %3894 = vmatprep.subr.bf16.mxu0 %v3764
        %3895 = vmatpush1.bf16.msra.mxu0 %v3763
        %3896 = vmatprep.subr.bf16.mxu0 %v3767
        %3897 = vmatpush1.bf16.msra.mxu0 %v3766
        %3898 = vmatprep.subr.bf16.mxu0 0
        %3899 = vmatpush1.bf16.msra.mxu0 0
        %3900 = vmatprep.subr.bf16.mxu0 0
        %3901 = vmatpush1.bf16.msra.mxu0 0
        %3902 = vmatprep.subr.bf16.mxu0 0
        %3903 = vmatpush1.bf16.msra.mxu0 0
        %3904 = vmatprep.subr.bf16.mxu0 0
        %3905 = vmatpush1.bf16.msra.mxu0 0
        %3906 = vmatprep.subr.bf16.mxu0 0
        %3907 = vmatpush1.bf16.msra.mxu0 0
        %3908 = vmatprep.subr.bf16.mxu0 0
        %3909 = vmatpush1.bf16.msra.mxu0 0
        %3910 = vmatprep.subr.bf16.mxu0 0
        %3911 = vmatpush1.bf16.msra.mxu0 0
        %3912 = vmatprep.subr.bf16.mxu0 0
        %3913 = vmatpush1.bf16.msra.mxu0 0
        %3914 = vmatprep.mubr.bf16.mxu0 0
        %3915 = vmatmul.mubr.bf16.gmra.mrb[0].mxu0 %v3343
        %v3916 = vpop.f32.mrb[0].mxu0
        %v3917 = vadd.f32 %v3876, %v3916
        %v3918 = vpop.f32.mrb[0].mxu0
        %v3919 = vadd.f32 %v3878, %v3918
        %v3920 = vpop.f32.mrb[0].mxu0
        %v3921 = vpop.f32.mrb[0].mxu0
        %3922 = vdwg.mxu0
        %3923 = vmatprep.subr.bf16.mxu0 0
        %3924 = vmatpush1.bf16.msra.mxu0 %v3699
        %3925 = vmatprep.subr.bf16.mxu0 0
        %3926 = vmatpush1.bf16.msra.mxu0 %v3702
        %3927 = vmatprep.subr.bf16.mxu0 0
        %3928 = vmatpush1.bf16.msra.mxu0 %v3705
        %3929 = vmatprep.subr.bf16.mxu0 0
        %3930 = vmatpush1.bf16.msra.mxu0 %v3708
        %3931 = vmatprep.subr.bf16.mxu0 0
        %3932 = vmatpush1.bf16.msra.mxu0 %v3711
        %3933 = vmatprep.subr.bf16.mxu0 0
        %3934 = vmatpush1.bf16.msra.mxu0 %v3714
        %3935 = vmatprep.subr.bf16.mxu0 0
        %3936 = vmatpush1.bf16.msra.mxu0 %v3717
        %3937 = vmatprep.subr.bf16.mxu0 0
        %3938 = vmatpush1.bf16.msra.mxu0 %v3720
        %3939 = vmatprep.subr.bf16.mxu0 0
        %3940 = vmatpush1.bf16.msra.mxu0 %v3723
        %3941 = vmatprep.subr.bf16.mxu0 0
        %3942 = vmatpush1.bf16.msra.mxu0 %v3726
        %3943 = vmatprep.subr.bf16.mxu0 0
        %3944 = vmatpush1.bf16.msra.mxu0 %v3729
        %3945 = vmatprep.subr.bf16.mxu0 0
        %3946 = vmatpush1.bf16.msra.mxu0 %v3732
        %3947 = vmatprep.subr.bf16.mxu0 0
        %3948 = vmatpush1.bf16.msra.mxu0 %v3735
        %3949 = vmatprep.subr.bf16.mxu0 0
        %3950 = vmatpush1.bf16.msra.mxu0 %v3738
        %3951 = vmatprep.subr.bf16.mxu0 0
        %3952 = vmatpush1.bf16.msra.mxu0 %v3741
        %3953 = vmatprep.subr.bf16.mxu0 0
        %3954 = vmatpush1.bf16.msra.mxu0 %v3744
        %3955 = vmatprep.mubr.bf16.mxu0 %v3342
        %3956 = vmatmul.mubr.bf16.gmra.mrb[0].mxu0 %v3341
        %v3957 = vpop.f32.mrb[0].mxu0
        %v3958 = vadd.f32 %v3453, %v3957
        %v3959 = vpop.f32.mrb[0].mxu0
        %v3960 = vpop.f32.mrb[0].mxu0
        %v3961 = vpop.f32.mrb[0].mxu0
        %3962 = vdwg.mxu0
        %3963 = vmatprep.subr.bf16.mxu0 0
        %3964 = vmatpush1.bf16.msra.mxu0 %v3747
        %3965 = vmatprep.subr.bf16.mxu0 0
        %3966 = vmatpush1.bf16.msra.mxu0 %v3750
        %3967 = vmatprep.subr.bf16.mxu0 0
        %3968 = vmatpush1.bf16.msra.mxu0 %v3753
        %3969 = vmatprep.subr.bf16.mxu0 0
        %3970 = vmatpush1.bf16.msra.mxu0 %v3756
        %3971 = vmatprep.subr.bf16.mxu0 0
        %3972 = vmatpush1.bf16.msra.mxu0 %v3759
        %3973 = vmatprep.subr.bf16.mxu0 0
        %3974 = vmatpush1.bf16.msra.mxu0 %v3762
        %3975 = vmatprep.subr.bf16.mxu0 0
        %3976 = vmatpush1.bf16.msra.mxu0 %v3765
        %3977 = vmatprep.subr.bf16.mxu0 0
        %3978 = vmatpush1.bf16.msra.mxu0 %v3768
        %3979 = vmatprep.subr.bf16.mxu0 0
        %3980 = vmatpush1.bf16.msra.mxu0 0
        %3981 = vmatprep.subr.bf16.mxu0 0
        %3982 = vmatpush1.bf16.msra.mxu0 0
        %3983 = vmatprep.subr.bf16.mxu0 0
        %3984 = vmatpush1.bf16.msra.mxu0 0
        %3985 = vmatprep.subr.bf16.mxu0 0
        %3986 = vmatpush1.bf16.msra.mxu0 0
        %3987 = vmatprep.subr.bf16.mxu0 0
        %3988 = vmatpush1.bf16.msra.mxu0 0
        %3989 = vmatprep.subr.bf16.mxu0 0
        %3990 = vmatpush1.bf16.msra.mxu0 0
        %3991 = vmatprep.subr.bf16.mxu0 0
        %3992 = vmatpush1.bf16.msra.mxu0 0
        %3993 = vmatprep.subr.bf16.mxu0 0
        %3994 = vmatpush1.bf16.msra.mxu0 0
        %3995 = vmatprep.mubr.bf16.mxu0 0
        %3996 = vmatmul.mubr.bf16.gmra.mrb[0].mxu0 %v3343
        %v3997 = vpop.f32.mrb[0].mxu0
        %v3998 = vadd.f32 %v3958, %v3997
        %v3999 = vpop.f32.mrb[0].mxu0
        %v4000 = vpop.f32.mrb[0].mxu0
        %v4001 = vpop.f32.mrb[0].mxu0
        %4002 = vdwg.mxu0
        %v4003 = vadd.f32 %v554, %v3917
        %v4004 = vadd.f32 %v555, %v3919
        %v4005 = vadd.f32 %v556, %v3998
        // Predicated region
        $region101: #{tpu_custom_call.1} parent=59 // pred_check
          %p4006 = pneg %p480
        $region102: #{tpu_custom_call.1} parent=59 // pred_check_branch
          %4008 = sbr.rel (%p4006) target = $region104
        $region103: #{tpu_custom_call.1} parent=59 // pred_region
          %s4009 = smul.u32 4, 48
          %s4010 = smul.u32 %s4009, 12
          %s4011 = sshll.u32 %s4010, 4
          %4012 = dma.done [#allocation4], %s4011
          %s4013 = scalar_lea.sflag [#allocation4], 1
          %s4014 = smul.u32 4, 192
          %s4015 = smul.u32 %s4014, 3
          %s4016 = sshll.u32 %s4015, 4
          %4017 = dma.done %s4013, %s4016
        $region104: #{tpu_custom_call.1} parent=59 // pred_fallthru
          _
        %v4018 = vld [vmem:[#allocation13] sm:$0x7]
        %v4019 = vld [vmem:[#allocation15] sm:$0x7]
        %v4020 = vsel %vm559, %v4003, 0.0
        %v4021 = vsel %vm559, %v4004, 0.0
        %v4022 = vadd.f32 %v4020, %v4021
        %v4023 = vsel %vm559, %v4005, 0.0
        %v4024 = vadd.f32 %v4022, %v4023
        %4025 = vadd.xlane.f32.xlu0 %v4024
        %v4026 = vpop.xlane.xlu0 %4025
        %v4027 = vmul.f32 %v4026, %v567
        %v4028 = vsub.f32 %v4003, %v4027
        %v4029 = vsub.f32 %v4004, %v4027
        %v4030 = vsub.f32 %v4005, %v4027
        %v4031 = vmul.f32 %v4028, %v4028
        %v4032 = vmul.f32 %v4029, %v4029
        %v4033 = vmul.f32 %v4030, %v4030
        %v4034 = vsel %vm559, %v4031, 0.0
        %v4035 = vsel %vm559, %v4032, 0.0
        %v4036 = vadd.f32 %v4034, %v4035
        %v4037 = vsel %vm559, %v4033, 0.0
        %v4038 = vadd.f32 %v4036, %v4037
        %4039 = vadd.xlane.f32.xlu0 %v4038
        %v4040 = vpop.xlane.xlu0 %4039
        %v4041 = vmul.f32 %v4040, %v567
        %v4042 = vadd.f32 %v4041, 1e-05
        %v4043 = vrsqrt.pop %v4042
        %v4044 = vmul.f32 %v4028, %v4043
        %v4045 = vmul.f32 %v4029, %v4043
        %v4046 = vmul.f32 %v4030, %v4043
        %v4048 = vlaneseq
        %v4049 = vshrl.u32 %v4048, 7
        %v4050 = vsub.s32 0, %v4049
        %v4051 = vrot.slane %v4018, %v4050
        %v4052 = vlaneseq
        %v4053 = vshrl.u32 %v4052, 7
        %v4054 = vsub.s32 1, %v4053
        %v4055 = vrot.slane %v4018, %v4054
        %v4056 = vlaneseq
        %v4057 = vshrl.u32 %v4056, 7
        %v4058 = vsub.s32 2, %v4057
        %v4059 = vrot.slane %v4018, %v4058
        %v4063 = vmul.f32 %v4044, %v4051
        %v4064 = vmul.f32 %v4045, %v4055
        %v4065 = vmul.f32 %v4046, %v4059
        %v4067 = vlaneseq
        %v4068 = vshrl.u32 %v4067, 7
        %v4069 = vsub.s32 0, %v4068
        %v4070 = vrot.slane %v4019, %v4069
        %v4071 = vlaneseq
        %v4072 = vshrl.u32 %v4071, 7
        %v4073 = vsub.s32 1, %v4072
        %v4074 = vrot.slane %v4019, %v4073
        %v4075 = vlaneseq
        %v4076 = vshrl.u32 %v4075, 7
        %v4077 = vsub.s32 2, %v4076
        %v4078 = vrot.slane %v4019, %v4077
        %v4082 = vadd.f32 %v4063, %v4070
        %v4083 = vadd.f32 %v4064, %v4074
        %v4084 = vadd.f32 %v4065, %v4078
        %v4085 = vpack.c.bf16 %v4082, %v4082
        %v4086 = vpack.c.bf16 %v4083, %v4083
        %v4087 = vpack.c.bf16 %v4084, %v4084
        %v4088 = vld [vmem:[#allocation2] sm:$0xff]
        %v4089 = vld [vmem:[#allocation2 + $0x8] sm:$0xff]
        %v4090 = vld [vmem:[#allocation2 + $0x10] sm:$0xff]
        %v4091 = vld [vmem:[#allocation2 + $0x18] sm:$0xff]
        %v4092 = vld [vmem:[#allocation2 + $0x20] sm:$0xff]
        %v4093 = vld [vmem:[#allocation2 + $0x28] sm:$0xff]
        %v4094 = vld [vmem:[#allocation2 + $0x30] sm:$0xff]
        %v4095 = vld [vmem:[#allocation2 + $0x38] sm:$0xff]
        %v4096 = vld [vmem:[#allocation2 + $0x40] sm:$0xff]
        %v4097 = vld [vmem:[#allocation2 + $0x48] sm:$0xff]
        %v4098 = vld [vmem:[#allocation2 + $0x50] sm:$0xff]
        %v4099 = vld [vmem:[#allocation2 + $0x58] sm:$0xff]
        %v4100 = vld [vmem:[#allocation2 + $0x60] sm:$0xff]
        %v4101 = vld [vmem:[#allocation2 + $0x68] sm:$0xff]
        %v4102 = vld [vmem:[#allocation2 + $0x70] sm:$0xff]
        %v4103 = vld [vmem:[#allocation2 + $0x78] sm:$0xff]
        %v4104 = vld [vmem:[#allocation2 + $0x80] sm:$0xff]
        %v4105 = vld [vmem:[#allocation2 + $0x88] sm:$0xff]
        %v4106 = vld [vmem:[#allocation2 + $0x90] sm:$0xff]
        %v4107 = vld [vmem:[#allocation2 + $0x98] sm:$0xff]
        %v4108 = vld [vmem:[#allocation2 + $0xa0] sm:$0xff]
        %v4109 = vld [vmem:[#allocation2 + $0xa8] sm:$0xff]
        %v4110 = vld [vmem:[#allocation2 + $0xb0] sm:$0xff]
        %v4111 = vld [vmem:[#allocation2 + $0xb8] sm:$0xff]
        %v4112 = vld [vmem:[#allocation2 + $0xc0] sm:$0xff]
        %v4113 = vld [vmem:[#allocation2 + $0xc8] sm:$0xff]
        %v4114 = vld [vmem:[#allocation2 + $0xd0] sm:$0xff]
        %v4115 = vld [vmem:[#allocation2 + $0xd8] sm:$0xff]
        %v4116 = vld [vmem:[#allocation2 + $0xe0] sm:$0xff]
        %v4117 = vld [vmem:[#allocation2 + $0xe8] sm:$0xff]
        %v4118 = vld [vmem:[#allocation2 + $0xf0] sm:$0xff]
        %v4119 = vld [vmem:[#allocation2 + $0xf8] sm:$0xff]
        %v4120 = vld [vmem:[#allocation2 + $0x100] sm:$0xff]
        %v4121 = vld [vmem:[#allocation2 + $0x108] sm:$0xff]
        %v4122 = vld [vmem:[#allocation2 + $0x110] sm:$0xff]
        %v4123 = vld [vmem:[#allocation2 + $0x118] sm:$0xff]
        %v4124 = vld [vmem:[#allocation2 + $0x120] sm:$0xff]
        %v4125 = vld [vmem:[#allocation2 + $0x128] sm:$0xff]
        %v4126 = vld [vmem:[#allocation2 + $0x130] sm:$0xff]
        %v4127 = vld [vmem:[#allocation2 + $0x138] sm:$0xff]
        %v4128 = vld [vmem:[#allocation2 + $0x140] sm:$0xff]
        %v4129 = vld [vmem:[#allocation2 + $0x148] sm:$0xff]
        %v4130 = vld [vmem:[#allocation2 + $0x150] sm:$0xff]
        %v4131 = vld [vmem:[#allocation2 + $0x158] sm:$0xff]
        %v4132 = vld [vmem:[#allocation2 + $0x160] sm:$0xff]
        %v4133 = vld [vmem:[#allocation2 + $0x168] sm:$0xff]
        %v4134 = vld [vmem:[#allocation2 + $0x170] sm:$0xff]
        %v4135 = vld [vmem:[#allocation2 + $0x178] sm:$0xff]
        %v4136 = vld [vmem:[#allocation2 + $0x180] sm:$0xff]
        %v4137 = vld [vmem:[#allocation2 + $0x188] sm:$0xff]
        %v4138 = vld [vmem:[#allocation2 + $0x190] sm:$0xff]
        %v4139 = vld [vmem:[#allocation2 + $0x198] sm:$0xff]
        %v4140 = vld [vmem:[#allocation2 + $0x1a0] sm:$0xff]
        %v4141 = vld [vmem:[#allocation2 + $0x1a8] sm:$0xff]
        %v4142 = vld [vmem:[#allocation2 + $0x1b0] sm:$0xff]
        %v4143 = vld [vmem:[#allocation2 + $0x1b8] sm:$0xff]
        %v4144 = vld [vmem:[#allocation2 + $0x1c0] sm:$0xff]
        %v4145 = vld [vmem:[#allocation2 + $0x1c8] sm:$0xff]
        %v4146 = vld [vmem:[#allocation2 + $0x1d0] sm:$0xff]
        %v4147 = vld [vmem:[#allocation2 + $0x1d8] sm:$0xff]
        %v4148 = vld [vmem:[#allocation2 + $0x1e0] sm:$0xff]
        %v4149 = vld [vmem:[#allocation2 + $0x1e8] sm:$0xff]
        %v4150 = vld [vmem:[#allocation2 + $0x1f0] sm:$0xff]
        %v4151 = vld [vmem:[#allocation2 + $0x1f8] sm:$0xff]
        %v4152 = vld [vmem:[#allocation2 + $0x200] sm:$0xff]
        %v4153 = vld [vmem:[#allocation2 + $0x208] sm:$0xff]
        %v4154 = vld [vmem:[#allocation2 + $0x210] sm:$0xff]
        %v4155 = vld [vmem:[#allocation2 + $0x218] sm:$0xff]
        %v4156 = vld [vmem:[#allocation2 + $0x220] sm:$0xff]
        %v4157 = vld [vmem:[#allocation2 + $0x228] sm:$0xff]
        %v4158 = vld [vmem:[#allocation2 + $0x230] sm:$0xff]
        %v4159 = vld [vmem:[#allocation2 + $0x238] sm:$0xff]
        %v4160 = vld [vmem:[#allocation2 + $0x240] sm:$0xff]
        %v4161 = vld [vmem:[#allocation2 + $0x248] sm:$0xff]
        %v4162 = vld [vmem:[#allocation2 + $0x250] sm:$0xff]
        %v4163 = vld [vmem:[#allocation2 + $0x258] sm:$0xff]
        %v4164 = vld [vmem:[#allocation2 + $0x260] sm:$0xff]
        %v4165 = vld [vmem:[#allocation2 + $0x268] sm:$0xff]
        %v4166 = vld [vmem:[#allocation2 + $0x270] sm:$0xff]
        %v4167 = vld [vmem:[#allocation2 + $0x278] sm:$0xff]
        %v4168 = vld [vmem:[#allocation2 + $0x280] sm:$0xff]
        %v4169 = vld [vmem:[#allocation2 + $0x288] sm:$0xff]
        %v4170 = vld [vmem:[#allocation2 + $0x290] sm:$0xff]
        %v4171 = vld [vmem:[#allocation2 + $0x298] sm:$0xff]
        %v4172 = vld [vmem:[#allocation2 + $0x2a0] sm:$0xff]
        %v4173 = vld [vmem:[#allocation2 + $0x2a8] sm:$0xff]
        %v4174 = vld [vmem:[#allocation2 + $0x2b0] sm:$0xff]
        %v4175 = vld [vmem:[#allocation2 + $0x2b8] sm:$0xff]
        %v4176 = vld [vmem:[#allocation2 + $0x2c0] sm:$0xff]
        %v4177 = vld [vmem:[#allocation2 + $0x2c8] sm:$0xff]
        %v4178 = vld [vmem:[#allocation2 + $0x2d0] sm:$0xff]
        %v4179 = vld [vmem:[#allocation2 + $0x2d8] sm:$0xff]
        %v4180 = vld [vmem:[#allocation2 + $0x2e0] sm:$0xff]
        %v4181 = vld [vmem:[#allocation2 + $0x2e8] sm:$0xff]
        %v4182 = vld [vmem:[#allocation2 + $0x2f0] sm:$0xff]
        %v4183 = vld [vmem:[#allocation2 + $0x2f8] sm:$0xff]
        %v4184 = vld [vmem:[#allocation2 + $0x300] sm:$0xff]
        %v4185 = vld [vmem:[#allocation2 + $0x308] sm:$0xff]
        %v4186 = vld [vmem:[#allocation2 + $0x310] sm:$0xff]
        %v4187 = vld [vmem:[#allocation2 + $0x318] sm:$0xff]
        %v4188 = vld [vmem:[#allocation2 + $0x320] sm:$0xff]
        %v4189 = vld [vmem:[#allocation2 + $0x328] sm:$0xff]
        %v4190 = vld [vmem:[#allocation2 + $0x330] sm:$0xff]
        %v4191 = vld [vmem:[#allocation2 + $0x338] sm:$0xff]
        %v4192 = vld [vmem:[#allocation2 + $0x340] sm:$0xff]
        %v4193 = vld [vmem:[#allocation2 + $0x348] sm:$0xff]
        %v4194 = vld [vmem:[#allocation2 + $0x350] sm:$0xff]
        %v4195 = vld [vmem:[#allocation2 + $0x358] sm:$0xff]
        %v4196 = vld [vmem:[#allocation2 + $0x360] sm:$0xff]
        %v4197 = vld [vmem:[#allocation2 + $0x368] sm:$0xff]
        %v4198 = vld [vmem:[#allocation2 + $0x370] sm:$0xff]
        %v4199 = vld [vmem:[#allocation2 + $0x378] sm:$0xff]
        %v4200 = vld [vmem:[#allocation2 + $0x380] sm:$0xff]
        %v4201 = vld [vmem:[#allocation2 + $0x388] sm:$0xff]
        %v4202 = vld [vmem:[#allocation2 + $0x390] sm:$0xff]
        %v4203 = vld [vmem:[#allocation2 + $0x398] sm:$0xff]
        %v4204 = vld [vmem:[#allocation2 + $0x3a0] sm:$0xff]
        %v4205 = vld [vmem:[#allocation2 + $0x3a8] sm:$0xff]
        %v4206 = vld [vmem:[#allocation2 + $0x3b0] sm:$0xff]
        %v4207 = vld [vmem:[#allocation2 + $0x3b8] sm:$0xff]
        %v4208 = vld [vmem:[#allocation2 + $0x3c0] sm:$0xff]
        %v4209 = vld [vmem:[#allocation2 + $0x3c8] sm:$0xff]
        %v4210 = vld [vmem:[#allocation2 + $0x3d0] sm:$0xff]
        %v4211 = vld [vmem:[#allocation2 + $0x3d8] sm:$0xff]
        %v4212 = vld [vmem:[#allocation2 + $0x3e0] sm:$0xff]
        %v4213 = vld [vmem:[#allocation2 + $0x3e8] sm:$0xff]
        %v4214 = vld [vmem:[#allocation2 + $0x3f0] sm:$0xff]
        %v4215 = vld [vmem:[#allocation2 + $0x3f8] sm:$0xff]
        %v4216 = vld [vmem:[#allocation2 + $0x400] sm:$0xff]
        %v4217 = vld [vmem:[#allocation2 + $0x408] sm:$0xff]
        %v4218 = vld [vmem:[#allocation2 + $0x410] sm:$0xff]
        %v4219 = vld [vmem:[#allocation2 + $0x418] sm:$0xff]
        %v4220 = vld [vmem:[#allocation2 + $0x420] sm:$0xff]
        %v4221 = vld [vmem:[#allocation2 + $0x428] sm:$0xff]
        %v4222 = vld [vmem:[#allocation2 + $0x430] sm:$0xff]
        %v4223 = vld [vmem:[#allocation2 + $0x438] sm:$0xff]
        %v4224 = vld [vmem:[#allocation2 + $0x440] sm:$0xff]
        %v4225 = vld [vmem:[#allocation2 + $0x448] sm:$0xff]
        %v4226 = vld [vmem:[#allocation2 + $0x450] sm:$0xff]
        %v4227 = vld [vmem:[#allocation2 + $0x458] sm:$0xff]
        %v4228 = vld [vmem:[#allocation2 + $0x460] sm:$0xff]
        %v4229 = vld [vmem:[#allocation2 + $0x468] sm:$0xff]
        %v4230 = vld [vmem:[#allocation2 + $0x470] sm:$0xff]
        %v4231 = vld [vmem:[#allocation2 + $0x478] sm:$0xff]
        %v4232 = vld [vmem:[#allocation2 + $0x480] sm:$0xff]
        %v4233 = vld [vmem:[#allocation2 + $0x488] sm:$0xff]
        %v4234 = vld [vmem:[#allocation2 + $0x490] sm:$0xff]
        %v4235 = vld [vmem:[#allocation2 + $0x498] sm:$0xff]
        %v4236 = vld [vmem:[#allocation2 + $0x4a0] sm:$0xff]
        %v4237 = vld [vmem:[#allocation2 + $0x4a8] sm:$0xff]
        %v4238 = vld [vmem:[#allocation2 + $0x4b0] sm:$0xff]
        %v4239 = vld [vmem:[#allocation2 + $0x4b8] sm:$0xff]
        %v4240 = vld [vmem:[#allocation2 + $0x4c0] sm:$0xff]
        %v4241 = vld [vmem:[#allocation2 + $0x4c8] sm:$0xff]
        %v4242 = vld [vmem:[#allocation2 + $0x4d0] sm:$0xff]
        %v4243 = vld [vmem:[#allocation2 + $0x4d8] sm:$0xff]
        %v4244 = vld [vmem:[#allocation2 + $0x4e0] sm:$0xff]
        %v4245 = vld [vmem:[#allocation2 + $0x4e8] sm:$0xff]
        %v4246 = vld [vmem:[#allocation2 + $0x4f0] sm:$0xff]
        %v4247 = vld [vmem:[#allocation2 + $0x4f8] sm:$0xff]
        %v4248 = vld [vmem:[#allocation2 + $0x500] sm:$0xff]
        %v4249 = vld [vmem:[#allocation2 + $0x508] sm:$0xff]
        %v4250 = vld [vmem:[#allocation2 + $0x510] sm:$0xff]
        %v4251 = vld [vmem:[#allocation2 + $0x518] sm:$0xff]
        %v4252 = vld [vmem:[#allocation2 + $0x520] sm:$0xff]
        %v4253 = vld [vmem:[#allocation2 + $0x528] sm:$0xff]
        %v4254 = vld [vmem:[#allocation2 + $0x530] sm:$0xff]
        %v4255 = vld [vmem:[#allocation2 + $0x538] sm:$0xff]
        %v4256 = vld [vmem:[#allocation2 + $0x540] sm:$0xff]
        %v4257 = vld [vmem:[#allocation2 + $0x548] sm:$0xff]
        %v4258 = vld [vmem:[#allocation2 + $0x550] sm:$0xff]
        %v4259 = vld [vmem:[#allocation2 + $0x558] sm:$0xff]
        %v4260 = vld [vmem:[#allocation2 + $0x560] sm:$0xff]
        %v4261 = vld [vmem:[#allocation2 + $0x568] sm:$0xff]
        %v4262 = vld [vmem:[#allocation2 + $0x570] sm:$0xff]
        %v4263 = vld [vmem:[#allocation2 + $0x578] sm:$0xff]
        %v4264 = vld [vmem:[#allocation2 + $0x580] sm:$0xff]
        %v4265 = vld [vmem:[#allocation2 + $0x588] sm:$0xff]
        %v4266 = vld [vmem:[#allocation2 + $0x590] sm:$0xff]
        %v4267 = vld [vmem:[#allocation2 + $0x598] sm:$0xff]
        %v4268 = vld [vmem:[#allocation2 + $0x5a0] sm:$0xff]
        %v4269 = vld [vmem:[#allocation2 + $0x5a8] sm:$0xff]
        %v4270 = vld [vmem:[#allocation2 + $0x5b0] sm:$0xff]
        %v4271 = vld [vmem:[#allocation2 + $0x5b8] sm:$0xff]
        %v4272 = vld [vmem:[#allocation2 + $0x5c0] sm:$0xff]
        %v4273 = vld [vmem:[#allocation2 + $0x5c8] sm:$0xff]
        %v4274 = vld [vmem:[#allocation2 + $0x5d0] sm:$0xff]
        %v4275 = vld [vmem:[#allocation2 + $0x5d8] sm:$0xff]
        %v4276 = vld [vmem:[#allocation2 + $0x5e0] sm:$0xff]
        %v4277 = vld [vmem:[#allocation2 + $0x5e8] sm:$0xff]
        %v4278 = vld [vmem:[#allocation2 + $0x5f0] sm:$0xff]
        %v4279 = vld [vmem:[#allocation2 + $0x5f8] sm:$0xff]
        %v4280 = vld [vmem:[#allocation2 + $0x600] sm:$0xff]
        %v4281 = vld [vmem:[#allocation2 + $0x608] sm:$0xff]
        %v4282 = vld [vmem:[#allocation2 + $0x610] sm:$0xff]
        %v4283 = vld [vmem:[#allocation2 + $0x618] sm:$0xff]
        %v4284 = vld [vmem:[#allocation2 + $0x620] sm:$0xff]
        %v4285 = vld [vmem:[#allocation2 + $0x628] sm:$0xff]
        %v4286 = vld [vmem:[#allocation2 + $0x630] sm:$0xff]
        %v4287 = vld [vmem:[#allocation2 + $0x638] sm:$0xff]
        %v4288 = vld [vmem:[#allocation2 + $0x640] sm:$0xff]
        %v4289 = vld [vmem:[#allocation2 + $0x648] sm:$0xff]
        %v4290 = vld [vmem:[#allocation2 + $0x650] sm:$0xff]
        %v4291 = vld [vmem:[#allocation2 + $0x658] sm:$0xff]
        %v4292 = vld [vmem:[#allocation2 + $0x660] sm:$0xff]
        %v4293 = vld [vmem:[#allocation2 + $0x668] sm:$0xff]
        %v4294 = vld [vmem:[#allocation2 + $0x670] sm:$0xff]
        %v4295 = vld [vmem:[#allocation2 + $0x678] sm:$0xff]
        %v4296 = vld [vmem:[#allocation2 + $0x680] sm:$0xff]
        %v4297 = vld [vmem:[#allocation2 + $0x688] sm:$0xff]
        %v4298 = vld [vmem:[#allocation2 + $0x690] sm:$0xff]
        %v4299 = vld [vmem:[#allocation2 + $0x698] sm:$0xff]
        %v4300 = vld [vmem:[#allocation2 + $0x6a0] sm:$0xff]
        %v4301 = vld [vmem:[#allocation2 + $0x6a8] sm:$0xff]
        %v4302 = vld [vmem:[#allocation2 + $0x6b0] sm:$0xff]
        %v4303 = vld [vmem:[#allocation2 + $0x6b8] sm:$0xff]
        %v4304 = vld [vmem:[#allocation2 + $0x6c0] sm:$0xff]
        %v4305 = vld [vmem:[#allocation2 + $0x6c8] sm:$0xff]
        %v4306 = vld [vmem:[#allocation2 + $0x6d0] sm:$0xff]
        %v4307 = vld [vmem:[#allocation2 + $0x6d8] sm:$0xff]
        %v4308 = vld [vmem:[#allocation2 + $0x6e0] sm:$0xff]
        %v4309 = vld [vmem:[#allocation2 + $0x6e8] sm:$0xff]
        %v4310 = vld [vmem:[#allocation2 + $0x6f0] sm:$0xff]
        %v4311 = vld [vmem:[#allocation2 + $0x6f8] sm:$0xff]
        %v4312 = vld [vmem:[#allocation2 + $0x700] sm:$0xff]
        %v4313 = vld [vmem:[#allocation2 + $0x708] sm:$0xff]
        %v4314 = vld [vmem:[#allocation2 + $0x710] sm:$0xff]
        %v4315 = vld [vmem:[#allocation2 + $0x718] sm:$0xff]
        %v4316 = vld [vmem:[#allocation2 + $0x720] sm:$0xff]
        %v4317 = vld [vmem:[#allocation2 + $0x728] sm:$0xff]
        %v4318 = vld [vmem:[#allocation2 + $0x730] sm:$0xff]
        %v4319 = vld [vmem:[#allocation2 + $0x738] sm:$0xff]
        %v4320 = vld [vmem:[#allocation2 + $0x740] sm:$0xff]
        %v4321 = vld [vmem:[#allocation2 + $0x748] sm:$0xff]
        %v4322 = vld [vmem:[#allocation2 + $0x750] sm:$0xff]
        %v4323 = vld [vmem:[#allocation2 + $0x758] sm:$0xff]
        %v4324 = vld [vmem:[#allocation2 + $0x760] sm:$0xff]
        %v4325 = vld [vmem:[#allocation2 + $0x768] sm:$0xff]
        %v4326 = vld [vmem:[#allocation2 + $0x770] sm:$0xff]
        %v4327 = vld [vmem:[#allocation2 + $0x778] sm:$0xff]
        %v4328 = vld [vmem:[#allocation2 + $0x780] sm:$0xff]
        %v4329 = vld [vmem:[#allocation2 + $0x788] sm:$0xff]
        %v4330 = vld [vmem:[#allocation2 + $0x790] sm:$0xff]
        %v4331 = vld [vmem:[#allocation2 + $0x798] sm:$0xff]
        %v4332 = vld [vmem:[#allocation2 + $0x7a0] sm:$0xff]
        %v4333 = vld [vmem:[#allocation2 + $0x7a8] sm:$0xff]
        %v4334 = vld [vmem:[#allocation2 + $0x7b0] sm:$0xff]
        %v4335 = vld [vmem:[#allocation2 + $0x7b8] sm:$0xff]
        %v4336 = vld [vmem:[#allocation2 + $0x7c0] sm:$0xff]
        %v4337 = vld [vmem:[#allocation2 + $0x7c8] sm:$0xff]
        %v4338 = vld [vmem:[#allocation2 + $0x7d0] sm:$0xff]
        %v4339 = vld [vmem:[#allocation2 + $0x7d8] sm:$0xff]
        %v4340 = vld [vmem:[#allocation2 + $0x7e0] sm:$0xff]
        %v4341 = vld [vmem:[#allocation2 + $0x7e8] sm:$0xff]
        %v4342 = vld [vmem:[#allocation2 + $0x7f0] sm:$0xff]
        %v4343 = vld [vmem:[#allocation2 + $0x7f8] sm:$0xff]
        %v4344 = vld [vmem:[#allocation2 + $0x800] sm:$0xff]
        %v4345 = vld [vmem:[#allocation2 + $0x808] sm:$0xff]
        %v4346 = vld [vmem:[#allocation2 + $0x810] sm:$0xff]
        %v4347 = vld [vmem:[#allocation2 + $0x818] sm:$0xff]
        %v4348 = vld [vmem:[#allocation2 + $0x820] sm:$0xff]
        %v4349 = vld [vmem:[#allocation2 + $0x828] sm:$0xff]
        %v4350 = vld [vmem:[#allocation2 + $0x830] sm:$0xff]
        %v4351 = vld [vmem:[#allocation2 + $0x838] sm:$0xff]
        %v4352 = vld [vmem:[#allocation2 + $0x840] sm:$0xff]
        %v4353 = vld [vmem:[#allocation2 + $0x848] sm:$0xff]
        %v4354 = vld [vmem:[#allocation2 + $0x850] sm:$0xff]
        %v4355 = vld [vmem:[#allocation2 + $0x858] sm:$0xff]
        %v4356 = vld [vmem:[#allocation2 + $0x860] sm:$0xff]
        %v4357 = vld [vmem:[#allocation2 + $0x868] sm:$0xff]
        %v4358 = vld [vmem:[#allocation2 + $0x870] sm:$0xff]
        %v4359 = vld [vmem:[#allocation2 + $0x878] sm:$0xff]
        %v4360 = vld [vmem:[#allocation2 + $0x880] sm:$0xff]
        %v4361 = vld [vmem:[#allocation2 + $0x888] sm:$0xff]
        %v4362 = vld [vmem:[#allocation2 + $0x890] sm:$0xff]
        %v4363 = vld [vmem:[#allocation2 + $0x898] sm:$0xff]
        %v4364 = vld [vmem:[#allocation2 + $0x8a0] sm:$0xff]
        %v4365 = vld [vmem:[#allocation2 + $0x8a8] sm:$0xff]
        %v4366 = vld [vmem:[#allocation2 + $0x8b0] sm:$0xff]
        %v4367 = vld [vmem:[#allocation2 + $0x8b8] sm:$0xff]
        %v4368 = vld [vmem:[#allocation2 + $0x8c0] sm:$0xff]
        %v4369 = vld [vmem:[#allocation2 + $0x8c8] sm:$0xff]
        %v4370 = vld [vmem:[#allocation2 + $0x8d0] sm:$0xff]
        %v4371 = vld [vmem:[#allocation2 + $0x8d8] sm:$0xff]
        %v4372 = vld [vmem:[#allocation2 + $0x8e0] sm:$0xff]
        %v4373 = vld [vmem:[#allocation2 + $0x8e8] sm:$0xff]
        %v4374 = vld [vmem:[#allocation2 + $0x8f0] sm:$0xff]
        %v4375 = vld [vmem:[#allocation2 + $0x8f8] sm:$0xff]
        %v4376 = vld [vmem:[#allocation16] sm:$0xff]
        %v4377 = vld [vmem:[#allocation16 + $0x8] sm:$0xf]
        %v4380 = vlaneseq
        %v4381 = vshrl.u32 %v4380, 7
        %v4382 = vsub.s32 0, %v4381
        %v4383 = vrot.slane %v4376, %v4382
        %v4384 = vlaneseq
        %v4385 = vshrl.u32 %v4384, 7
        %v4386 = vsub.s32 1, %v4385
        %v4387 = vrot.slane %v4376, %v4386
        %v4388 = vlaneseq
        %v4389 = vshrl.u32 %v4388, 7
        %v4390 = vsub.s32 2, %v4389
        %v4391 = vrot.slane %v4376, %v4390
        %v4392 = vlaneseq
        %v4393 = vshrl.u32 %v4392, 7
        %v4394 = vsub.s32 3, %v4393
        %v4395 = vrot.slane %v4376, %v4394
        %v4396 = vlaneseq
        %v4397 = vshrl.u32 %v4396, 7
        %v4398 = vsub.s32 4, %v4397
        %v4399 = vrot.slane %v4376, %v4398
        %v4400 = vlaneseq
        %v4401 = vshrl.u32 %v4400, 7
        %v4402 = vsub.s32 5, %v4401
        %v4403 = vrot.slane %v4376, %v4402
        %v4404 = vlaneseq
        %v4405 = vshrl.u32 %v4404, 7
        %v4406 = vsub.s32 6, %v4405
        %v4407 = vrot.slane %v4376, %v4406
        %v4408 = vlaneseq
        %v4409 = vshrl.u32 %v4408, 7
        %v4410 = vsub.s32 7, %v4409
        %v4411 = vrot.slane %v4376, %v4410
        %v4412 = vlaneseq
        %v4413 = vshrl.u32 %v4412, 7
        %v4414 = vsub.s32 0, %v4413
        %v4415 = vrot.slane %v4377, %v4414
        %v4416 = vlaneseq
        %v4417 = vshrl.u32 %v4416, 7
        %v4418 = vsub.s32 1, %v4417
        %v4419 = vrot.slane %v4377, %v4418
        %v4420 = vlaneseq
        %v4421 = vshrl.u32 %v4420, 7
        %v4422 = vsub.s32 2, %v4421
        %v4423 = vrot.slane %v4377, %v4422
        %v4424 = vlaneseq
        %v4425 = vshrl.u32 %v4424, 7
        %v4426 = vsub.s32 3, %v4425
        %v4427 = vrot.slane %v4377, %v4426
        %4440 = vmatprep.subr.bf16.mxu0 %v4089
        %4441 = vmatpush1.bf16.msra.mxu0 %v4088
        %4442 = vmatprep.subr.bf16.mxu0 %v4101
        %4443 = vmatpush1.bf16.msra.mxu0 %v4100
        %4444 = vmatprep.subr.bf16.mxu0 %v4113
        %4445 = vmatpush1.bf16.msra.mxu0 %v4112
        %4446 = vmatprep.subr.bf16.mxu0 %v4125
        %4447 = vmatpush1.bf16.msra.mxu0 %v4124
        %4448 = vmatprep.subr.bf16.mxu0 %v4137
        %4449 = vmatpush1.bf16.msra.mxu0 %v4136
        %4450 = vmatprep.subr.bf16.mxu0 %v4149
        %4451 = vmatpush1.bf16.msra.mxu0 %v4148
        %4452 = vmatprep.subr.bf16.mxu0 %v4161
        %4453 = vmatpush1.bf16.msra.mxu0 %v4160
        %4454 = vmatprep.subr.bf16.mxu0 %v4173
        %4455 = vmatpush1.bf16.msra.mxu0 %v4172
        %4456 = vmatprep.subr.bf16.mxu0 %v4185
        %4457 = vmatpush1.bf16.msra.mxu0 %v4184
        %4458 = vmatprep.subr.bf16.mxu0 %v4197
        %4459 = vmatpush1.bf16.msra.mxu0 %v4196
        %4460 = vmatprep.subr.bf16.mxu0 %v4209
        %4461 = vmatpush1.bf16.msra.mxu0 %v4208
        %4462 = vmatprep.subr.bf16.mxu0 %v4221
        %4463 = vmatpush1.bf16.msra.mxu0 %v4220
        %4464 = vmatprep.subr.bf16.mxu0 %v4233
        %4465 = vmatpush1.bf16.msra.mxu0 %v4232
        %4466 = vmatprep.subr.bf16.mxu0 %v4245
        %4467 = vmatpush1.bf16.msra.mxu0 %v4244
        %4468 = vmatprep.subr.bf16.mxu0 %v4257
        %4469 = vmatpush1.bf16.msra.mxu0 %v4256
        %4470 = vmatprep.subr.bf16.mxu0 %v4269
        %4471 = vmatpush1.bf16.msra.mxu0 %v4268
        %4472 = vmatprep.mubr.bf16.mxu0 %v4086
        %4473 = vmatmul.mubr.bf16.gmra.mrb[0].mxu0 %v4085
        %v4474 = vpop.f32.mrb[0].mxu0
        %v4475 = vadd.f32 %v4383, %v4474
        %v4476 = vpop.f32.mrb[0].mxu0
        %v4477 = vadd.f32 %v4387, %v4476
        %v4478 = vpop.f32.mrb[0].mxu0
        %v4479 = vpop.f32.mrb[0].mxu0
        %4480 = vdwg.mxu0
        %4481 = vmatprep.subr.bf16.mxu0 %v4281
        %4482 = vmatpush1.bf16.msra.mxu0 %v4280
        %4483 = vmatprep.subr.bf16.mxu0 %v4293
        %4484 = vmatpush1.bf16.msra.mxu0 %v4292
        %4485 = vmatprep.subr.bf16.mxu0 %v4305
        %4486 = vmatpush1.bf16.msra.mxu0 %v4304
        %4487 = vmatprep.subr.bf16.mxu0 %v4317
        %4488 = vmatpush1.bf16.msra.mxu0 %v4316
        %4489 = vmatprep.subr.bf16.mxu0 %v4329
        %4490 = vmatpush1.bf16.msra.mxu0 %v4328
        %4491 = vmatprep.subr.bf16.mxu0 %v4341
        %4492 = vmatpush1.bf16.msra.mxu0 %v4340
        %4493 = vmatprep.subr.bf16.mxu0 %v4353
        %4494 = vmatpush1.bf16.msra.mxu0 %v4352
        %4495 = vmatprep.subr.bf16.mxu0 %v4365
        %4496 = vmatpush1.bf16.msra.mxu0 %v4364
        %4497 = vmatprep.subr.bf16.mxu0 0
        %4498 = vmatpush1.bf16.msra.mxu0 0
        %4499 = vmatprep.subr.bf16.mxu0 0
        %4500 = vmatpush1.bf16.msra.mxu0 0
        %4501 = vmatprep.subr.bf16.mxu0 0
        %4502 = vmatpush1.bf16.msra.mxu0 0
        %4503 = vmatprep.subr.bf16.mxu0 0
        %4504 = vmatpush1.bf16.msra.mxu0 0
        %4505 = vmatprep.subr.bf16.mxu0 0
        %4506 = vmatpush1.bf16.msra.mxu0 0
        %4507 = vmatprep.subr.bf16.mxu0 0
        %4508 = vmatpush1.bf16.msra.mxu0 0
        %4509 = vmatprep.subr.bf16.mxu0 0
        %4510 = vmatpush1.bf16.msra.mxu0 0
        %4511 = vmatprep.subr.bf16.mxu0 0
        %4512 = vmatpush1.bf16.msra.mxu0 0
        %4513 = vmatprep.mubr.bf16.mxu0 0
        %4514 = vmatmul.mubr.bf16.gmra.mrb[0].mxu0 %v4087
        %v4515 = vpop.f32.mrb[0].mxu0
        %v4516 = vadd.f32 %v4475, %v4515
        %v4517 = vpop.f32.mrb[0].mxu0
        %v4518 = vadd.f32 %v4477, %v4517
        %v4519 = vpop.f32.mrb[0].mxu0
        %v4520 = vpop.f32.mrb[0].mxu0
        %4521 = vdwg.mxu0
        %4522 = vmatprep.subr.bf16.mxu0 %v4091
        %4523 = vmatpush1.bf16.msra.mxu0 %v4090
        %4524 = vmatprep.subr.bf16.mxu0 %v4103
        %4525 = vmatpush1.bf16.msra.mxu0 %v4102
        %4526 = vmatprep.subr.bf16.mxu0 %v4115
        %4527 = vmatpush1.bf16.msra.mxu0 %v4114
        %4528 = vmatprep.subr.bf16.mxu0 %v4127
        %4529 = vmatpush1.bf16.msra.mxu0 %v4126
        %4530 = vmatprep.subr.bf16.mxu0 %v4139
        %4531 = vmatpush1.bf16.msra.mxu0 %v4138
        %4532 = vmatprep.subr.bf16.mxu0 %v4151
        %4533 = vmatpush1.bf16.msra.mxu0 %v4150
        %4534 = vmatprep.subr.bf16.mxu0 %v4163
        %4535 = vmatpush1.bf16.msra.mxu0 %v4162
        %4536 = vmatprep.subr.bf16.mxu0 %v4175
        %4537 = vmatpush1.bf16.msra.mxu0 %v4174
        %4538 = vmatprep.subr.bf16.mxu0 %v4187
        %4539 = vmatpush1.bf16.msra.mxu0 %v4186
        %4540 = vmatprep.subr.bf16.mxu0 %v4199
        %4541 = vmatpush1.bf16.msra.mxu0 %v4198
        %4542 = vmatprep.subr.bf16.mxu0 %v4211
        %4543 = vmatpush1.bf16.msra.mxu0 %v4210
        %4544 = vmatprep.subr.bf16.mxu0 %v4223
        %4545 = vmatpush1.bf16.msra.mxu0 %v4222
        %4546 = vmatprep.subr.bf16.mxu0 %v4235
        %4547 = vmatpush1.bf16.msra.mxu0 %v4234
        %4548 = vmatprep.subr.bf16.mxu0 %v4247
        %4549 = vmatpush1.bf16.msra.mxu0 %v4246
        %4550 = vmatprep.subr.bf16.mxu0 %v4259
        %4551 = vmatpush1.bf16.msra.mxu0 %v4258
        %4552 = vmatprep.subr.bf16.mxu0 %v4271
        %4553 = vmatpush1.bf16.msra.mxu0 %v4270
        %4554 = vmatprep.mubr.bf16.mxu0 %v4086
        %4555 = vmatmul.mubr.bf16.gmra.mrb[0].mxu0 %v4085
        %v4556 = vpop.f32.mrb[0].mxu0
        %v4557 = vadd.f32 %v4391, %v4556
        %v4558 = vpop.f32.mrb[0].mxu0
        %v4559 = vadd.f32 %v4395, %v4558
        %v4560 = vpop.f32.mrb[0].mxu0
        %v4561 = vpop.f32.mrb[0].mxu0
        %4562 = vdwg.mxu0
        %4563 = vmatprep.subr.bf16.mxu0 %v4283
        %4564 = vmatpush1.bf16.msra.mxu0 %v4282
        %4565 = vmatprep.subr.bf16.mxu0 %v4295
        %4566 = vmatpush1.bf16.msra.mxu0 %v4294
        %4567 = vmatprep.subr.bf16.mxu0 %v4307
        %4568 = vmatpush1.bf16.msra.mxu0 %v4306
        %4569 = vmatprep.subr.bf16.mxu0 %v4319
        %4570 = vmatpush1.bf16.msra.mxu0 %v4318
        %4571 = vmatprep.subr.bf16.mxu0 %v4331
        %4572 = vmatpush1.bf16.msra.mxu0 %v4330
        %4573 = vmatprep.subr.bf16.mxu0 %v4343
        %4574 = vmatpush1.bf16.msra.mxu0 %v4342
        %4575 = vmatprep.subr.bf16.mxu0 %v4355
        %4576 = vmatpush1.bf16.msra.mxu0 %v4354
        %4577 = vmatprep.subr.bf16.mxu0 %v4367
        %4578 = vmatpush1.bf16.msra.mxu0 %v4366
        %4579 = vmatprep.subr.bf16.mxu0 0
        %4580 = vmatpush1.bf16.msra.mxu0 0
        %4581 = vmatprep.subr.bf16.mxu0 0
        %4582 = vmatpush1.bf16.msra.mxu0 0
        %4583 = vmatprep.subr.bf16.mxu0 0
        %4584 = vmatpush1.bf16.msra.mxu0 0
        %4585 = vmatprep.subr.bf16.mxu0 0
        %4586 = vmatpush1.bf16.msra.mxu0 0
        %4587 = vmatprep.subr.bf16.mxu0 0
        %4588 = vmatpush1.bf16.msra.mxu0 0
        %4589 = vmatprep.subr.bf16.mxu0 0
        %4590 = vmatpush1.bf16.msra.mxu0 0
        %4591 = vmatprep.subr.bf16.mxu0 0
        %4592 = vmatpush1.bf16.msra.mxu0 0
        %4593 = vmatprep.subr.bf16.mxu0 0
        %4594 = vmatpush1.bf16.msra.mxu0 0
        %4595 = vmatprep.mubr.bf16.mxu0 0
        %4596 = vmatmul.mubr.bf16.gmra.mrb[0].mxu0 %v4087
        %v4597 = vpop.f32.mrb[0].mxu0
        %v4598 = vadd.f32 %v4557, %v4597
        %v4599 = vpop.f32.mrb[0].mxu0
        %v4600 = vadd.f32 %v4559, %v4599
        %v4601 = vpop.f32.mrb[0].mxu0
        %v4602 = vpop.f32.mrb[0].mxu0
        %4603 = vdwg.mxu0
        %4604 = vmatprep.subr.bf16.mxu0 %v4093
        %4605 = vmatpush1.bf16.msra.mxu0 %v4092
        %4606 = vmatprep.subr.bf16.mxu0 %v4105
        %4607 = vmatpush1.bf16.msra.mxu0 %v4104
        %4608 = vmatprep.subr.bf16.mxu0 %v4117
        %4609 = vmatpush1.bf16.msra.mxu0 %v4116
        %4610 = vmatprep.subr.bf16.mxu0 %v4129
        %4611 = vmatpush1.bf16.msra.mxu0 %v4128
        %4612 = vmatprep.subr.bf16.mxu0 %v4141
        %4613 = vmatpush1.bf16.msra.mxu0 %v4140
        %4614 = vmatprep.subr.bf16.mxu0 %v4153
        %4615 = vmatpush1.bf16.msra.mxu0 %v4152
        %4616 = vmatprep.subr.bf16.mxu0 %v4165
        %4617 = vmatpush1.bf16.msra.mxu0 %v4164
        %4618 = vmatprep.subr.bf16.mxu0 %v4177
        %4619 = vmatpush1.bf16.msra.mxu0 %v4176
        %4620 = vmatprep.subr.bf16.mxu0 %v4189
        %4621 = vmatpush1.bf16.msra.mxu0 %v4188
        %4622 = vmatprep.subr.bf16.mxu0 %v4201
        %4623 = vmatpush1.bf16.msra.mxu0 %v4200
        %4624 = vmatprep.subr.bf16.mxu0 %v4213
        %4625 = vmatpush1.bf16.msra.mxu0 %v4212
        %4626 = vmatprep.subr.bf16.mxu0 %v4225
        %4627 = vmatpush1.bf16.msra.mxu0 %v4224
        %4628 = vmatprep.subr.bf16.mxu0 %v4237
        %4629 = vmatpush1.bf16.msra.mxu0 %v4236
        %4630 = vmatprep.subr.bf16.mxu0 %v4249
        %4631 = vmatpush1.bf16.msra.mxu0 %v4248
        %4632 = vmatprep.subr.bf16.mxu0 %v4261
        %4633 = vmatpush1.bf16.msra.mxu0 %v4260
        %4634 = vmatprep.subr.bf16.mxu0 %v4273
        %4635 = vmatpush1.bf16.msra.mxu0 %v4272
        %4636 = vmatprep.mubr.bf16.mxu0 %v4086
        %4637 = vmatmul.mubr.bf16.gmra.mrb[0].mxu0 %v4085
        %v4638 = vpop.f32.mrb[0].mxu0
        %v4639 = vadd.f32 %v4399, %v4638
        %v4640 = vpop.f32.mrb[0].mxu0
        %v4641 = vadd.f32 %v4403, %v4640
        %v4642 = vpop.f32.mrb[0].mxu0
        %v4643 = vpop.f32.mrb[0].mxu0
        %4644 = vdwg.mxu0
        %4645 = vmatprep.subr.bf16.mxu0 %v4285
        %4646 = vmatpush1.bf16.msra.mxu0 %v4284
        %4647 = vmatprep.subr.bf16.mxu0 %v4297
        %4648 = vmatpush1.bf16.msra.mxu0 %v4296
        %4649 = vmatprep.subr.bf16.mxu0 %v4309
        %4650 = vmatpush1.bf16.msra.mxu0 %v4308
        %4651 = vmatprep.subr.bf16.mxu0 %v4321
        %4652 = vmatpush1.bf16.msra.mxu0 %v4320
        %4653 = vmatprep.subr.bf16.mxu0 %v4333
        %4654 = vmatpush1.bf16.msra.mxu0 %v4332
        %4655 = vmatprep.subr.bf16.mxu0 %v4345
        %4656 = vmatpush1.bf16.msra.mxu0 %v4344
        %4657 = vmatprep.subr.bf16.mxu0 %v4357
        %4658 = vmatpush1.bf16.msra.mxu0 %v4356
        %4659 = vmatprep.subr.bf16.mxu0 %v4369
        %4660 = vmatpush1.bf16.msra.mxu0 %v4368
        %4661 = vmatprep.subr.bf16.mxu0 0
        %4662 = vmatpush1.bf16.msra.mxu0 0
        %4663 = vmatprep.subr.bf16.mxu0 0
        %4664 = vmatpush1.bf16.msra.mxu0 0
        %4665 = vmatprep.subr.bf16.mxu0 0
        %4666 = vmatpush1.bf16.msra.mxu0 0
        %4667 = vmatprep.subr.bf16.mxu0 0
        %4668 = vmatpush1.bf16.msra.mxu0 0
        %4669 = vmatprep.subr.bf16.mxu0 0
        %4670 = vmatpush1.bf16.msra.mxu0 0
        %4671 = vmatprep.subr.bf16.mxu0 0
        %4672 = vmatpush1.bf16.msra.mxu0 0
        %4673 = vmatprep.subr.bf16.mxu0 0
        %4674 = vmatpush1.bf16.msra.mxu0 0
        %4675 = vmatprep.subr.bf16.mxu0 0
        %4676 = vmatpush1.bf16.msra.mxu0 0
        %4677 = vmatprep.mubr.bf16.mxu0 0
        %4678 = vmatmul.mubr.bf16.gmra.mrb[0].mxu0 %v4087
        %v4679 = vpop.f32.mrb[0].mxu0
        %v4680 = vadd.f32 %v4639, %v4679
        %v4681 = vpop.f32.mrb[0].mxu0
        %v4682 = vadd.f32 %v4641, %v4681
        %v4683 = vpop.f32.mrb[0].mxu0
        %v4684 = vpop.f32.mrb[0].mxu0
        %4685 = vdwg.mxu0
        %4686 = vmatprep.subr.bf16.mxu0 %v4095
        %4687 = vmatpush1.bf16.msra.mxu0 %v4094
        %4688 = vmatprep.subr.bf16.mxu0 %v4107
        %4689 = vmatpush1.bf16.msra.mxu0 %v4106
        %4690 = vmatprep.subr.bf16.mxu0 %v4119
        %4691 = vmatpush1.bf16.msra.mxu0 %v4118
        %4692 = vmatprep.subr.bf16.mxu0 %v4131
        %4693 = vmatpush1.bf16.msra.mxu0 %v4130
        %4694 = vmatprep.subr.bf16.mxu0 %v4143
        %4695 = vmatpush1.bf16.msra.mxu0 %v4142
        %4696 = vmatprep.subr.bf16.mxu0 %v4155
        %4697 = vmatpush1.bf16.msra.mxu0 %v4154
        %4698 = vmatprep.subr.bf16.mxu0 %v4167
        %4699 = vmatpush1.bf16.msra.mxu0 %v4166
        %4700 = vmatprep.subr.bf16.mxu0 %v4179
        %4701 = vmatpush1.bf16.msra.mxu0 %v4178
        %4702 = vmatprep.subr.bf16.mxu0 %v4191
        %4703 = vmatpush1.bf16.msra.mxu0 %v4190
        %4704 = vmatprep.subr.bf16.mxu0 %v4203
        %4705 = vmatpush1.bf16.msra.mxu0 %v4202
        %4706 = vmatprep.subr.bf16.mxu0 %v4215
        %4707 = vmatpush1.bf16.msra.mxu0 %v4214
        %4708 = vmatprep.subr.bf16.mxu0 %v4227
        %4709 = vmatpush1.bf16.msra.mxu0 %v4226
        %4710 = vmatprep.subr.bf16.mxu0 %v4239
        %4711 = vmatpush1.bf16.msra.mxu0 %v4238
        %4712 = vmatprep.subr.bf16.mxu0 %v4251
        %4713 = vmatpush1.bf16.msra.mxu0 %v4250
        %4714 = vmatprep.subr.bf16.mxu0 %v4263
        %4715 = vmatpush1.bf16.msra.mxu0 %v4262
        %4716 = vmatprep.subr.bf16.mxu0 %v4275
        %4717 = vmatpush1.bf16.msra.mxu0 %v4274
        %4718 = vmatprep.mubr.bf16.mxu0 %v4086
        %4719 = vmatmul.mubr.bf16.gmra.mrb[0].mxu0 %v4085
        %v4720 = vpop.f32.mrb[0].mxu0
        %v4721 = vadd.f32 %v4407, %v4720
        %v4722 = vpop.f32.mrb[0].mxu0
        %v4723 = vadd.f32 %v4411, %v4722
        %v4724 = vpop.f32.mrb[0].mxu0
        %v4725 = vpop.f32.mrb[0].mxu0
        %4726 = vdwg.mxu0
        %4727 = vmatprep.subr.bf16.mxu0 %v4287
        %4728 = vmatpush1.bf16.msra.mxu0 %v4286
        %4729 = vmatprep.subr.bf16.mxu0 %v4299
        %4730 = vmatpush1.bf16.msra.mxu0 %v4298
        %4731 = vmatprep.subr.bf16.mxu0 %v4311
        %4732 = vmatpush1.bf16.msra.mxu0 %v4310
        %4733 = vmatprep.subr.bf16.mxu0 %v4323
        %4734 = vmatpush1.bf16.msra.mxu0 %v4322
        %4735 = vmatprep.subr.bf16.mxu0 %v4335
        %4736 = vmatpush1.bf16.msra.mxu0 %v4334
        %4737 = vmatprep.subr.bf16.mxu0 %v4347
        %4738 = vmatpush1.bf16.msra.mxu0 %v4346
        %4739 = vmatprep.subr.bf16.mxu0 %v4359
        %4740 = vmatpush1.bf16.msra.mxu0 %v4358
        %4741 = vmatprep.subr.bf16.mxu0 %v4371
        %4742 = vmatpush1.bf16.msra.mxu0 %v4370
        %4743 = vmatprep.subr.bf16.mxu0 0
        %4744 = vmatpush1.bf16.msra.mxu0 0
        %4745 = vmatprep.subr.bf16.mxu0 0
        %4746 = vmatpush1.bf16.msra.mxu0 0
        %4747 = vmatprep.subr.bf16.mxu0 0
        %4748 = vmatpush1.bf16.msra.mxu0 0
        %4749 = vmatprep.subr.bf16.mxu0 0
        %4750 = vmatpush1.bf16.msra.mxu0 0
        %4751 = vmatprep.subr.bf16.mxu0 0
        %4752 = vmatpush1.bf16.msra.mxu0 0
        %4753 = vmatprep.subr.bf16.mxu0 0
        %4754 = vmatpush1.bf16.msra.mxu0 0
        %4755 = vmatprep.subr.bf16.mxu0 0
        %4756 = vmatpush1.bf16.msra.mxu0 0
        %4757 = vmatprep.subr.bf16.mxu0 0
        %4758 = vmatpush1.bf16.msra.mxu0 0
        %4759 = vmatprep.mubr.bf16.mxu0 0
        %4760 = vmatmul.mubr.bf16.gmra.mrb[0].mxu0 %v4087
        %v4761 = vpop.f32.mrb[0].mxu0
        %v4762 = vadd.f32 %v4721, %v4761
        %v4763 = vpop.f32.mrb[0].mxu0
        %v4764 = vadd.f32 %v4723, %v4763
        %v4765 = vpop.f32.mrb[0].mxu0
        %v4766 = vpop.f32.mrb[0].mxu0
        %4767 = vdwg.mxu0
        %4768 = vmatprep.subr.bf16.mxu0 %v4097
        %4769 = vmatpush1.bf16.msra.mxu0 %v4096
        %4770 = vmatprep.subr.bf16.mxu0 %v4109
        %4771 = vmatpush1.bf16.msra.mxu0 %v4108
        %4772 = vmatprep.subr.bf16.mxu0 %v4121
        %4773 = vmatpush1.bf16.msra.mxu0 %v4120
        %4774 = vmatprep.subr.bf16.mxu0 %v4133
        %4775 = vmatpush1.bf16.msra.mxu0 %v4132
        %4776 = vmatprep.subr.bf16.mxu0 %v4145
        %4777 = vmatpush1.bf16.msra.mxu0 %v4144
        %4778 = vmatprep.subr.bf16.mxu0 %v4157
        %4779 = vmatpush1.bf16.msra.mxu0 %v4156
        %4780 = vmatprep.subr.bf16.mxu0 %v4169
        %4781 = vmatpush1.bf16.msra.mxu0 %v4168
        %4782 = vmatprep.subr.bf16.mxu0 %v4181
        %4783 = vmatpush1.bf16.msra.mxu0 %v4180
        %4784 = vmatprep.subr.bf16.mxu0 %v4193
        %4785 = vmatpush1.bf16.msra.mxu0 %v4192
        %4786 = vmatprep.subr.bf16.mxu0 %v4205
        %4787 = vmatpush1.bf16.msra.mxu0 %v4204
        %4788 = vmatprep.subr.bf16.mxu0 %v4217
        %4789 = vmatpush1.bf16.msra.mxu0 %v4216
        %4790 = vmatprep.subr.bf16.mxu0 %v4229
        %4791 = vmatpush1.bf16.msra.mxu0 %v4228
        %4792 = vmatprep.subr.bf16.mxu0 %v4241
        %4793 = vmatpush1.bf16.msra.mxu0 %v4240
        %4794 = vmatprep.subr.bf16.mxu0 %v4253
        %4795 = vmatpush1.bf16.msra.mxu0 %v4252
        %4796 = vmatprep.subr.bf16.mxu0 %v4265
        %4797 = vmatpush1.bf16.msra.mxu0 %v4264
        %4798 = vmatprep.subr.bf16.mxu0 %v4277
        %4799 = vmatpush1.bf16.msra.mxu0 %v4276
        %4800 = vmatprep.mubr.bf16.mxu0 %v4086
        %4801 = vmatmul.mubr.bf16.gmra.mrb[0].mxu0 %v4085
        %v4802 = vpop.f32.mrb[0].mxu0
        %v4803 = vadd.f32 %v4415, %v4802
        %v4804 = vpop.f32.mrb[0].mxu0
        %v4805 = vadd.f32 %v4419, %v4804
        %v4806 = vpop.f32.mrb[0].mxu0
        %v4807 = vpop.f32.mrb[0].mxu0
        %4808 = vdwg.mxu0
        %4809 = vmatprep.subr.bf16.mxu0 %v4289
        %4810 = vmatpush1.bf16.msra.mxu0 %v4288
        %4811 = vmatprep.subr.bf16.mxu0 %v4301
        %4812 = vmatpush1.bf16.msra.mxu0 %v4300
        %4813 = vmatprep.subr.bf16.mxu0 %v4313
        %4814 = vmatpush1.bf16.msra.mxu0 %v4312
        %4815 = vmatprep.subr.bf16.mxu0 %v4325
        %4816 = vmatpush1.bf16.msra.mxu0 %v4324
        %4817 = vmatprep.subr.bf16.mxu0 %v4337
        %4818 = vmatpush1.bf16.msra.mxu0 %v4336
        %4819 = vmatprep.subr.bf16.mxu0 %v4349
        %4820 = vmatpush1.bf16.msra.mxu0 %v4348
        %4821 = vmatprep.subr.bf16.mxu0 %v4361
        %4822 = vmatpush1.bf16.msra.mxu0 %v4360
        %4823 = vmatprep.subr.bf16.mxu0 %v4373
        %4824 = vmatpush1.bf16.msra.mxu0 %v4372
        %4825 = vmatprep.subr.bf16.mxu0 0
        %4826 = vmatpush1.bf16.msra.mxu0 0
        %4827 = vmatprep.subr.bf16.mxu0 0
        %4828 = vmatpush1.bf16.msra.mxu0 0
        %4829 = vmatprep.subr.bf16.mxu0 0
        %4830 = vmatpush1.bf16.msra.mxu0 0
        %4831 = vmatprep.subr.bf16.mxu0 0
        %4832 = vmatpush1.bf16.msra.mxu0 0
        %4833 = vmatprep.subr.bf16.mxu0 0
        %4834 = vmatpush1.bf16.msra.mxu0 0
        %4835 = vmatprep.subr.bf16.mxu0 0
        %4836 = vmatpush1.bf16.msra.mxu0 0
        %4837 = vmatprep.subr.bf16.mxu0 0
        %4838 = vmatpush1.bf16.msra.mxu0 0
        %4839 = vmatprep.subr.bf16.mxu0 0
        %4840 = vmatpush1.bf16.msra.mxu0 0
        %4841 = vmatprep.mubr.bf16.mxu0 0
        %4842 = vmatmul.mubr.bf16.gmra.mrb[0].mxu0 %v4087
        %v4843 = vpop.f32.mrb[0].mxu0
        %v4844 = vadd.f32 %v4803, %v4843
        %v4845 = vpop.f32.mrb[0].mxu0
        %v4846 = vadd.f32 %v4805, %v4845
        %v4847 = vpop.f32.mrb[0].mxu0
        %v4848 = vpop.f32.mrb[0].mxu0
        %4849 = vdwg.mxu0
        %4850 = vmatprep.subr.bf16.mxu0 %v4099
        %4851 = vmatpush1.bf16.msra.mxu0 %v4098
        %4852 = vmatprep.subr.bf16.mxu0 %v4111
        %4853 = vmatpush1.bf16.msra.mxu0 %v4110
        %4854 = vmatprep.subr.bf16.mxu0 %v4123
        %4855 = vmatpush1.bf16.msra.mxu0 %v4122
        %4856 = vmatprep.subr.bf16.mxu0 %v4135
        %4857 = vmatpush1.bf16.msra.mxu0 %v4134
        %4858 = vmatprep.subr.bf16.mxu0 %v4147
        %4859 = vmatpush1.bf16.msra.mxu0 %v4146
        %4860 = vmatprep.subr.bf16.mxu0 %v4159
        %4861 = vmatpush1.bf16.msra.mxu0 %v4158
        %4862 = vmatprep.subr.bf16.mxu0 %v4171
        %4863 = vmatpush1.bf16.msra.mxu0 %v4170
        %4864 = vmatprep.subr.bf16.mxu0 %v4183
        %4865 = vmatpush1.bf16.msra.mxu0 %v4182
        %4866 = vmatprep.subr.bf16.mxu0 %v4195
        %4867 = vmatpush1.bf16.msra.mxu0 %v4194
        %4868 = vmatprep.subr.bf16.mxu0 %v4207
        %4869 = vmatpush1.bf16.msra.mxu0 %v4206
        %4870 = vmatprep.subr.bf16.mxu0 %v4219
        %4871 = vmatpush1.bf16.msra.mxu0 %v4218
        %4872 = vmatprep.subr.bf16.mxu0 %v4231
        %4873 = vmatpush1.bf16.msra.mxu0 %v4230
        %4874 = vmatprep.subr.bf16.mxu0 %v4243
        %4875 = vmatpush1.bf16.msra.mxu0 %v4242
        %4876 = vmatprep.subr.bf16.mxu0 %v4255
        %4877 = vmatpush1.bf16.msra.mxu0 %v4254
        %4878 = vmatprep.subr.bf16.mxu0 %v4267
        %4879 = vmatpush1.bf16.msra.mxu0 %v4266
        %4880 = vmatprep.subr.bf16.mxu0 %v4279
        %4881 = vmatpush1.bf16.msra.mxu0 %v4278
        %4882 = vmatprep.mubr.bf16.mxu0 %v4086
        %4883 = vmatmul.mubr.bf16.gmra.mrb[0].mxu0 %v4085
        %v4884 = vpop.f32.mrb[0].mxu0
        %v4885 = vadd.f32 %v4423, %v4884
        %v4886 = vpop.f32.mrb[0].mxu0
        %v4887 = vadd.f32 %v4427, %v4886
        %v4888 = vpop.f32.mrb[0].mxu0
        %v4889 = vpop.f32.mrb[0].mxu0
        %4890 = vdwg.mxu0
        %4891 = vmatprep.subr.bf16.mxu0 %v4291
        %4892 = vmatpush1.bf16.msra.mxu0 %v4290
        %4893 = vmatprep.subr.bf16.mxu0 %v4303
        %4894 = vmatpush1.bf16.msra.mxu0 %v4302
        %4895 = vmatprep.subr.bf16.mxu0 %v4315
        %4896 = vmatpush1.bf16.msra.mxu0 %v4314
        %4897 = vmatprep.subr.bf16.mxu0 %v4327
        %4898 = vmatpush1.bf16.msra.mxu0 %v4326
        %4899 = vmatprep.subr.bf16.mxu0 %v4339
        %4900 = vmatpush1.bf16.msra.mxu0 %v4338
        %4901 = vmatprep.subr.bf16.mxu0 %v4351
        %4902 = vmatpush1.bf16.msra.mxu0 %v4350
        %4903 = vmatprep.subr.bf16.mxu0 %v4363
        %4904 = vmatpush1.bf16.msra.mxu0 %v4362
        %4905 = vmatprep.subr.bf16.mxu0 %v4375
        %4906 = vmatpush1.bf16.msra.mxu0 %v4374
        %4907 = vmatprep.subr.bf16.mxu0 0
        %4908 = vmatpush1.bf16.msra.mxu0 0
        %4909 = vmatprep.subr.bf16.mxu0 0
        %4910 = vmatpush1.bf16.msra.mxu0 0
        %4911 = vmatprep.subr.bf16.mxu0 0
        %4912 = vmatpush1.bf16.msra.mxu0 0
        %4913 = vmatprep.subr.bf16.mxu0 0
        %4914 = vmatpush1.bf16.msra.mxu0 0
        %4915 = vmatprep.subr.bf16.mxu0 0
        %4916 = vmatpush1.bf16.msra.mxu0 0
        %4917 = vmatprep.subr.bf16.mxu0 0
        %4918 = vmatpush1.bf16.msra.mxu0 0
        %4919 = vmatprep.subr.bf16.mxu0 0
        %4920 = vmatpush1.bf16.msra.mxu0 0
        %4921 = vmatprep.subr.bf16.mxu0 0
        %4922 = vmatpush1.bf16.msra.mxu0 0
        %4923 = vmatprep.mubr.bf16.mxu0 0
        %4924 = vmatmul.mubr.bf16.gmra.mrb[0].mxu0 %v4087
        %v4925 = vpop.f32.mrb[0].mxu0
        %v4926 = vadd.f32 %v4885, %v4925
        %v4927 = vpop.f32.mrb[0].mxu0
        %v4928 = vadd.f32 %v4887, %v4927
        %v4929 = vpop.f32.mrb[0].mxu0
        %v4930 = vpop.f32.mrb[0].mxu0
        %4931 = vdwg.mxu0
        %v4932 = vmul.f32 %v4516, 0.5
        %v4933 = vmul.f32 %v4518, 0.5
        %v4934 = vmul.f32 %v4598, 0.5
        %v4935 = vmul.f32 %v4600, 0.5
        %v4936 = vmul.f32 %v4680, 0.5
        %v4937 = vmul.f32 %v4682, 0.5
        %v4938 = vmul.f32 %v4762, 0.5
        %v4939 = vmul.f32 %v4764, 0.5
        %v4940 = vmul.f32 %v4844, 0.5
        %v4941 = vmul.f32 %v4846, 0.5
        %v4942 = vmul.f32 %v4926, 0.5
        %v4943 = vmul.f32 %v4928, 0.5
        %v4944 = vmul.f32 %v4516, 0.70710677
        %v4945 = vmul.f32 %v4518, 0.70710677
        %v4946 = vmul.f32 %v4598, 0.70710677
        %v4947 = vmul.f32 %v4600, 0.70710677
        %v4948 = vmul.f32 %v4680, 0.70710677
        %v4949 = vmul.f32 %v4682, 0.70710677
        %v4950 = vmul.f32 %v4762, 0.70710677
        %v4951 = vmul.f32 %v4764, 0.70710677
        %v4952 = vmul.f32 %v4844, 0.70710677
        %v4953 = vmul.f32 %v4846, 0.70710677
        %v4954 = vmul.f32 %v4926, 0.70710677
        %v4955 = vmul.f32 %v4928, 0.70710677
        %v4956 = verf.f32.pop %v4944
        %v4957 = verf.f32.pop %v4945
        %v4958 = verf.f32.pop %v4946
        %v4959 = verf.f32.pop %v4947
        %v4960 = verf.f32.pop %v4948
        %v4961 = verf.f32.pop %v4949
        %v4962 = verf.f32.pop %v4950
        %v4963 = verf.f32.pop %v4951
        %v4964 = verf.f32.pop %v4952
        %v4965 = verf.f32.pop %v4953
        %v4966 = verf.f32.pop %v4954
        %v4967 = verf.f32.pop %v4955
        %v4968 = vadd.f32 %v4956, 1.0
        %v4969 = vadd.f32 %v4957, 1.0
        %v4970 = vadd.f32 %v4958, 1.0
        %v4971 = vadd.f32 %v4959, 1.0
        %v4972 = vadd.f32 %v4960, 1.0
        %v4973 = vadd.f32 %v4961, 1.0
        %v4974 = vadd.f32 %v4962, 1.0
        %v4975 = vadd.f32 %v4963, 1.0
        %v4976 = vadd.f32 %v4964, 1.0
        %v4977 = vadd.f32 %v4965, 1.0
        %v4978 = vadd.f32 %v4966, 1.0
        %v4979 = vadd.f32 %v4967, 1.0
        %v4980 = vmul.f32 %v4932, %v4968
        %v4981 = vmul.f32 %v4933, %v4969
        %v4982 = vmul.f32 %v4934, %v4970
        %v4983 = vmul.f32 %v4935, %v4971
        %v4984 = vmul.f32 %v4936, %v4972
        %v4985 = vmul.f32 %v4937, %v4973
        %v4986 = vmul.f32 %v4938, %v4974
        %v4987 = vmul.f32 %v4939, %v4975
        %v4988 = vmul.f32 %v4940, %v4976
        %v4989 = vmul.f32 %v4941, %v4977
        %v4990 = vmul.f32 %v4942, %v4978
        %v4991 = vmul.f32 %v4943, %v4979
        %v4992 = vpack.c.bf16 %v4980, %v4980
        %v4993 = vpack.c.bf16 %v4981, %v4981
        %v4994 = vpack.c.bf16 %v4982, %v4982
        %v4995 = vpack.c.bf16 %v4983, %v4983
        %v4996 = vpack.c.bf16 %v4984, %v4984
        %v4997 = vpack.c.bf16 %v4985, %v4985
        %v4998 = vpack.c.bf16 %v4986, %v4986
        %v4999 = vpack.c.bf16 %v4987, %v4987
        %v5000 = vpack.c.bf16 %v4988, %v4988
        %v5001 = vpack.c.bf16 %v4989, %v4989
        %v5002 = vpack.c.bf16 %v4990, %v4990
        %v5003 = vpack.c.bf16 %v4991, %v4991
        %v5004 = vld [vmem:[#allocation3] sm:$0xff]
        %v5005 = vld [vmem:[#allocation3 + $0x8] sm:$0xff]
        %v5006 = vld [vmem:[#allocation3 + $0x10] sm:$0xff]
        %v5007 = vld [vmem:[#allocation3 + $0x18] sm:$0xff]
        %v5008 = vld [vmem:[#allocation3 + $0x20] sm:$0xff]
        %v5009 = vld [vmem:[#allocation3 + $0x28] sm:$0xff]
        %v5010 = vld [vmem:[#allocation3 + $0x30] sm:$0xff]
        %v5011 = vld [vmem:[#allocation3 + $0x38] sm:$0xff]
        %v5012 = vld [vmem:[#allocation3 + $0x40] sm:$0xff]
        %v5013 = vld [vmem:[#allocation3 + $0x48] sm:$0xff]
        %v5014 = vld [vmem:[#allocation3 + $0x50] sm:$0xff]
        %v5015 = vld [vmem:[#allocation3 + $0x58] sm:$0xff]
        %v5016 = vld [vmem:[#allocation3 + $0x60] sm:$0xff]
        %v5017 = vld [vmem:[#allocation3 + $0x68] sm:$0xff]
        %v5018 = vld [vmem:[#allocation3 + $0x70] sm:$0xff]
        %v5019 = vld [vmem:[#allocation3 + $0x78] sm:$0xff]
        %v5020 = vld [vmem:[#allocation3 + $0x80] sm:$0xff]
        %v5021 = vld [vmem:[#allocation3 + $0x88] sm:$0xff]
        %v5022 = vld [vmem:[#allocation3 + $0x90] sm:$0xff]
        %v5023 = vld [vmem:[#allocation3 + $0x98] sm:$0xff]
        %v5024 = vld [vmem:[#allocation3 + $0xa0] sm:$0xff]
        %v5025 = vld [vmem:[#allocation3 + $0xa8] sm:$0xff]
        %v5026 = vld [vmem:[#allocation3 + $0xb0] sm:$0xff]
        %v5027 = vld [vmem:[#allocation3 + $0xb8] sm:$0xff]
        %v5028 = vld [vmem:[#allocation3 + $0xc0] sm:$0xff]
        %v5029 = vld [vmem:[#allocation3 + $0xc8] sm:$0xff]
        %v5030 = vld [vmem:[#allocation3 + $0xd0] sm:$0xff]
        %v5031 = vld [vmem:[#allocation3 + $0xd8] sm:$0xff]
        %v5032 = vld [vmem:[#allocation3 + $0xe0] sm:$0xff]
        %v5033 = vld [vmem:[#allocation3 + $0xe8] sm:$0xff]
        %v5034 = vld [vmem:[#allocation3 + $0xf0] sm:$0xff]
        %v5035 = vld [vmem:[#allocation3 + $0xf8] sm:$0xff]
        %v5036 = vld [vmem:[#allocation3 + $0x100] sm:$0xff]
        %v5037 = vld [vmem:[#allocation3 + $0x108] sm:$0xff]
        %v5038 = vld [vmem:[#allocation3 + $0x110] sm:$0xff]
        %v5039 = vld [vmem:[#allocation3 + $0x118] sm:$0xff]
        %v5040 = vld [vmem:[#allocation3 + $0x120] sm:$0xff]
        %v5041 = vld [vmem:[#allocation3 + $0x128] sm:$0xff]
        %v5042 = vld [vmem:[#allocation3 + $0x130] sm:$0xff]
        %v5043 = vld [vmem:[#allocation3 + $0x138] sm:$0xff]
        %v5044 = vld [vmem:[#allocation3 + $0x140] sm:$0xff]
        %v5045 = vld [vmem:[#allocation3 + $0x148] sm:$0xff]
        %v5046 = vld [vmem:[#allocation3 + $0x150] sm:$0xff]
        %v5047 = vld [vmem:[#allocation3 + $0x158] sm:$0xff]
        %v5048 = vld [vmem:[#allocation3 + $0x160] sm:$0xff]
        %v5049 = vld [vmem:[#allocation3 + $0x168] sm:$0xff]
        %v5050 = vld [vmem:[#allocation3 + $0x170] sm:$0xff]
        %v5051 = vld [vmem:[#allocation3 + $0x178] sm:$0xff]
        %v5052 = vld [vmem:[#allocation3 + $0x180] sm:$0xff]
        %v5053 = vld [vmem:[#allocation3 + $0x188] sm:$0xff]
        %v5054 = vld [vmem:[#allocation3 + $0x190] sm:$0xff]
        %v5055 = vld [vmem:[#allocation3 + $0x198] sm:$0xff]
        %v5056 = vld [vmem:[#allocation3 + $0x1a0] sm:$0xff]
        %v5057 = vld [vmem:[#allocation3 + $0x1a8] sm:$0xff]
        %v5058 = vld [vmem:[#allocation3 + $0x1b0] sm:$0xff]
        %v5059 = vld [vmem:[#allocation3 + $0x1b8] sm:$0xff]
        %v5060 = vld [vmem:[#allocation3 + $0x1c0] sm:$0xff]
        %v5061 = vld [vmem:[#allocation3 + $0x1c8] sm:$0xff]
        %v5062 = vld [vmem:[#allocation3 + $0x1d0] sm:$0xff]
        %v5063 = vld [vmem:[#allocation3 + $0x1d8] sm:$0xff]
        %v5064 = vld [vmem:[#allocation3 + $0x1e0] sm:$0xff]
        %v5065 = vld [vmem:[#allocation3 + $0x1e8] sm:$0xff]
        %v5066 = vld [vmem:[#allocation3 + $0x1f0] sm:$0xff]
        %v5067 = vld [vmem:[#allocation3 + $0x1f8] sm:$0xff]
        %v5068 = vld [vmem:[#allocation3 + $0x200] sm:$0xff]
        %v5069 = vld [vmem:[#allocation3 + $0x208] sm:$0xff]
        %v5070 = vld [vmem:[#allocation3 + $0x210] sm:$0xff]
        %v5071 = vld [vmem:[#allocation3 + $0x218] sm:$0xff]
        %v5072 = vld [vmem:[#allocation3 + $0x220] sm:$0xff]
        %v5073 = vld [vmem:[#allocation3 + $0x228] sm:$0xff]
        %v5074 = vld [vmem:[#allocation3 + $0x230] sm:$0xff]
        %v5075 = vld [vmem:[#allocation3 + $0x238] sm:$0xff]
        %v5076 = vld [vmem:[#allocation3 + $0x240] sm:$0xff]
        %v5077 = vld [vmem:[#allocation3 + $0x248] sm:$0xff]
        %v5078 = vld [vmem:[#allocation3 + $0x250] sm:$0xff]
        %v5079 = vld [vmem:[#allocation3 + $0x258] sm:$0xff]
        %v5080 = vld [vmem:[#allocation3 + $0x260] sm:$0xff]
        %v5081 = vld [vmem:[#allocation3 + $0x268] sm:$0xff]
        %v5082 = vld [vmem:[#allocation3 + $0x270] sm:$0xff]
        %v5083 = vld [vmem:[#allocation3 + $0x278] sm:$0xff]
        %v5084 = vld [vmem:[#allocation3 + $0x280] sm:$0xff]
        %v5085 = vld [vmem:[#allocation3 + $0x288] sm:$0xff]
        %v5086 = vld [vmem:[#allocation3 + $0x290] sm:$0xff]
        %v5087 = vld [vmem:[#allocation3 + $0x298] sm:$0xff]
        %v5088 = vld [vmem:[#allocation3 + $0x2a0] sm:$0xff]
        %v5089 = vld [vmem:[#allocation3 + $0x2a8] sm:$0xff]
        %v5090 = vld [vmem:[#allocation3 + $0x2b0] sm:$0xff]
        %v5091 = vld [vmem:[#allocation3 + $0x2b8] sm:$0xff]
        %v5092 = vld [vmem:[#allocation3 + $0x2c0] sm:$0xff]
        %v5093 = vld [vmem:[#allocation3 + $0x2c8] sm:$0xff]
        %v5094 = vld [vmem:[#allocation3 + $0x2d0] sm:$0xff]
        %v5095 = vld [vmem:[#allocation3 + $0x2d8] sm:$0xff]
        %v5096 = vld [vmem:[#allocation3 + $0x2e0] sm:$0xff]
        %v5097 = vld [vmem:[#allocation3 + $0x2e8] sm:$0xff]
        %v5098 = vld [vmem:[#allocation3 + $0x2f0] sm:$0xff]
        %v5099 = vld [vmem:[#allocation3 + $0x2f8] sm:$0xff]
        %v5100 = vld [vmem:[#allocation3 + $0x300] sm:$0xff]
        %v5101 = vld [vmem:[#allocation3 + $0x308] sm:$0xff]
        %v5102 = vld [vmem:[#allocation3 + $0x310] sm:$0xff]
        %v5103 = vld [vmem:[#allocation3 + $0x318] sm:$0xff]
        %v5104 = vld [vmem:[#allocation3 + $0x320] sm:$0xff]
        %v5105 = vld [vmem:[#allocation3 + $0x328] sm:$0xff]
        %v5106 = vld [vmem:[#allocation3 + $0x330] sm:$0xff]
        %v5107 = vld [vmem:[#allocation3 + $0x338] sm:$0xff]
        %v5108 = vld [vmem:[#allocation3 + $0x340] sm:$0xff]
        %v5109 = vld [vmem:[#allocation3 + $0x348] sm:$0xff]
        %v5110 = vld [vmem:[#allocation3 + $0x350] sm:$0xff]
        %v5111 = vld [vmem:[#allocation3 + $0x358] sm:$0xff]
        %v5112 = vld [vmem:[#allocation3 + $0x360] sm:$0xff]
        %v5113 = vld [vmem:[#allocation3 + $0x368] sm:$0xff]
        %v5114 = vld [vmem:[#allocation3 + $0x370] sm:$0xff]
        %v5115 = vld [vmem:[#allocation3 + $0x378] sm:$0xff]
        %v5116 = vld [vmem:[#allocation3 + $0x380] sm:$0xff]
        %v5117 = vld [vmem:[#allocation3 + $0x388] sm:$0xff]
        %v5118 = vld [vmem:[#allocation3 + $0x390] sm:$0xff]
        %v5119 = vld [vmem:[#allocation3 + $0x398] sm:$0xff]
        %v5120 = vld [vmem:[#allocation3 + $0x3a0] sm:$0xff]
        %v5121 = vld [vmem:[#allocation3 + $0x3a8] sm:$0xff]
        %v5122 = vld [vmem:[#allocation3 + $0x3b0] sm:$0xff]
        %v5123 = vld [vmem:[#allocation3 + $0x3b8] sm:$0xff]
        %v5124 = vld [vmem:[#allocation3 + $0x3c0] sm:$0xff]
        %v5125 = vld [vmem:[#allocation3 + $0x3c8] sm:$0xff]
        %v5126 = vld [vmem:[#allocation3 + $0x3d0] sm:$0xff]
        %v5127 = vld [vmem:[#allocation3 + $0x3d8] sm:$0xff]
        %v5128 = vld [vmem:[#allocation3 + $0x3e0] sm:$0xff]
        %v5129 = vld [vmem:[#allocation3 + $0x3e8] sm:$0xff]
        %v5130 = vld [vmem:[#allocation3 + $0x3f0] sm:$0xff]
        %v5131 = vld [vmem:[#allocation3 + $0x3f8] sm:$0xff]
        %v5132 = vld [vmem:[#allocation3 + $0x400] sm:$0xff]
        %v5133 = vld [vmem:[#allocation3 + $0x408] sm:$0xff]
        %v5134 = vld [vmem:[#allocation3 + $0x410] sm:$0xff]
        %v5135 = vld [vmem:[#allocation3 + $0x418] sm:$0xff]
        %v5136 = vld [vmem:[#allocation3 + $0x420] sm:$0xff]
        %v5137 = vld [vmem:[#allocation3 + $0x428] sm:$0xff]
        %v5138 = vld [vmem:[#allocation3 + $0x430] sm:$0xff]
        %v5139 = vld [vmem:[#allocation3 + $0x438] sm:$0xff]
        %v5140 = vld [vmem:[#allocation3 + $0x440] sm:$0xff]
        %v5141 = vld [vmem:[#allocation3 + $0x448] sm:$0xff]
        %v5142 = vld [vmem:[#allocation3 + $0x450] sm:$0xff]
        %v5143 = vld [vmem:[#allocation3 + $0x458] sm:$0xff]
        %v5144 = vld [vmem:[#allocation3 + $0x460] sm:$0xff]
        %v5145 = vld [vmem:[#allocation3 + $0x468] sm:$0xff]
        %v5146 = vld [vmem:[#allocation3 + $0x470] sm:$0xff]
        %v5147 = vld [vmem:[#allocation3 + $0x478] sm:$0xff]
        %v5148 = vld [vmem:[#allocation3 + $0x480] sm:$0xff]
        %v5149 = vld [vmem:[#allocation3 + $0x488] sm:$0xff]
        %v5150 = vld [vmem:[#allocation3 + $0x490] sm:$0xff]
        %v5151 = vld [vmem:[#allocation3 + $0x498] sm:$0xff]
        %v5152 = vld [vmem:[#allocation3 + $0x4a0] sm:$0xff]
        %v5153 = vld [vmem:[#allocation3 + $0x4a8] sm:$0xff]
        %v5154 = vld [vmem:[#allocation3 + $0x4b0] sm:$0xff]
        %v5155 = vld [vmem:[#allocation3 + $0x4b8] sm:$0xff]
        %v5156 = vld [vmem:[#allocation3 + $0x4c0] sm:$0xff]
        %v5157 = vld [vmem:[#allocation3 + $0x4c8] sm:$0xff]
        %v5158 = vld [vmem:[#allocation3 + $0x4d0] sm:$0xff]
        %v5159 = vld [vmem:[#allocation3 + $0x4d8] sm:$0xff]
        %v5160 = vld [vmem:[#allocation3 + $0x4e0] sm:$0xff]
        %v5161 = vld [vmem:[#allocation3 + $0x4e8] sm:$0xff]
        %v5162 = vld [vmem:[#allocation3 + $0x4f0] sm:$0xff]
        %v5163 = vld [vmem:[#allocation3 + $0x4f8] sm:$0xff]
        %v5164 = vld [vmem:[#allocation3 + $0x500] sm:$0xff]
        %v5165 = vld [vmem:[#allocation3 + $0x508] sm:$0xff]
        %v5166 = vld [vmem:[#allocation3 + $0x510] sm:$0xff]
        %v5167 = vld [vmem:[#allocation3 + $0x518] sm:$0xff]
        %v5168 = vld [vmem:[#allocation3 + $0x520] sm:$0xff]
        %v5169 = vld [vmem:[#allocation3 + $0x528] sm:$0xff]
        %v5170 = vld [vmem:[#allocation3 + $0x530] sm:$0xff]
        %v5171 = vld [vmem:[#allocation3 + $0x538] sm:$0xff]
        %v5172 = vld [vmem:[#allocation3 + $0x540] sm:$0xff]
        %v5173 = vld [vmem:[#allocation3 + $0x548] sm:$0xff]
        %v5174 = vld [vmem:[#allocation3 + $0x550] sm:$0xff]
        %v5175 = vld [vmem:[#allocation3 + $0x558] sm:$0xff]
        %v5176 = vld [vmem:[#allocation3 + $0x560] sm:$0xff]
        %v5177 = vld [vmem:[#allocation3 + $0x568] sm:$0xff]
        %v5178 = vld [vmem:[#allocation3 + $0x570] sm:$0xff]
        %v5179 = vld [vmem:[#allocation3 + $0x578] sm:$0xff]
        %v5180 = vld [vmem:[#allocation3 + $0x580] sm:$0xff]
        %v5181 = vld [vmem:[#allocation3 + $0x588] sm:$0xff]
        %v5182 = vld [vmem:[#allocation3 + $0x590] sm:$0xff]
        %v5183 = vld [vmem:[#allocation3 + $0x598] sm:$0xff]
        %v5184 = vld [vmem:[#allocation3 + $0x5a0] sm:$0xff]
        %v5185 = vld [vmem:[#allocation3 + $0x5a8] sm:$0xff]
        %v5186 = vld [vmem:[#allocation3 + $0x5b0] sm:$0xff]
        %v5187 = vld [vmem:[#allocation3 + $0x5b8] sm:$0xff]
        %v5188 = vld [vmem:[#allocation3 + $0x5c0] sm:$0xff]
        %v5189 = vld [vmem:[#allocation3 + $0x5c8] sm:$0xff]
        %v5190 = vld [vmem:[#allocation3 + $0x5d0] sm:$0xff]
        %v5191 = vld [vmem:[#allocation3 + $0x5d8] sm:$0xff]
        %v5192 = vld [vmem:[#allocation3 + $0x5e0] sm:$0xff]
        %v5193 = vld [vmem:[#allocation3 + $0x5e8] sm:$0xff]
        %v5194 = vld [vmem:[#allocation3 + $0x5f0] sm:$0xff]
        %v5195 = vld [vmem:[#allocation3 + $0x5f8] sm:$0xff]
        %v5196 = vld [vmem:[#allocation3 + $0x600] sm:$0xff]
        %v5197 = vld [vmem:[#allocation3 + $0x608] sm:$0xff]
        %v5198 = vld [vmem:[#allocation3 + $0x610] sm:$0xff]
        %v5199 = vld [vmem:[#allocation3 + $0x618] sm:$0xff]
        %v5200 = vld [vmem:[#allocation3 + $0x620] sm:$0xff]
        %v5201 = vld [vmem:[#allocation3 + $0x628] sm:$0xff]
        %v5202 = vld [vmem:[#allocation3 + $0x630] sm:$0xff]
        %v5203 = vld [vmem:[#allocation3 + $0x638] sm:$0xff]
        %v5204 = vld [vmem:[#allocation3 + $0x640] sm:$0xff]
        %v5205 = vld [vmem:[#allocation3 + $0x648] sm:$0xff]
        %v5206 = vld [vmem:[#allocation3 + $0x650] sm:$0xff]
        %v5207 = vld [vmem:[#allocation3 + $0x658] sm:$0xff]
        %v5208 = vld [vmem:[#allocation3 + $0x660] sm:$0xff]
        %v5209 = vld [vmem:[#allocation3 + $0x668] sm:$0xff]
        %v5210 = vld [vmem:[#allocation3 + $0x670] sm:$0xff]
        %v5211 = vld [vmem:[#allocation3 + $0x678] sm:$0xff]
        %v5212 = vld [vmem:[#allocation3 + $0x680] sm:$0xff]
        %v5213 = vld [vmem:[#allocation3 + $0x688] sm:$0xff]
        %v5214 = vld [vmem:[#allocation3 + $0x690] sm:$0xff]
        %v5215 = vld [vmem:[#allocation3 + $0x698] sm:$0xff]
        %v5216 = vld [vmem:[#allocation3 + $0x6a0] sm:$0xff]
        %v5217 = vld [vmem:[#allocation3 + $0x6a8] sm:$0xff]
        %v5218 = vld [vmem:[#allocation3 + $0x6b0] sm:$0xff]
        %v5219 = vld [vmem:[#allocation3 + $0x6b8] sm:$0xff]
        %v5220 = vld [vmem:[#allocation3 + $0x6c0] sm:$0xff]
        %v5221 = vld [vmem:[#allocation3 + $0x6c8] sm:$0xff]
        %v5222 = vld [vmem:[#allocation3 + $0x6d0] sm:$0xff]
        %v5223 = vld [vmem:[#allocation3 + $0x6d8] sm:$0xff]
        %v5224 = vld [vmem:[#allocation3 + $0x6e0] sm:$0xff]
        %v5225 = vld [vmem:[#allocation3 + $0x6e8] sm:$0xff]
        %v5226 = vld [vmem:[#allocation3 + $0x6f0] sm:$0xff]
        %v5227 = vld [vmem:[#allocation3 + $0x6f8] sm:$0xff]
        %v5228 = vld [vmem:[#allocation3 + $0x700] sm:$0xff]
        %v5229 = vld [vmem:[#allocation3 + $0x708] sm:$0xff]
        %v5230 = vld [vmem:[#allocation3 + $0x710] sm:$0xff]
        %v5231 = vld [vmem:[#allocation3 + $0x718] sm:$0xff]
        %v5232 = vld [vmem:[#allocation3 + $0x720] sm:$0xff]
        %v5233 = vld [vmem:[#allocation3 + $0x728] sm:$0xff]
        %v5234 = vld [vmem:[#allocation3 + $0x730] sm:$0xff]
        %v5235 = vld [vmem:[#allocation3 + $0x738] sm:$0xff]
        %v5236 = vld [vmem:[#allocation3 + $0x740] sm:$0xff]
        %v5237 = vld [vmem:[#allocation3 + $0x748] sm:$0xff]
        %v5238 = vld [vmem:[#allocation3 + $0x750] sm:$0xff]
        %v5239 = vld [vmem:[#allocation3 + $0x758] sm:$0xff]
        %v5240 = vld [vmem:[#allocation3 + $0x760] sm:$0xff]
        %v5241 = vld [vmem:[#allocation3 + $0x768] sm:$0xff]
        %v5242 = vld [vmem:[#allocation3 + $0x770] sm:$0xff]
        %v5243 = vld [vmem:[#allocation3 + $0x778] sm:$0xff]
        %v5244 = vld [vmem:[#allocation3 + $0x780] sm:$0xff]
        %v5245 = vld [vmem:[#allocation3 + $0x788] sm:$0xff]
        %v5246 = vld [vmem:[#allocation3 + $0x790] sm:$0xff]
        %v5247 = vld [vmem:[#allocation3 + $0x798] sm:$0xff]
        %v5248 = vld [vmem:[#allocation3 + $0x7a0] sm:$0xff]
        %v5249 = vld [vmem:[#allocation3 + $0x7a8] sm:$0xff]
        %v5250 = vld [vmem:[#allocation3 + $0x7b0] sm:$0xff]
        %v5251 = vld [vmem:[#allocation3 + $0x7b8] sm:$0xff]
        %v5252 = vld [vmem:[#allocation3 + $0x7c0] sm:$0xff]
        %v5253 = vld [vmem:[#allocation3 + $0x7c8] sm:$0xff]
        %v5254 = vld [vmem:[#allocation3 + $0x7d0] sm:$0xff]
        %v5255 = vld [vmem:[#allocation3 + $0x7d8] sm:$0xff]
        %v5256 = vld [vmem:[#allocation3 + $0x7e0] sm:$0xff]
        %v5257 = vld [vmem:[#allocation3 + $0x7e8] sm:$0xff]
        %v5258 = vld [vmem:[#allocation3 + $0x7f0] sm:$0xff]
        %v5259 = vld [vmem:[#allocation3 + $0x7f8] sm:$0xff]
        %v5260 = vld [vmem:[#allocation3 + $0x800] sm:$0xff]
        %v5261 = vld [vmem:[#allocation3 + $0x808] sm:$0xff]
        %v5262 = vld [vmem:[#allocation3 + $0x810] sm:$0xff]
        %v5263 = vld [vmem:[#allocation3 + $0x818] sm:$0xff]
        %v5264 = vld [vmem:[#allocation3 + $0x820] sm:$0xff]
        %v5265 = vld [vmem:[#allocation3 + $0x828] sm:$0xff]
        %v5266 = vld [vmem:[#allocation3 + $0x830] sm:$0xff]
        %v5267 = vld [vmem:[#allocation3 + $0x838] sm:$0xff]
        %v5268 = vld [vmem:[#allocation3 + $0x840] sm:$0xff]
        %v5269 = vld [vmem:[#allocation3 + $0x848] sm:$0xff]
        %v5270 = vld [vmem:[#allocation3 + $0x850] sm:$0xff]
        %v5271 = vld [vmem:[#allocation3 + $0x858] sm:$0xff]
        %v5272 = vld [vmem:[#allocation3 + $0x860] sm:$0xff]
        %v5273 = vld [vmem:[#allocation3 + $0x868] sm:$0xff]
        %v5274 = vld [vmem:[#allocation3 + $0x870] sm:$0xff]
        %v5275 = vld [vmem:[#allocation3 + $0x878] sm:$0xff]
        %v5276 = vld [vmem:[#allocation3 + $0x880] sm:$0xff]
        %v5277 = vld [vmem:[#allocation3 + $0x888] sm:$0xff]
        %v5278 = vld [vmem:[#allocation3 + $0x890] sm:$0xff]
        %v5279 = vld [vmem:[#allocation3 + $0x898] sm:$0xff]
        %v5280 = vld [vmem:[#allocation3 + $0x8a0] sm:$0xff]
        %v5281 = vld [vmem:[#allocation3 + $0x8a8] sm:$0xff]
        %v5282 = vld [vmem:[#allocation3 + $0x8b0] sm:$0xff]
        %v5283 = vld [vmem:[#allocation3 + $0x8b8] sm:$0xff]
        %v5284 = vld [vmem:[#allocation3 + $0x8c0] sm:$0xff]
        %v5285 = vld [vmem:[#allocation3 + $0x8c8] sm:$0xff]
        %v5286 = vld [vmem:[#allocation3 + $0x8d0] sm:$0xff]
        %v5287 = vld [vmem:[#allocation3 + $0x8d8] sm:$0xff]
        %v5288 = vld [vmem:[#allocation3 + $0x8e0] sm:$0xff]
        %v5289 = vld [vmem:[#allocation3 + $0x8e8] sm:$0xff]
        %v5290 = vld [vmem:[#allocation3 + $0x8f0] sm:$0xff]
        %v5291 = vld [vmem:[#allocation3 + $0x8f8] sm:$0xff]
        %v5292 = vld [vmem:[#allocation18] sm:$0x7]
        %v5294 = vlaneseq
        %v5295 = vshrl.u32 %v5294, 7
        %v5296 = vsub.s32 0, %v5295
        %v5297 = vrot.slane %v5292, %v5296
        %v5298 = vlaneseq
        %v5299 = vshrl.u32 %v5298, 7
        %v5300 = vsub.s32 1, %v5299
        %v5301 = vrot.slane %v5292, %v5300
        %v5302 = vlaneseq
        %v5303 = vshrl.u32 %v5302, 7
        %v5304 = vsub.s32 2, %v5303
        %v5305 = vrot.slane %v5292, %v5304
        %5309 = vmatprep.subr.bf16.mxu0 %v5005
        %5310 = vmatpush1.bf16.msra.mxu0 %v5004
        %5311 = vmatprep.subr.bf16.mxu0 %v5008
        %5312 = vmatpush1.bf16.msra.mxu0 %v5007
        %5313 = vmatprep.subr.bf16.mxu0 %v5011
        %5314 = vmatpush1.bf16.msra.mxu0 %v5010
        %5315 = vmatprep.subr.bf16.mxu0 %v5014
        %5316 = vmatpush1.bf16.msra.mxu0 %v5013
        %5317 = vmatprep.subr.bf16.mxu0 %v5017
        %5318 = vmatpush1.bf16.msra.mxu0 %v5016
        %5319 = vmatprep.subr.bf16.mxu0 %v5020
        %5320 = vmatpush1.bf16.msra.mxu0 %v5019
        %5321 = vmatprep.subr.bf16.mxu0 %v5023
        %5322 = vmatpush1.bf16.msra.mxu0 %v5022
        %5323 = vmatprep.subr.bf16.mxu0 %v5026
        %5324 = vmatpush1.bf16.msra.mxu0 %v5025
        %5325 = vmatprep.subr.bf16.mxu0 %v5029
        %5326 = vmatpush1.bf16.msra.mxu0 %v5028
        %5327 = vmatprep.subr.bf16.mxu0 %v5032
        %5328 = vmatpush1.bf16.msra.mxu0 %v5031
        %5329 = vmatprep.subr.bf16.mxu0 %v5035
        %5330 = vmatpush1.bf16.msra.mxu0 %v5034
        %5331 = vmatprep.subr.bf16.mxu0 %v5038
        %5332 = vmatpush1.bf16.msra.mxu0 %v5037
        %5333 = vmatprep.subr.bf16.mxu0 %v5041
        %5334 = vmatpush1.bf16.msra.mxu0 %v5040
        %5335 = vmatprep.subr.bf16.mxu0 %v5044
        %5336 = vmatpush1.bf16.msra.mxu0 %v5043
        %5337 = vmatprep.subr.bf16.mxu0 %v5047
        %5338 = vmatpush1.bf16.msra.mxu0 %v5046
        %5339 = vmatprep.subr.bf16.mxu0 %v5050
        %5340 = vmatpush1.bf16.msra.mxu0 %v5049
        %5341 = vmatprep.mubr.bf16.mxu0 %v4993
        %5342 = vmatmul.mubr.bf16.gmra.mrb[0].mxu0 %v4992
        %v5343 = vpop.f32.mrb[0].mxu0
        %v5344 = vadd.f32 %v5297, %v5343
        %v5345 = vpop.f32.mrb[0].mxu0
        %v5346 = vadd.f32 %v5301, %v5345
        %v5347 = vpop.f32.mrb[0].mxu0
        %v5348 = vpop.f32.mrb[0].mxu0
        %5349 = vdwg.mxu0
        %5350 = vmatprep.subr.bf16.mxu0 %v5053
        %5351 = vmatpush1.bf16.msra.mxu0 %v5052
        %5352 = vmatprep.subr.bf16.mxu0 %v5056
        %5353 = vmatpush1.bf16.msra.mxu0 %v5055
        %5354 = vmatprep.subr.bf16.mxu0 %v5059
        %5355 = vmatpush1.bf16.msra.mxu0 %v5058
        %5356 = vmatprep.subr.bf16.mxu0 %v5062
        %5357 = vmatpush1.bf16.msra.mxu0 %v5061
        %5358 = vmatprep.subr.bf16.mxu0 %v5065
        %5359 = vmatpush1.bf16.msra.mxu0 %v5064
        %5360 = vmatprep.subr.bf16.mxu0 %v5068
        %5361 = vmatpush1.bf16.msra.mxu0 %v5067
        %5362 = vmatprep.subr.bf16.mxu0 %v5071
        %5363 = vmatpush1.bf16.msra.mxu0 %v5070
        %5364 = vmatprep.subr.bf16.mxu0 %v5074
        %5365 = vmatpush1.bf16.msra.mxu0 %v5073
        %5366 = vmatprep.subr.bf16.mxu0 %v5077
        %5367 = vmatpush1.bf16.msra.mxu0 %v5076
        %5368 = vmatprep.subr.bf16.mxu0 %v5080
        %5369 = vmatpush1.bf16.msra.mxu0 %v5079
        %5370 = vmatprep.subr.bf16.mxu0 %v5083
        %5371 = vmatpush1.bf16.msra.mxu0 %v5082
        %5372 = vmatprep.subr.bf16.mxu0 %v5086
        %5373 = vmatpush1.bf16.msra.mxu0 %v5085
        %5374 = vmatprep.subr.bf16.mxu0 %v5089
        %5375 = vmatpush1.bf16.msra.mxu0 %v5088
        %5376 = vmatprep.subr.bf16.mxu0 %v5092
        %5377 = vmatpush1.bf16.msra.mxu0 %v5091
        %5378 = vmatprep.subr.bf16.mxu0 %v5095
        %5379 = vmatpush1.bf16.msra.mxu0 %v5094
        %5380 = vmatprep.subr.bf16.mxu0 %v5098
        %5381 = vmatpush1.bf16.msra.mxu0 %v5097
        %5382 = vmatprep.mubr.bf16.mxu0 %v4995
        %5383 = vmatmul.mubr.bf16.gmra.mrb[0].mxu0 %v4994
        %v5384 = vpop.f32.mrb[0].mxu0
        %v5385 = vadd.f32 %v5344, %v5384
        %v5386 = vpop.f32.mrb[0].mxu0
        %v5387 = vadd.f32 %v5346, %v5386
        %v5388 = vpop.f32.mrb[0].mxu0
        %v5389 = vpop.f32.mrb[0].mxu0
        %5390 = vdwg.mxu0
        %5391 = vmatprep.subr.bf16.mxu0 %v5101
        %5392 = vmatpush1.bf16.msra.mxu0 %v5100
        %5393 = vmatprep.subr.bf16.mxu0 %v5104
        %5394 = vmatpush1.bf16.msra.mxu0 %v5103
        %5395 = vmatprep.subr.bf16.mxu0 %v5107
        %5396 = vmatpush1.bf16.msra.mxu0 %v5106
        %5397 = vmatprep.subr.bf16.mxu0 %v5110
        %5398 = vmatpush1.bf16.msra.mxu0 %v5109
        %5399 = vmatprep.subr.bf16.mxu0 %v5113
        %5400 = vmatpush1.bf16.msra.mxu0 %v5112
        %5401 = vmatprep.subr.bf16.mxu0 %v5116
        %5402 = vmatpush1.bf16.msra.mxu0 %v5115
        %5403 = vmatprep.subr.bf16.mxu0 %v5119
        %5404 = vmatpush1.bf16.msra.mxu0 %v5118
        %5405 = vmatprep.subr.bf16.mxu0 %v5122
        %5406 = vmatpush1.bf16.msra.mxu0 %v5121
        %5407 = vmatprep.subr.bf16.mxu0 %v5125
        %5408 = vmatpush1.bf16.msra.mxu0 %v5124
        %5409 = vmatprep.subr.bf16.mxu0 %v5128
        %5410 = vmatpush1.bf16.msra.mxu0 %v5127
        %5411 = vmatprep.subr.bf16.mxu0 %v5131
        %5412 = vmatpush1.bf16.msra.mxu0 %v5130
        %5413 = vmatprep.subr.bf16.mxu0 %v5134
        %5414 = vmatpush1.bf16.msra.mxu0 %v5133
        %5415 = vmatprep.subr.bf16.mxu0 %v5137
        %5416 = vmatpush1.bf16.msra.mxu0 %v5136
        %5417 = vmatprep.subr.bf16.mxu0 %v5140
        %5418 = vmatpush1.bf16.msra.mxu0 %v5139
        %5419 = vmatprep.subr.bf16.mxu0 %v5143
        %5420 = vmatpush1.bf16.msra.mxu0 %v5142
        %5421 = vmatprep.subr.bf16.mxu0 %v5146
        %5422 = vmatpush1.bf16.msra.mxu0 %v5145
        %5423 = vmatprep.mubr.bf16.mxu0 %v4997
        %5424 = vmatmul.mubr.bf16.gmra.mrb[0].mxu0 %v4996
        %v5425 = vpop.f32.mrb[0].mxu0
        %v5426 = vadd.f32 %v5385, %v5425
        %v5427 = vpop.f32.mrb[0].mxu0
        %v5428 = vadd.f32 %v5387, %v5427
        %v5429 = vpop.f32.mrb[0].mxu0
        %v5430 = vpop.f32.mrb[0].mxu0
        %5431 = vdwg.mxu0
        %5432 = vmatprep.subr.bf16.mxu0 %v5149
        %5433 = vmatpush1.bf16.msra.mxu0 %v5148
        %5434 = vmatprep.subr.bf16.mxu0 %v5152
        %5435 = vmatpush1.bf16.msra.mxu0 %v5151
        %5436 = vmatprep.subr.bf16.mxu0 %v5155
        %5437 = vmatpush1.bf16.msra.mxu0 %v5154
        %5438 = vmatprep.subr.bf16.mxu0 %v5158
        %5439 = vmatpush1.bf16.msra.mxu0 %v5157
        %5440 = vmatprep.subr.bf16.mxu0 %v5161
        %5441 = vmatpush1.bf16.msra.mxu0 %v5160
        %5442 = vmatprep.subr.bf16.mxu0 %v5164
        %5443 = vmatpush1.bf16.msra.mxu0 %v5163
        %5444 = vmatprep.subr.bf16.mxu0 %v5167
        %5445 = vmatpush1.bf16.msra.mxu0 %v5166
        %5446 = vmatprep.subr.bf16.mxu0 %v5170
        %5447 = vmatpush1.bf16.msra.mxu0 %v5169
        %5448 = vmatprep.subr.bf16.mxu0 %v5173
        %5449 = vmatpush1.bf16.msra.mxu0 %v5172
        %5450 = vmatprep.subr.bf16.mxu0 %v5176
        %5451 = vmatpush1.bf16.msra.mxu0 %v5175
        %5452 = vmatprep.subr.bf16.mxu0 %v5179
        %5453 = vmatpush1.bf16.msra.mxu0 %v5178
        %5454 = vmatprep.subr.bf16.mxu0 %v5182
        %5455 = vmatpush1.bf16.msra.mxu0 %v5181
        %5456 = vmatprep.subr.bf16.mxu0 %v5185
        %5457 = vmatpush1.bf16.msra.mxu0 %v5184
        %5458 = vmatprep.subr.bf16.mxu0 %v5188
        %5459 = vmatpush1.bf16.msra.mxu0 %v5187
        %5460 = vmatprep.subr.bf16.mxu0 %v5191
        %5461 = vmatpush1.bf16.msra.mxu0 %v5190
        %5462 = vmatprep.subr.bf16.mxu0 %v5194
        %5463 = vmatpush1.bf16.msra.mxu0 %v5193
        %5464 = vmatprep.mubr.bf16.mxu0 %v4999
        %5465 = vmatmul.mubr.bf16.gmra.mrb[0].mxu0 %v4998
        %v5466 = vpop.f32.mrb[0].mxu0
        %v5467 = vadd.f32 %v5426, %v5466
        %v5468 = vpop.f32.mrb[0].mxu0
        %v5469 = vadd.f32 %v5428, %v5468
        %v5470 = vpop.f32.mrb[0].mxu0
        %v5471 = vpop.f32.mrb[0].mxu0
        %5472 = vdwg.mxu0
        %5473 = vmatprep.subr.bf16.mxu0 %v5197
        %5474 = vmatpush1.bf16.msra.mxu0 %v5196
        %5475 = vmatprep.subr.bf16.mxu0 %v5200
        %5476 = vmatpush1.bf16.msra.mxu0 %v5199
        %5477 = vmatprep.subr.bf16.mxu0 %v5203
        %5478 = vmatpush1.bf16.msra.mxu0 %v5202
        %5479 = vmatprep.subr.bf16.mxu0 %v5206
        %5480 = vmatpush1.bf16.msra.mxu0 %v5205
        %5481 = vmatprep.subr.bf16.mxu0 %v5209
        %5482 = vmatpush1.bf16.msra.mxu0 %v5208
        %5483 = vmatprep.subr.bf16.mxu0 %v5212
        %5484 = vmatpush1.bf16.msra.mxu0 %v5211
        %5485 = vmatprep.subr.bf16.mxu0 %v5215
        %5486 = vmatpush1.bf16.msra.mxu0 %v5214
        %5487 = vmatprep.subr.bf16.mxu0 %v5218
        %5488 = vmatpush1.bf16.msra.mxu0 %v5217
        %5489 = vmatprep.subr.bf16.mxu0 %v5221
        %5490 = vmatpush1.bf16.msra.mxu0 %v5220
        %5491 = vmatprep.subr.bf16.mxu0 %v5224
        %5492 = vmatpush1.bf16.msra.mxu0 %v5223
        %5493 = vmatprep.subr.bf16.mxu0 %v5227
        %5494 = vmatpush1.bf16.msra.mxu0 %v5226
        %5495 = vmatprep.subr.bf16.mxu0 %v5230
        %5496 = vmatpush1.bf16.msra.mxu0 %v5229
        %5497 = vmatprep.subr.bf16.mxu0 %v5233
        %5498 = vmatpush1.bf16.msra.mxu0 %v5232
        %5499 = vmatprep.subr.bf16.mxu0 %v5236
        %5500 = vmatpush1.bf16.msra.mxu0 %v5235
        %5501 = vmatprep.subr.bf16.mxu0 %v5239
        %5502 = vmatpush1.bf16.msra.mxu0 %v5238
        %5503 = vmatprep.subr.bf16.mxu0 %v5242
        %5504 = vmatpush1.bf16.msra.mxu0 %v5241
        %5505 = vmatprep.mubr.bf16.mxu0 %v5001
        %5506 = vmatmul.mubr.bf16.gmra.mrb[0].mxu0 %v5000
        %v5507 = vpop.f32.mrb[0].mxu0
        %v5508 = vadd.f32 %v5467, %v5507
        %v5509 = vpop.f32.mrb[0].mxu0
        %v5510 = vadd.f32 %v5469, %v5509
        %v5511 = vpop.f32.mrb[0].mxu0
        %v5512 = vpop.f32.mrb[0].mxu0
        %5513 = vdwg.mxu0
        %5514 = vmatprep.subr.bf16.mxu0 %v5245
        %5515 = vmatpush1.bf16.msra.mxu0 %v5244
        %5516 = vmatprep.subr.bf16.mxu0 %v5248
        %5517 = vmatpush1.bf16.msra.mxu0 %v5247
        %5518 = vmatprep.subr.bf16.mxu0 %v5251
        %5519 = vmatpush1.bf16.msra.mxu0 %v5250
        %5520 = vmatprep.subr.bf16.mxu0 %v5254
        %5521 = vmatpush1.bf16.msra.mxu0 %v5253
        %5522 = vmatprep.subr.bf16.mxu0 %v5257
        %5523 = vmatpush1.bf16.msra.mxu0 %v5256
        %5524 = vmatprep.subr.bf16.mxu0 %v5260
        %5525 = vmatpush1.bf16.msra.mxu0 %v5259
        %5526 = vmatprep.subr.bf16.mxu0 %v5263
        %5527 = vmatpush1.bf16.msra.mxu0 %v5262
        %5528 = vmatprep.subr.bf16.mxu0 %v5266
        %5529 = vmatpush1.bf16.msra.mxu0 %v5265
        %5530 = vmatprep.subr.bf16.mxu0 %v5269
        %5531 = vmatpush1.bf16.msra.mxu0 %v5268
        %5532 = vmatprep.subr.bf16.mxu0 %v5272
        %5533 = vmatpush1.bf16.msra.mxu0 %v5271
        %5534 = vmatprep.subr.bf16.mxu0 %v5275
        %5535 = vmatpush1.bf16.msra.mxu0 %v5274
        %5536 = vmatprep.subr.bf16.mxu0 %v5278
        %5537 = vmatpush1.bf16.msra.mxu0 %v5277
        %5538 = vmatprep.subr.bf16.mxu0 %v5281
        %5539 = vmatpush1.bf16.msra.mxu0 %v5280
        %5540 = vmatprep.subr.bf16.mxu0 %v5284
        %5541 = vmatpush1.bf16.msra.mxu0 %v5283
        %5542 = vmatprep.subr.bf16.mxu0 %v5287
        %5543 = vmatpush1.bf16.msra.mxu0 %v5286
        %5544 = vmatprep.subr.bf16.mxu0 %v5290
        %5545 = vmatpush1.bf16.msra.mxu0 %v5289
        %5546 = vmatprep.mubr.bf16.mxu0 %v5003
        %5547 = vmatmul.mubr.bf16.gmra.mrb[0].mxu0 %v5002
        %v5548 = vpop.f32.mrb[0].mxu0
        %v5549 = vadd.f32 %v5508, %v5548
        %v5550 = vpop.f32.mrb[0].mxu0
        %v5551 = vadd.f32 %v5510, %v5550
        %v5552 = vpop.f32.mrb[0].mxu0
        %v5553 = vpop.f32.mrb[0].mxu0
        %5554 = vdwg.mxu0
        %5555 = vmatprep.subr.bf16.mxu0 0
        %5556 = vmatpush1.bf16.msra.mxu0 %v5006
        %5557 = vmatprep.subr.bf16.mxu0 0
        %5558 = vmatpush1.bf16.msra.mxu0 %v5009
        %5559 = vmatprep.subr.bf16.mxu0 0
        %5560 = vmatpush1.bf16.msra.mxu0 %v5012
        %5561 = vmatprep.subr.bf16.mxu0 0
        %5562 = vmatpush1.bf16.msra.mxu0 %v5015
        %5563 = vmatprep.subr.bf16.mxu0 0
        %5564 = vmatpush1.bf16.msra.mxu0 %v5018
        %5565 = vmatprep.subr.bf16.mxu0 0
        %5566 = vmatpush1.bf16.msra.mxu0 %v5021
        %5567 = vmatprep.subr.bf16.mxu0 0
        %5568 = vmatpush1.bf16.msra.mxu0 %v5024
        %5569 = vmatprep.subr.bf16.mxu0 0
        %5570 = vmatpush1.bf16.msra.mxu0 %v5027
        %5571 = vmatprep.subr.bf16.mxu0 0
        %5572 = vmatpush1.bf16.msra.mxu0 %v5030
        %5573 = vmatprep.subr.bf16.mxu0 0
        %5574 = vmatpush1.bf16.msra.mxu0 %v5033
        %5575 = vmatprep.subr.bf16.mxu0 0
        %5576 = vmatpush1.bf16.msra.mxu0 %v5036
        %5577 = vmatprep.subr.bf16.mxu0 0
        %5578 = vmatpush1.bf16.msra.mxu0 %v5039
        %5579 = vmatprep.subr.bf16.mxu0 0
        %5580 = vmatpush1.bf16.msra.mxu0 %v5042
        %5581 = vmatprep.subr.bf16.mxu0 0
        %5582 = vmatpush1.bf16.msra.mxu0 %v5045
        %5583 = vmatprep.subr.bf16.mxu0 0
        %5584 = vmatpush1.bf16.msra.mxu0 %v5048
        %5585 = vmatprep.subr.bf16.mxu0 0
        %5586 = vmatpush1.bf16.msra.mxu0 %v5051
        %5587 = vmatprep.mubr.bf16.mxu0 %v4993
        %5588 = vmatmul.mubr.bf16.gmra.mrb[0].mxu0 %v4992
        %v5589 = vpop.f32.mrb[0].mxu0
        %v5590 = vadd.f32 %v5305, %v5589
        %v5591 = vpop.f32.mrb[0].mxu0
        %v5592 = vpop.f32.mrb[0].mxu0
        %v5593 = vpop.f32.mrb[0].mxu0
        %5594 = vdwg.mxu0
        %5595 = vmatprep.subr.bf16.mxu0 0
        %5596 = vmatpush1.bf16.msra.mxu0 %v5054
        %5597 = vmatprep.subr.bf16.mxu0 0
        %5598 = vmatpush1.bf16.msra.mxu0 %v5057
        %5599 = vmatprep.subr.bf16.mxu0 0
        %5600 = vmatpush1.bf16.msra.mxu0 %v5060
        %5601 = vmatprep.subr.bf16.mxu0 0
        %5602 = vmatpush1.bf16.msra.mxu0 %v5063
        %5603 = vmatprep.subr.bf16.mxu0 0
        %5604 = vmatpush1.bf16.msra.mxu0 %v5066
        %5605 = vmatprep.subr.bf16.mxu0 0
        %5606 = vmatpush1.bf16.msra.mxu0 %v5069
        %5607 = vmatprep.subr.bf16.mxu0 0
        %5608 = vmatpush1.bf16.msra.mxu0 %v5072
        %5609 = vmatprep.subr.bf16.mxu0 0
        %5610 = vmatpush1.bf16.msra.mxu0 %v5075
        %5611 = vmatprep.subr.bf16.mxu0 0
        %5612 = vmatpush1.bf16.msra.mxu0 %v5078
        %5613 = vmatprep.subr.bf16.mxu0 0
        %5614 = vmatpush1.bf16.msra.mxu0 %v5081
        %5615 = vmatprep.subr.bf16.mxu0 0
        %5616 = vmatpush1.bf16.msra.mxu0 %v5084
        %5617 = vmatprep.subr.bf16.mxu0 0
        %5618 = vmatpush1.bf16.msra.mxu0 %v5087
        %5619 = vmatprep.subr.bf16.mxu0 0
        %5620 = vmatpush1.bf16.msra.mxu0 %v5090
        %5621 = vmatprep.subr.bf16.mxu0 0
        %5622 = vmatpush1.bf16.msra.mxu0 %v5093
        %5623 = vmatprep.subr.bf16.mxu0 0
        %5624 = vmatpush1.bf16.msra.mxu0 %v5096
        %5625 = vmatprep.subr.bf16.mxu0 0
        %5626 = vmatpush1.bf16.msra.mxu0 %v5099
        %5627 = vmatprep.mubr.bf16.mxu0 %v4995
        %5628 = vmatmul.mubr.bf16.gmra.mrb[0].mxu0 %v4994
        %v5629 = vpop.f32.mrb[0].mxu0
        %v5630 = vadd.f32 %v5590, %v5629
        %v5631 = vpop.f32.mrb[0].mxu0
        %v5632 = vpop.f32.mrb[0].mxu0
        %v5633 = vpop.f32.mrb[0].mxu0
        %5634 = vdwg.mxu0
        %5635 = vmatprep.subr.bf16.mxu0 0
        %5636 = vmatpush1.bf16.msra.mxu0 %v5102
        %5637 = vmatprep.subr.bf16.mxu0 0
        %5638 = vmatpush1.bf16.msra.mxu0 %v5105
        %5639 = vmatprep.subr.bf16.mxu0 0
        %5640 = vmatpush1.bf16.msra.mxu0 %v5108
        %5641 = vmatprep.subr.bf16.mxu0 0
        %5642 = vmatpush1.bf16.msra.mxu0 %v5111
        %5643 = vmatprep.subr.bf16.mxu0 0
        %5644 = vmatpush1.bf16.msra.mxu0 %v5114
        %5645 = vmatprep.subr.bf16.mxu0 0
        %5646 = vmatpush1.bf16.msra.mxu0 %v5117
        %5647 = vmatprep.subr.bf16.mxu0 0
        %5648 = vmatpush1.bf16.msra.mxu0 %v5120
        %5649 = vmatprep.subr.bf16.mxu0 0
        %5650 = vmatpush1.bf16.msra.mxu0 %v5123
        %5651 = vmatprep.subr.bf16.mxu0 0
        %5652 = vmatpush1.bf16.msra.mxu0 %v5126
        %5653 = vmatprep.subr.bf16.mxu0 0
        %5654 = vmatpush1.bf16.msra.mxu0 %v5129
        %5655 = vmatprep.subr.bf16.mxu0 0
        %5656 = vmatpush1.bf16.msra.mxu0 %v5132
        %5657 = vmatprep.subr.bf16.mxu0 0
        %5658 = vmatpush1.bf16.msra.mxu0 %v5135
        %5659 = vmatprep.subr.bf16.mxu0 0
        %5660 = vmatpush1.bf16.msra.mxu0 %v5138
        %5661 = vmatprep.subr.bf16.mxu0 0
        %5662 = vmatpush1.bf16.msra.mxu0 %v5141
        %5663 = vmatprep.subr.bf16.mxu0 0
        %5664 = vmatpush1.bf16.msra.mxu0 %v5144
        %5665 = vmatprep.subr.bf16.mxu0 0
        %5666 = vmatpush1.bf16.msra.mxu0 %v5147
        %5667 = vmatprep.mubr.bf16.mxu0 %v4997
        %5668 = vmatmul.mubr.bf16.gmra.mrb[0].mxu0 %v4996
        %v5669 = vpop.f32.mrb[0].mxu0
        %v5670 = vadd.f32 %v5630, %v5669
        %v5671 = vpop.f32.mrb[0].mxu0
        %v5672 = vpop.f32.mrb[0].mxu0
        %v5673 = vpop.f32.mrb[0].mxu0
        %5674 = vdwg.mxu0
        %5675 = vmatprep.subr.bf16.mxu0 0
        %5676 = vmatpush1.bf16.msra.mxu0 %v5150
        %5677 = vmatprep.subr.bf16.mxu0 0
        %5678 = vmatpush1.bf16.msra.mxu0 %v5153
        %5679 = vmatprep.subr.bf16.mxu0 0
        %5680 = vmatpush1.bf16.msra.mxu0 %v5156
        %5681 = vmatprep.subr.bf16.mxu0 0
        %5682 = vmatpush1.bf16.msra.mxu0 %v5159
        %5683 = vmatprep.subr.bf16.mxu0 0
        %5684 = vmatpush1.bf16.msra.mxu0 %v5162
        %5685 = vmatprep.subr.bf16.mxu0 0
        %5686 = vmatpush1.bf16.msra.mxu0 %v5165
        %5687 = vmatprep.subr.bf16.mxu0 0
        %5688 = vmatpush1.bf16.msra.mxu0 %v5168
        %5689 = vmatprep.subr.bf16.mxu0 0
        %5690 = vmatpush1.bf16.msra.mxu0 %v5171
        %5691 = vmatprep.subr.bf16.mxu0 0
        %5692 = vmatpush1.bf16.msra.mxu0 %v5174
        %5693 = vmatprep.subr.bf16.mxu0 0
        %5694 = vmatpush1.bf16.msra.mxu0 %v5177
        %5695 = vmatprep.subr.bf16.mxu0 0
        %5696 = vmatpush1.bf16.msra.mxu0 %v5180
        %5697 = vmatprep.subr.bf16.mxu0 0
        %5698 = vmatpush1.bf16.msra.mxu0 %v5183
        %5699 = vmatprep.subr.bf16.mxu0 0
        %5700 = vmatpush1.bf16.msra.mxu0 %v5186
        %5701 = vmatprep.subr.bf16.mxu0 0
        %5702 = vmatpush1.bf16.msra.mxu0 %v5189
        %5703 = vmatprep.subr.bf16.mxu0 0
        %5704 = vmatpush1.bf16.msra.mxu0 %v5192
        %5705 = vmatprep.subr.bf16.mxu0 0
        %5706 = vmatpush1.bf16.msra.mxu0 %v5195
        %5707 = vmatprep.mubr.bf16.mxu0 %v4999
        %5708 = vmatmul.mubr.bf16.gmra.mrb[0].mxu0 %v4998
        %v5709 = vpop.f32.mrb[0].mxu0
        %v5710 = vadd.f32 %v5670, %v5709
        %v5711 = vpop.f32.mrb[0].mxu0
        %v5712 = vpop.f32.mrb[0].mxu0
        %v5713 = vpop.f32.mrb[0].mxu0
        %5714 = vdwg.mxu0
        %5715 = vmatprep.subr.bf16.mxu0 0
        %5716 = vmatpush1.bf16.msra.mxu0 %v5198
        %5717 = vmatprep.subr.bf16.mxu0 0
        %5718 = vmatpush1.bf16.msra.mxu0 %v5201
        %5719 = vmatprep.subr.bf16.mxu0 0
        %5720 = vmatpush1.bf16.msra.mxu0 %v5204
        %5721 = vmatprep.subr.bf16.mxu0 0
        %5722 = vmatpush1.bf16.msra.mxu0 %v5207
        %5723 = vmatprep.subr.bf16.mxu0 0
        %5724 = vmatpush1.bf16.msra.mxu0 %v5210
        %5725 = vmatprep.subr.bf16.mxu0 0
        %5726 = vmatpush1.bf16.msra.mxu0 %v5213
        %5727 = vmatprep.subr.bf16.mxu0 0
        %5728 = vmatpush1.bf16.msra.mxu0 %v5216
        %5729 = vmatprep.subr.bf16.mxu0 0
        %5730 = vmatpush1.bf16.msra.mxu0 %v5219
        %5731 = vmatprep.subr.bf16.mxu0 0
        %5732 = vmatpush1.bf16.msra.mxu0 %v5222
        %5733 = vmatprep.subr.bf16.mxu0 0
        %5734 = vmatpush1.bf16.msra.mxu0 %v5225
        %5735 = vmatprep.subr.bf16.mxu0 0
        %5736 = vmatpush1.bf16.msra.mxu0 %v5228
        %5737 = vmatprep.subr.bf16.mxu0 0
        %5738 = vmatpush1.bf16.msra.mxu0 %v5231
        %5739 = vmatprep.subr.bf16.mxu0 0
        %5740 = vmatpush1.bf16.msra.mxu0 %v5234
        %5741 = vmatprep.subr.bf16.mxu0 0
        %5742 = vmatpush1.bf16.msra.mxu0 %v5237
        %5743 = vmatprep.subr.bf16.mxu0 0
        %5744 = vmatpush1.bf16.msra.mxu0 %v5240
        %5745 = vmatprep.subr.bf16.mxu0 0
        %5746 = vmatpush1.bf16.msra.mxu0 %v5243
        %5747 = vmatprep.mubr.bf16.mxu0 %v5001
        %5748 = vmatmul.mubr.bf16.gmra.mrb[0].mxu0 %v5000
        %v5749 = vpop.f32.mrb[0].mxu0
        %v5750 = vadd.f32 %v5710, %v5749
        %v5751 = vpop.f32.mrb[0].mxu0
        %v5752 = vpop.f32.mrb[0].mxu0
        %v5753 = vpop.f32.mrb[0].mxu0
        %5754 = vdwg.mxu0
        %5755 = vmatprep.subr.bf16.mxu0 0
        %5756 = vmatpush1.bf16.msra.mxu0 %v5246
        %5757 = vmatprep.subr.bf16.mxu0 0
        %5758 = vmatpush1.bf16.msra.mxu0 %v5249
        %5759 = vmatprep.subr.bf16.mxu0 0
        %5760 = vmatpush1.bf16.msra.mxu0 %v5252
        %5761 = vmatprep.subr.bf16.mxu0 0
        %5762 = vmatpush1.bf16.msra.mxu0 %v5255
        %5763 = vmatprep.subr.bf16.mxu0 0
        %5764 = vmatpush1.bf16.msra.mxu0 %v5258
        %5765 = vmatprep.subr.bf16.mxu0 0
        %5766 = vmatpush1.bf16.msra.mxu0 %v5261
        %5767 = vmatprep.subr.bf16.mxu0 0
        %5768 = vmatpush1.bf16.msra.mxu0 %v5264
        %5769 = vmatprep.subr.bf16.mxu0 0
        %5770 = vmatpush1.bf16.msra.mxu0 %v5267
        %5771 = vmatprep.subr.bf16.mxu0 0
        %5772 = vmatpush1.bf16.msra.mxu0 %v5270
        %5773 = vmatprep.subr.bf16.mxu0 0
        %5774 = vmatpush1.bf16.msra.mxu0 %v5273
        %5775 = vmatprep.subr.bf16.mxu0 0
        %5776 = vmatpush1.bf16.msra.mxu0 %v5276
        %5777 = vmatprep.subr.bf16.mxu0 0
        %5778 = vmatpush1.bf16.msra.mxu0 %v5279
        %5779 = vmatprep.subr.bf16.mxu0 0
        %5780 = vmatpush1.bf16.msra.mxu0 %v5282
        %5781 = vmatprep.subr.bf16.mxu0 0
        %5782 = vmatpush1.bf16.msra.mxu0 %v5285
        %5783 = vmatprep.subr.bf16.mxu0 0
        %5784 = vmatpush1.bf16.msra.mxu0 %v5288
        %5785 = vmatprep.subr.bf16.mxu0 0
        %5786 = vmatpush1.bf16.msra.mxu0 %v5291
        %5787 = vmatprep.mubr.bf16.mxu0 %v5003
        %5788 = vmatmul.mubr.bf16.gmra.mrb[0].mxu0 %v5002
        %v5789 = vpop.f32.mrb[0].mxu0
        %v5790 = vadd.f32 %v5750, %v5789
        %v5791 = vpop.f32.mrb[0].mxu0
        %v5792 = vpop.f32.mrb[0].mxu0
        %v5793 = vpop.f32.mrb[0].mxu0
        %5794 = vdwg.mxu0
        %v5795 = vadd.f32 %v4003, %v5549
        %v5796 = vadd.f32 %v4004, %v5551
        %v5797 = vadd.f32 %v4005, %v5790
        %5798 = vst [vmem:[%s478] sm:$0x1f] %v5795
        %5799 = vst [vmem:[%s478 + $0x8] sm:$0x1f] %v5796
        %5800 = vst [vmem:[%s478 + $0x10] sm:$0x1f] %v5797
        %p5801 = scmp.lt.s32.totalorder %s28, 1
        %s5802 = scalar_select %p5801, %s28, 1
        %s5803 = smul.addr %s5802, 3
        %s5804 = smul.addr %s5803, 8
        %s5805 = scalar_lea.vmem %s12, %s5804
        // Predicated region
        $region105: #{tpu_custom_call.1} parent=59 // pred_check
          %p5806 = pneg %p261
        $region106: #{tpu_custom_call.1} parent=59 // pred_check_branch
          %5808 = sbr.rel (%p5806) target = $region108
        $region107: #{tpu_custom_call.1} parent=59 // pred_region
          _
        $region108: #{tpu_custom_call.1} parent=59 // pred_fallthru
          _
      $region60: #{tpu_custom_call.1} parent=5 // pred_fallthru
        _
      %p5809 = scmp.le.s32.totalorder 2, %s23
      // Predicated region
      $region109: #{tpu_custom_call.1} parent=5 // pred_check
        %p5810 = pneg %p5809
      $region110: #{tpu_custom_call.1} parent=5 // pred_check_branch
        %5812 = sbr.rel (%p5810) target = $region112
      $region111: #{tpu_custom_call.1} parent=5 // pred_region
        %s5813 = ssub.s32 %s23, 2
        // Predicated region
        $region113: #{tpu_custom_call.1} parent=111 // pred_check
          %p5814 = pneg %p267
        $region114: #{tpu_custom_call.1} parent=111 // pred_check_branch
          %5816 = sbr.rel (%p5814) target = $region116
        $region115: #{tpu_custom_call.1} parent=111 // pred_region
          %p5817 = scmp.lt.s32.totalorder %s29, 1
          %s5818 = scalar_select %p5817, %s29, 1
          %s5819 = smul.addr %s5818, 3
          %s5820 = smul.addr %s5819, 8
          %s5821 = scalar_lea.vmem %s12, %s5820
        $region116: #{tpu_custom_call.1} parent=111 // pred_fallthru
          _
      $region112: #{tpu_custom_call.1} parent=5 // pred_fallthru
        _
    $region6: #{tpu_custom_call.1} parent=1 // loop_footer
      %s27 = sadd.s32 1, %s23
    $region7: #{tpu_custom_call.1} parent=1 // loop_footer_branch
      %22 = sbr.rel target = $region3
    $region8: #{tpu_custom_call.1} parent=1 // loop_exit
      _
    %5822 = vsyncpa [#allocation6], 1
    %s5823 = scalar_lea.sflag [#allocation6], 1
    %5824 = vsyncpa %s5823, 1
    %5825 = vsyncpa [#allocation8], 1
    %5826 = vsyncpa [#allocation11], 1
    %5827 = vsyncpa [#allocation14], 1
    %5828 = vsyncpa [#allocation17], 1
  %5829 = vsyncmov [#allocation4]
  %s5830 = vpop.sfrf %5829
  %p5831 = scmp.eq.s32.totalorder %s5830, 0
  %p5832 = pneg %p5831
  %5834 = shalt.err (%p5832)
  %s5835 = scalar_lea.sflag [#allocation4], 1
  %5836 = vsyncmov %s5835
  %s5837 = vpop.sfrf %5836
  %p5838 = scmp.eq.s32.totalorder %s5837, 0
  %p5839 = pneg %p5838
  %5841 = shalt.err (%p5839)

</llo_original>
